<compile_context>
chip_gen: v6e
topology: v6e:2x2x1
jax: 0.10.0
libtpu: 0.0.40
codegen_flags: <defaults>
</compile_context>

<pallas_src>
import functools

import jax
import jax.numpy as jnp
from jax.experimental import pallas as pl
from jax.experimental.pallas import tpu as pltpu


# ----------------------------- small helpers -----------------------------

def _round_up(x, m):
    return ((x + m - 1) // m) * m


def _pick_tm(M, cap=512):
    """16-aligned (bf16 sublane tile) M-tile.  Prefer a divisor of M (so no pad copy is
    needed) that gives >=2 grid steps so 'parallel' grids can use both v7x TensorCores."""
    cap = min(cap, _round_up(M, 16))
    cap -= cap % 16
    for t in range(cap, 15, -16):
        if M % t == 0 and M // t >= 2:
            return t
    if M % 16 == 0 and M <= cap:      # single block, still no pad
        return M
    return max(cap, 16)               # fallback: pad rows


def _pad_rows(x, rows):
    pad = rows - x.shape[0]
    if pad == 0:
        return x
    return jnp.pad(x, ((0, pad),) + ((0, 0),) * (x.ndim - 1))


# ----------------------------- Pallas kernels -----------------------------

def stem_kernel(a_ref, w_ref, b_ref, o_ref):
    # conv-as-matmul (bf16 in, f32 acc) + folded-BN shift + ReLU, bf16 out.
    acc = jnp.dot(a_ref[...], w_ref[...], preferred_element_type=jnp.float32)
    o_ref[...] = jnp.maximum(acc + b_ref[...], 0.0).astype(o_ref.dtype)


def pool_expand_kernel(w0, w1, w2, w3, w4, w5, w6, w7, w8, cw_ref, cb_ref,
                       ident_ref, y1_ref):
    # 3x3/stride-2 maxpool (elementwise max of 9 window views) fused with the bottleneck
    # 1x1 expand (+folded-BN shift + ReLU).  ident (pool output) is the residual input.
    m = w0[...]
    for r in (w1, w2, w3, w4, w5, w6, w7, w8):
        m = jnp.maximum(m, r[...])
    ident_ref[...] = m
    acc = jnp.dot(m, cw_ref[...], preferred_element_type=jnp.float32)
    y1_ref[...] = jnp.maximum(acc + cb_ref[...], 0.0).astype(y1_ref.dtype)


def tail_kernel(a2_ref, id_ref, wblk_ref, b2_ref, w3_ref, b3_ref,
                wds_ref, bds_ref, o_ref):
    # grouped 3x3 conv as ONE block-diagonal matmul (K=1152, N=128) + shift + ReLU,
    # then 1x1 conv + shift, recomputed 1x1-downsample shortcut, residual add + ReLU.
    y2 = jnp.dot(a2_ref[...], wblk_ref[...], preferred_element_type=jnp.float32)
    y2 = jnp.maximum(y2 + b2_ref[...], 0.0)
    acc3 = jnp.dot(y2.astype(jnp.bfloat16), w3_ref[...],
                   preferred_element_type=jnp.float32) + b3_ref[...]
    sc = jnp.dot(id_ref[...], wds_ref[...],
                 preferred_element_type=jnp.float32) + bds_ref[...]
    o_ref[...] = jnp.maximum(acc3 + sc, 0.0).astype(o_ref.dtype)


def head_kernel(feat_ref, w_ref, b_ref, probs_ref, angle_ref, acc_ref, *, hw_total):
    # gridded global-average-pool reduction (f32 accumulator) + FC + Softmax(dim=1)
    # + angles[argmax].
    j = pl.program_id(0)

    @pl.when(j == 0)
    def _():
        acc_ref[...] = jnp.zeros_like(acc_ref)

    acc_ref[...] += jnp.sum(feat_ref[...].astype(jnp.float32), axis=1)   # [N, C]

    @pl.when(j == pl.num_programs(0) - 1)
    def _():
        pooled = acc_ref[...] * (1.0 / float(hw_total))
        logits = jnp.dot(pooled, w_ref[...],
                         preferred_element_type=jnp.float32) + b_ref[...]
        m = jnp.max(logits, axis=-1, keepdims=True)
        e = jnp.exp(logits - m)
        probs_ref[...] = e / jnp.sum(e, axis=-1, keepdims=True)   # exact softmax (output)
        # angles = [0, 90, 180, 270]  =>  angles[argmax] == 90 * argmax (first occurrence);
        # argmax of logits == argmax of softmax(logits).
        col = jax.lax.broadcasted_iota(jnp.int32, logits.shape, 1)
        idx = jnp.min(jnp.where(logits >= m, col, logits.shape[-1]), axis=-1)
        angle_ref[...] = (90 * idx).astype(jnp.int32)[:, None]


# ----------------------------- Pallas wrappers -----------------------------

_PAR = pltpu.CompilerParams(dimension_semantics=("parallel",))


def stem_conv(a_bf16, w_bf16, shift):
    M, K = a_bf16.shape
    Cout = w_bf16.shape[1]
    tm = _pick_tm(M)
    Mp = pl.cdiv(M, tm) * tm
    out = pl.pallas_call(
        stem_kernel,
        out_shape=jax.ShapeDtypeStruct((Mp, Cout), jnp.bfloat16),
        grid=(Mp // tm,),
        in_specs=[
            pl.BlockSpec((tm, K), lambda i: (i, 0)),
            pl.BlockSpec((K, Cout), lambda i: (0, 0)),
            pl.BlockSpec((1, Cout), lambda i: (0, 0)),
        ],
        out_specs=pl.BlockSpec((tm, Cout), lambda i: (i, 0)),
        compiler_params=_PAR,
    )(_pad_rows(a_bf16, Mp), w_bf16, shift)
    return out[:M]


def maxpool_expand(x, cw, cb):
    # x: [N,H,W,C] bf16 stem output.  3x3 / stride 2 / pad 1 maxpool fused with the
    # bottleneck 1x1 expand (BN scale folded into cw) + ReLU.
    N, H, W, C = x.shape
    k, s, pad = 3, 2, 1
    neg = jnp.finfo(x.dtype).min
    xp = jnp.pad(x, ((0, 0), (pad, pad), (pad, pad), (0, 0)), constant_values=neg)
    Ho = (H + 2 * pad - k) // s + 1
    Wo = (W + 2 * pad - k) // s + 1
    M = N * Ho * Wo
    # TODO(synk): the 9 shifted window views are still 9x-materialized by XLA glue; an
    # in-kernel halo gather from a single padded input is left for the full-size model.
    wins = [xp[:, i:i + s * Ho:s, j:j + s * Wo:s, :].reshape(M, C)
            for i in range(k) for j in range(k)]
    Cmid = cw.shape[1]
    tm = _pick_tm(M)
    Mp = pl.cdiv(M, tm) * tm
    wins = [_pad_rows(wv, Mp) for wv in wins]
    ident, y1 = pl.pallas_call(
        pool_expand_kernel,
        out_shape=(jax.ShapeDtypeStruct((Mp, C), x.dtype),
                   jax.ShapeDtypeStruct((Mp, Cmid), jnp.bfloat16)),
        grid=(Mp // tm,),
        in_specs=[pl.BlockSpec((tm, C), lambda i: (i, 0))] * 9
                 + [pl.BlockSpec((C, Cmid), lambda i: (0, 0)),
                    pl.BlockSpec((1, Cmid), lambda i: (0, 0))],
        out_specs=(pl.BlockSpec((tm, C), lambda i: (i, 0)),
                   pl.BlockSpec((tm, Cmid), lambda i: (i, 0))),
        compiler_params=_PAR,
    )(*wins, cw, cb)
    return ident[:M], y1[:M], (N, Ho, Wo)


def bottleneck_tail(a2_bf16, ident_bf16, wblk, b2, w3, b3, wds, bds):
    # fused: block-diagonal grouped 3x3 + BN + ReLU + 1x1 + BN + downsample shortcut
    # (recomputed from ident, no f32 HBM round-trip) + add + ReLU.  bf16 writeback.
    M, K2 = a2_bf16.shape
    Cin = ident_bf16.shape[1]
    Cmid = wblk.shape[1]
    Cout = w3.shape[1]
    tm = _pick_tm(M)
    Mp = pl.cdiv(M, tm) * tm
    # TODO(synk): for the full-size model cap tm (v5e) / set vmem_limit_bytes explicitly
    # and re-derive tiles for v7x's 64 MiB physical VMEM.
    out = pl.pallas_call(
        tail_kernel,
        out_shape=jax.ShapeDtypeStruct((Mp, Cout), jnp.bfloat16),
        grid=(Mp // tm,),
        in_specs=[
            pl.BlockSpec((tm, K2), lambda i: (i, 0)),
            pl.BlockSpec((tm, Cin), lambda i: (i, 0)),
            pl.BlockSpec((K2, Cmid), lambda i: (0, 0)),
            pl.BlockSpec((1, Cmid), lambda i: (0, 0)),
            pl.BlockSpec((Cmid, Cout), lambda i: (0, 0)),
            pl.BlockSpec((1, Cout), lambda i: (0, 0)),
            pl.BlockSpec((Cin, Cout), lambda i: (0, 0)),
            pl.BlockSpec((1, Cout), lambda i: (0, 0)),
        ],
        out_specs=pl.BlockSpec((tm, Cout), lambda i: (i, 0)),
        compiler_params=_PAR,
    )(_pad_rows(a2_bf16, Mp), _pad_rows(ident_bf16, Mp),
      wblk, b2, w3, b3, wds, bds)
    return out[:M]


def head(feat, fc_w, fc_b):
    # feat: [N, HW, C] bf16. Gridded GAP reduction (f32 acc) + FC + softmax + argmax->angle.
    N, HW, C = feat.shape
    thw = min(HW, 512)
    HWp = pl.cdiv(HW, thw) * thw
    if HWp != HW:
        feat = jnp.pad(feat, ((0, 0), (0, HWp - HW), (0, 0)))
    # TODO(synk): on v7x this single 'arbitrary' reduction uses one TensorCore; split the
    # HW axis across cores (or fuse GAP into the tail kernel) when scaling up.
    probs, angle = pl.pallas_call(
        functools.partial(head_kernel, hw_total=HW),
        out_shape=(jax.ShapeDtypeStruct((N, 4), jnp.float32),
                   jax.ShapeDtypeStruct((N, 1), jnp.int32)),
        grid=(HWp // thw,),
        in_specs=[
            pl.BlockSpec((N, thw, C), lambda j: (0, j, 0)),
            pl.BlockSpec((C, 4), lambda j: (0, 0)),
            pl.BlockSpec((1, 4), lambda j: (0, 0)),
        ],
        out_specs=(pl.BlockSpec((N, 4), lambda j: (0, 0)),
                   pl.BlockSpec((N, 1), lambda j: (0, 0))),
        scratch_shapes=[pltpu.VMEM((N, C), jnp.float32)],
        compiler_params=pltpu.CompilerParams(dimension_semantics=("arbitrary",)),
    )(feat, fc_w, fc_b)
    return probs, angle


# ----------------------------- plain-JAX glue (im2col) -----------------------------

def im2col(x, kh, kw, stride, pad):
    # x: [N,H,W,C] -> patches [N*Ho*Wo, kh*kw*C] ordered (kh, kw, cin).
    N, H, W, C = x.shape
    xp = jnp.pad(x, ((0, 0), (pad, pad), (pad, pad), (0, 0)))
    Ho = (H + 2 * pad - kh) // stride + 1
    Wo = (W + 2 * pad - kw) // stride + 1
    cols = [xp[:, i:i + stride * Ho:stride, j:j + stride * Wo:stride, :]
            for i in range(kh) for j in range(kw)]
    patches = jnp.concatenate(cols, axis=-1)
    return patches.reshape(N * Ho * Wo, kh * kw * C), (N, Ho, Wo)


def im2col_cfirst(x, kh, kw, stride, pad):
    # x: [N,H,W,C] -> patches [N*Ho*Wo, C*kh*kw] ordered (cin, kh, kw) so every group's
    # K-slab is lane-contiguous, matching the block-diagonal grouped-conv weight rows.
    N, H, W, C = x.shape
    xp = jnp.pad(x, ((0, 0), (pad, pad), (pad, pad), (0, 0)))
    Ho = (H + 2 * pad - kh) // stride + 1
    Wo = (W + 2 * pad - kw) // stride + 1
    wins = [xp[:, i:i + stride * Ho:stride, j:j + stride * Wo:stride, :]
            for i in range(kh) for j in range(kw)]
    p = jnp.stack(wins, axis=-1)                       # [N,Ho,Wo,C,kh*kw]
    return p.reshape(N * Ho * Wo, C * kh * kw), (N, Ho, Wo)


# ----------------------------- model (params + forward) -----------------------------

def init_params(key):
    ks = jax.random.split(key, 12)

    def w(k, shape, fan_in):
        return jax.random.normal(k, shape, jnp.float32) / jnp.sqrt(float(fan_in))

    def bn(k, c):
        k1, k2 = jax.random.split(k)
        scale = 1.0 + 0.1 * jax.random.normal(k1, (1, c), jnp.float32)
        shift = 0.1 * jax.random.normal(k2, (1, c), jnp.float32)
        return scale, shift

    p = {}
    p["stem_w"] = w(ks[0], (7 * 7 * 3, 64), 7 * 7 * 3)
    p["stem_s"], p["stem_b"] = bn(ks[1], 64)
    p["c1_w"] = w(ks[2], (64, 128), 64)
    p["c1_s"], p["c1_b"] = bn(ks[3], 128)
    # grouped 3x3 conv (32 groups x width 4) stored compact [groups, 4*9, 4]; the 36 K
    # rows per group are ordered (cin_in_group, tap) to match im2col_cfirst columns.
    p["c2_w"] = w(ks[4], (32, 4 * 9, 4), 4 * 9)
    p["c2_s"], p["c2_b"] = bn(ks[5], 128)
    p["c3_w"] = w(ks[6], (128, 256), 128)
    p["c3_s"], p["c3_b"] = bn(ks[7], 256)
    p["ds_w"] = w(ks[8], (64, 256), 64)
    p["ds_s"], p["ds_b"] = bn(ks[9], 256)
    p["fc_w"] = w(ks[10], (256, 4), 256)
    p["fc_b"] = 0.01 * jax.random.normal(ks[11], (1, 4), jnp.float32)
    return p


def prep_weights(p):
    """Fold BN scales into conv weights (kernels then only add the shift), cast matmul
    weights to bf16, and build the dense block-diagonal grouped-conv weight so the
    grouped 3x3 conv is a single MXU-shaped matmul."""
    groups, gk, gcw = p["c2_w"].shape
    gw = p["c2_w"] * p["c2_s"].reshape(groups, 1, gcw)            # fold BN scale per out-ch
    eye = jnp.eye(groups, dtype=gw.dtype)
    wblk = jnp.einsum("gkc,gh->gkhc", gw, eye).reshape(groups * gk, groups * gcw)
    return {
        "stem_w": (p["stem_w"] * p["stem_s"]).astype(jnp.bfloat16),
        "stem_b": p["stem_b"],
        "c1_w": (p["c1_w"] * p["c1_s"]).astype(jnp.bfloat16),
        "c1_b": p["c1_b"],
        "c2_wblk": wblk.astype(jnp.bfloat16),                     # [1152, 128] block-diag
        "c2_b": p["c2_b"],
        "c3_w": (p["c3_w"] * p["c3_s"]).astype(jnp.bfloat16),
        "c3_b": p["c3_b"],
        "ds_w": (p["ds_w"] * p["ds_s"]).astype(jnp.bfloat16),
        "ds_b": p["ds_b"],
        "fc_w": p["fc_w"],
        "fc_b": p["fc_b"],
    }


def orientation_predictor_forward(image_nchw, p):
    q = prep_weights(p)
    x = jnp.transpose(image_nchw, (0, 2, 3, 1))                        # NCHW -> NHWC
    # stem: conv 7x7 / stride 2 / pad 3 (+ folded BN) + ReLU, bf16 matmul / f32 acc
    a, (N, Hs, Ws) = im2col(x.astype(jnp.bfloat16), 7, 7, 2, 3)
    xs = stem_conv(a, q["stem_w"], q["stem_b"]).reshape(N, Hs, Ws, 64)
    # maxpool 3x3 / stride 2 / pad 1 fused with the bottleneck 1x1 expand (+BN+ReLU)
    ident, y1, (N, H, W) = maxpool_expand(xs, q["c1_w"], q["c1_b"])
    # fused bottleneck tail: grouped 3x3 (one block-diagonal matmul) + BN + ReLU
    #   + 1x1 + BN + recomputed 1x1-downsample shortcut + residual add + ReLU
    a2, _ = im2col_cfirst(y1.reshape(N, H, W, 128), 3, 3, 1, 1)        # bf16, group-contiguous
    feat = bottleneck_tail(a2, ident, q["c2_wblk"], q["c2_b"],
                           q["c3_w"], q["c3_b"], q["ds_w"], q["ds_b"])
    # GAP + FC + Softmax(dim=1) + angles[argmax]
    probs, angle = head(feat.reshape(N, H * W, 256), q["fc_w"], q["fc_b"])
    # matches: result = angles[argmax(logits, -1)], logits = Softmax(model(image))
    return angle[:, 0], probs


if __name__ == "__main__":
    key = jax.random.PRNGKey(0)
    pkey, xkey = jax.random.split(key)
    params = init_params(pkey)
    image = jax.random.normal(xkey, (2, 3, 32, 32), jnp.float32)       # NCHW like PyTorch
    angle, probs = jax.jit(orientation_predictor_forward)(image, params)
    jax.block_until_ready((angle, probs))
    assert angle.shape == (2,) and probs.shape == (2, 4)
    print("KERNEL_OK")
</pallas_src>

<mosaic_0001>
module attributes {stable_mosaic.version = 11 : i64} {
  func.func @stem_kernel(%arg0: i32, %arg1: memref<256x147xbf16, #tpu.memory_space<vmem>>, %arg2: memref<147x64xbf16, #tpu.memory_space<vmem>>, %arg3: memref<1x64xf32, #tpu.memory_space<vmem>>, %arg4: memref<256x64xbf16, #tpu.memory_space<vmem>>) attributes {dimension_semantics = [#tpu.dimension_semantics<parallel>], iteration_bounds = array<i64: 2>, scalar_prefetch = 0 : i64, scratch_operands = 0 : i64, tpu.core_type = #tpu.core_type<tc>, window_params = [{transform_indices = @transform_0, window_bounds = array<i64: 256, 147>}, {pipeline_mode = #tpu.pipeline_mode<synchronous>, transform_indices = @transform_1, window_bounds = array<i64: 147, 64>}, {pipeline_mode = #tpu.pipeline_mode<synchronous>, transform_indices = @transform_2, window_bounds = array<i64: 1, 64>}, {transform_indices = @transform_3, window_bounds = array<i64: 256, 64>}]} {
    %c0 = arith.constant 0 : index
    %c0_0 = arith.constant 0 : index
    %0 = vector.load %arg1[%c0, %c0_0] : memref<256x147xbf16, #tpu.memory_space<vmem>>, vector<256x147xbf16>
    %c0_1 = arith.constant 0 : index
    %c0_2 = arith.constant 0 : index
    %1 = vector.load %arg2[%c0_1, %c0_2] : memref<147x64xbf16, #tpu.memory_space<vmem>>, vector<147x64xbf16>
    %cst = arith.constant dense<0.000000e+00> : vector<256x64xf32>
    %2 = tpu.matmul %0, %1, %cst {dimension_numbers = #tpu.dot_dimension_numbers<[1], [0], [0], [1], [0, 0, 1, 1], [], []>} : vector<256x147xbf16>, vector<147x64xbf16>, vector<256x64xf32> -> vector<256x64xf32>
    %c0_3 = arith.constant 0 : index
    %c0_4 = arith.constant 0 : index
    %3 = vector.load %arg3[%c0_3, %c0_4] : memref<1x64xf32, #tpu.memory_space<vmem>>, vector<1x64xf32>
    %4 = vector.broadcast %3 : vector<1x64xf32> to vector<256x64xf32>
    %5 = arith.addf %2, %4 : vector<256x64xf32>
    %cst_5 = arith.constant 0.000000e+00 : f32
    %6 = vector.broadcast %cst_5 : f32 to vector<256x64xf32>
    %7 = arith.maximumf %5, %6 : vector<256x64xf32>
    %8 = arith.truncf %7 : vector<256x64xf32> to vector<256x64xbf16>
    %c0_6 = arith.constant 0 : index
    %c0_7 = arith.constant 0 : index
    %9 = vector.load %arg4[%c0_6, %c0_7] : memref<256x64xbf16, #tpu.memory_space<vmem>>, vector<256x64xbf16>
    tpu.vector_store %arg4[%c0_6, %c0_7], %8 {strides = array<i32>} : memref<256x64xbf16, #tpu.memory_space<vmem>>, vector<256x64xbf16>,
    return
  }
  func.func @transform_0(%arg0: i32) -> (i32, i32) {
    %c0_i32 = arith.constant 0 : i32
    %c0_i32_0 = arith.constant 0 : i32
    return %arg0, %c0_i32 : i32, i32
  }
  func.func @transform_1(%arg0: i32) -> (i32, i32) {
    %c0_i32 = arith.constant 0 : i32
    %c0_i32_0 = arith.constant 0 : i32
    %c0_i32_1 = arith.constant 0 : i32
    return %c0_i32, %c0_i32_0 : i32, i32
  }
  func.func @transform_2(%arg0: i32) -> (i32, i32) {
    %c0_i32 = arith.constant 0 : i32
    %c0_i32_0 = arith.constant 0 : i32
    %c0_i32_1 = arith.constant 0 : i32
    return %c0_i32, %c0_i32_0 : i32, i32
  }
  func.func @transform_3(%arg0: i32) -> (i32, i32) {
    %c0_i32 = arith.constant 0 : i32
    %c0_i32_0 = arith.constant 0 : i32
    return %arg0, %c0_i32 : i32, i32
  }
}

module attributes {stable_mosaic.version = 11 : i64} {
  func.func @pool_expand_kernel(%arg0: i32, %arg1: memref<64x64xbf16, #tpu.memory_space<vmem>>, %arg2: memref<64x64xbf16, #tpu.memory_space<vmem>>, %arg3: memref<64x64xbf16, #tpu.memory_space<vmem>>, %arg4: memref<64x64xbf16, #tpu.memory_space<vmem>>, %arg5: memref<64x64xbf16, #tpu.memory_space<vmem>>, %arg6: memref<64x64xbf16, #tpu.memory_space<vmem>>, %arg7: memref<64x64xbf16, #tpu.memory_space<vmem>>, %arg8: memref<64x64xbf16, #tpu.memory_space<vmem>>, %arg9: memref<64x64xbf16, #tpu.memory_space<vmem>>, %arg10: memref<64x128xbf16, #tpu.memory_space<vmem>>, %arg11: memref<1x128xf32, #tpu.memory_space<vmem>>, %arg12: memref<64x64xbf16, #tpu.memory_space<vmem>>, %arg13: memref<64x128xbf16, #tpu.memory_space<vmem>>) attributes {dimension_semantics = [#tpu.dimension_semantics<parallel>], iteration_bounds = array<i64: 2>, scalar_prefetch = 0 : i64, scratch_operands = 0 : i64, tpu.core_type = #tpu.core_type<tc>, window_params = [{transform_indices = @transform_0, window_bounds = array<i64: 64, 64>}, {transform_indices = @transform_1, window_bounds = array<i64: 64, 64>}, {transform_indices = @transform_2, window_bounds = array<i64: 64, 64>}, {transform_indices = @transform_3, window_bounds = array<i64: 64, 64>}, {transform_indices = @transform_4, window_bounds = array<i64: 64, 64>}, {transform_indices = @transform_5, window_bounds = array<i64: 64, 64>}, {transform_indices = @transform_6, window_bounds = array<i64: 64, 64>}, {transform_indices = @transform_7, window_bounds = array<i64: 64, 64>}, {transform_indices = @transform_8, window_bounds = array<i64: 64, 64>}, {pipeline_mode = #tpu.pipeline_mode<synchronous>, transform_indices = @transform_9, window_bounds = array<i64: 64, 128>}, {pipeline_mode = #tpu.pipeline_mode<synchronous>, transform_indices = @transform_10, window_bounds = array<i64: 1, 128>}, {transform_indices = @transform_11, window_bounds = array<i64: 64, 64>}, {transform_indices = @transform_12, window_bounds = array<i64: 64, 128>}]} {
    %c0 = arith.constant 0 : index
    %c0_0 = arith.constant 0 : index
    %0 = vector.load %arg1[%c0, %c0_0] : memref<64x64xbf16, #tpu.memory_space<vmem>>, vector<64x64xbf16>
    %c0_1 = arith.constant 0 : index
    %c0_2 = arith.constant 0 : index
    %1 = vector.load %arg2[%c0_1, %c0_2] : memref<64x64xbf16, #tpu.memory_space<vmem>>, vector<64x64xbf16>
    %2 = arith.maximumf %0, %1 : vector<64x64xbf16>
    %c0_3 = arith.constant 0 : index
    %c0_4 = arith.constant 0 : index
    %3 = vector.load %arg3[%c0_3, %c0_4] : memref<64x64xbf16, #tpu.memory_space<vmem>>, vector<64x64xbf16>
    %4 = arith.maximumf %2, %3 : vector<64x64xbf16>
    %c0_5 = arith.constant 0 : index
    %c0_6 = arith.constant 0 : index
    %5 = vector.load %arg4[%c0_5, %c0_6] : memref<64x64xbf16, #tpu.memory_space<vmem>>, vector<64x64xbf16>
    %6 = arith.maximumf %4, %5 : vector<64x64xbf16>
    %c0_7 = arith.constant 0 : index
    %c0_8 = arith.constant 0 : index
    %7 = vector.load %arg5[%c0_7, %c0_8] : memref<64x64xbf16, #tpu.memory_space<vmem>>, vector<64x64xbf16>
    %8 = arith.maximumf %6, %7 : vector<64x64xbf16>
    %c0_9 = arith.constant 0 : index
    %c0_10 = arith.constant 0 : index
    %9 = vector.load %arg6[%c0_9, %c0_10] : memref<64x64xbf16, #tpu.memory_space<vmem>>, vector<64x64xbf16>
    %10 = arith.maximumf %8, %9 : vector<64x64xbf16>
    %c0_11 = arith.constant 0 : index
    %c0_12 = arith.constant 0 : index
    %11 = vector.load %arg7[%c0_11, %c0_12] : memref<64x64xbf16, #tpu.memory_space<vmem>>, vector<64x64xbf16>
    %12 = arith.maximumf %10, %11 : vector<64x64xbf16>
    %c0_13 = arith.constant 0 : index
    %c0_14 = arith.constant 0 : index
    %13 = vector.load %arg8[%c0_13, %c0_14] : memref<64x64xbf16, #tpu.memory_space<vmem>>, vector<64x64xbf16>
    %14 = arith.maximumf %12, %13 : vector<64x64xbf16>
    %c0_15 = arith.constant 0 : index
    %c0_16 = arith.constant 0 : index
    %15 = vector.load %arg9[%c0_15, %c0_16] : memref<64x64xbf16, #tpu.memory_space<vmem>>, vector<64x64xbf16>
    %16 = arith.maximumf %14, %15 : vector<64x64xbf16>
    %c0_17 = arith.constant 0 : index
    %c0_18 = arith.constant 0 : index
    %17 = vector.load %arg12[%c0_17, %c0_18] : memref<64x64xbf16, #tpu.memory_space<vmem>>, vector<64x64xbf16>
    tpu.vector_store %arg12[%c0_17, %c0_18], %16 {strides = array<i32>} : memref<64x64xbf16, #tpu.memory_space<vmem>>, vector<64x64xbf16>,
    %c0_19 = arith.constant 0 : index
    %c0_20 = arith.constant 0 : index
    %18 = vector.load %arg10[%c0_19, %c0_20] : memref<64x128xbf16, #tpu.memory_space<vmem>>, vector<64x128xbf16>
    %cst = arith.constant dense<0.000000e+00> : vector<64x128xf32>
    %19 = tpu.matmul %16, %18, %cst {dimension_numbers = #tpu.dot_dimension_numbers<[1], [0], [0], [1], [0, 0, 1, 1], [], []>} : vector<64x64xbf16>, vector<64x128xbf16>, vector<64x128xf32> -> vector<64x128xf32>
    %c0_21 = arith.constant 0 : index
    %c0_22 = arith.constant 0 : index
    %20 = vector.load %arg11[%c0_21, %c0_22] : memref<1x128xf32, #tpu.memory_space<vmem>>, vector<1x128xf32>
    %21 = vector.broadcast %20 : vector<1x128xf32> to vector<64x128xf32>
    %22 = arith.addf %19, %21 : vector<64x128xf32>
    %cst_23 = arith.constant 0.000000e+00 : f32
    %23 = vector.broadcast %cst_23 : f32 to vector<64x128xf32>
    %24 = arith.maximumf %22, %23 : vector<64x128xf32>
    %25 = arith.truncf %24 : vector<64x128xf32> to vector<64x128xbf16>
    %c0_24 = arith.constant 0 : index
    %c0_25 = arith.constant 0 : index
    %26 = vector.load %arg13[%c0_24, %c0_25] : memref<64x128xbf16, #tpu.memory_space<vmem>>, vector<64x128xbf16>
    tpu.vector_store %arg13[%c0_24, %c0_25], %25 {strides = array<i32>} : memref<64x128xbf16, #tpu.memory_space<vmem>>, vector<64x128xbf16>,
    return
  }
  func.func @transform_0(%arg0: i32) -> (i32, i32) {
    %c0_i32 = arith.constant 0 : i32
    %c0_i32_0 = arith.constant 0 : i32
    return %arg0, %c0_i32 : i32, i32
  }
  func.func @transform_1(%arg0: i32) -> (i32, i32) {
    %c0_i32 = arith.constant 0 : i32
    %c0_i32_0 = arith.constant 0 : i32
    return %arg0, %c0_i32 : i32, i32
  }
  func.func @transform_2(%arg0: i32) -> (i32, i32) {
    %c0_i32 = arith.constant 0 : i32
    %c0_i32_0 = arith.constant 0 : i32
    return %arg0, %c0_i32 : i32, i32
  }
  func.func @transform_3(%arg0: i32) -> (i32, i32) {
    %c0_i32 = arith.constant 0 : i32
    %c0_i32_0 = arith.constant 0 : i32
    return %arg0, %c0_i32 : i32, i32
  }
  func.func @transform_4(%arg0: i32) -> (i32, i32) {
    %c0_i32 = arith.constant 0 : i32
    %c0_i32_0 = arith.constant 0 : i32
    return %arg0, %c0_i32 : i32, i32
  }
  func.func @transform_5(%arg0: i32) -> (i32, i32) {
    %c0_i32 = arith.constant 0 : i32
    %c0_i32_0 = arith.constant 0 : i32
    return %arg0, %c0_i32 : i32, i32
  }
  func.func @transform_6(%arg0: i32) -> (i32, i32) {
    %c0_i32 = arith.constant 0 : i32
    %c0_i32_0 = arith.constant 0 : i32
    return %arg0, %c0_i32 : i32, i32
  }
  func.func @transform_7(%arg0: i32) -> (i32, i32) {
    %c0_i32 = arith.constant 0 : i32
    %c0_i32_0 = arith.constant 0 : i32
    return %arg0, %c0_i32 : i32, i32
  }
  func.func @transform_8(%arg0: i32) -> (i32, i32) {
    %c0_i32 = arith.constant 0 : i32
    %c0_i32_0 = arith.constant 0 : i32
    return %arg0, %c0_i32 : i32, i32
  }
  func.func @transform_9(%arg0: i32) -> (i32, i32) {
    %c0_i32 = arith.constant 0 : i32
    %c0_i32_0 = arith.constant 0 : i32
    %c0_i32_1 = arith.constant 0 : i32
    return %c0_i32, %c0_i32_0 : i32, i32
  }
  func.func @transform_10(%arg0: i32) -> (i32, i32) {
    %c0_i32 = arith.constant 0 : i32
    %c0_i32_0 = arith.constant 0 : i32
    %c0_i32_1 = arith.constant 0 : i32
    return %c0_i32, %c0_i32_0 : i32, i32
  }
  func.func @transform_11(%arg0: i32) -> (i32, i32) {
    %c0_i32 = arith.constant 0 : i32
    %c0_i32_0 = arith.constant 0 : i32
    return %arg0, %c0_i32 : i32, i32
  }
  func.func @transform_12(%arg0: i32) -> (i32, i32) {
    %c0_i32 = arith.constant 0 : i32
    %c0_i32_0 = arith.constant 0 : i32
    return %arg0, %c0_i32 : i32, i32
  }
}

module attributes {stable_mosaic.version = 11 : i64} {
  func.func @tail_kernel(%arg0: i32, %arg1: memref<64x1152xbf16, #tpu.memory_space<vmem>>, %arg2: memref<64x64xbf16, #tpu.memory_space<vmem>>, %arg3: memref<1152x128xbf16, #tpu.memory_space<vmem>>, %arg4: memref<1x128xf32, #tpu.memory_space<vmem>>, %arg5: memref<128x256xbf16, #tpu.memory_space<vmem>>, %arg6: memref<1x256xf32, #tpu.memory_space<vmem>>, %arg7: memref<64x256xbf16, #tpu.memory_space<vmem>>, %arg8: memref<1x256xf32, #tpu.memory_space<vmem>>, %arg9: memref<64x256xbf16, #tpu.memory_space<vmem>>) attributes {dimension_semantics = [#tpu.dimension_semantics<parallel>], iteration_bounds = array<i64: 2>, scalar_prefetch = 0 : i64, scratch_operands = 0 : i64, tpu.core_type = #tpu.core_type<tc>, window_params = [{transform_indices = @transform_0, window_bounds = array<i64: 64, 1152>}, {transform_indices = @transform_1, window_bounds = array<i64: 64, 64>}, {pipeline_mode = #tpu.pipeline_mode<synchronous>, transform_indices = @transform_2, window_bounds = array<i64: 1152, 128>}, {pipeline_mode = #tpu.pipeline_mode<synchronous>, transform_indices = @transform_3, window_bounds = array<i64: 1, 128>}, {pipeline_mode = #tpu.pipeline_mode<synchronous>, transform_indices = @transform_4, window_bounds = array<i64: 128, 256>}, {pipeline_mode = #tpu.pipeline_mode<synchronous>, transform_indices = @transform_5, window_bounds = array<i64: 1, 256>}, {pipeline_mode = #tpu.pipeline_mode<synchronous>, transform_indices = @transform_6, window_bounds = array<i64: 64, 256>}, {pipeline_mode = #tpu.pipeline_mode<synchronous>, transform_indices = @transform_7, window_bounds = array<i64: 1, 256>}, {transform_indices = @transform_8, window_bounds = array<i64: 64, 256>}]} {
    %c0 = arith.constant 0 : index
    %c0_0 = arith.constant 0 : index
    %0 = vector.load %arg1[%c0, %c0_0] : memref<64x1152xbf16, #tpu.memory_space<vmem>>, vector<64x1152xbf16>
    %c0_1 = arith.constant 0 : index
    %c0_2 = arith.constant 0 : index
    %1 = vector.load %arg3[%c0_1, %c0_2] : memref<1152x128xbf16, #tpu.memory_space<vmem>>, vector<1152x128xbf16>
    %cst = arith.constant dense<0.000000e+00> : vector<64x128xf32>
    %2 = tpu.matmul %0, %1, %cst {dimension_numbers = #tpu.dot_dimension_numbers<[1], [0], [0], [1], [0, 0, 1, 1], [], []>} : vector<64x1152xbf16>, vector<1152x128xbf16>, vector<64x128xf32> -> vector<64x128xf32>
    %c0_3 = arith.constant 0 : index
    %c0_4 = arith.constant 0 : index
    %3 = vector.load %arg4[%c0_3, %c0_4] : memref<1x128xf32, #tpu.memory_space<vmem>>, vector<1x128xf32>
    %4 = vector.broadcast %3 : vector<1x128xf32> to vector<64x128xf32>
    %5 = arith.addf %2, %4 : vector<64x128xf32>
    %cst_5 = arith.constant 0.000000e+00 : f32
    %6 = vector.broadcast %cst_5 : f32 to vector<64x128xf32>
    %7 = arith.maximumf %5, %6 : vector<64x128xf32>
    %8 = arith.truncf %7 : vector<64x128xf32> to vector<64x128xbf16>
    %c0_6 = arith.constant 0 : index
    %c0_7 = arith.constant 0 : index
    %9 = vector.load %arg5[%c0_6, %c0_7] : memref<128x256xbf16, #tpu.memory_space<vmem>>, vector<128x256xbf16>
    %cst_8 = arith.constant dense<0.000000e+00> : vector<64x256xf32>
    %10 = tpu.matmul %8, %9, %cst_8 {dimension_numbers = #tpu.dot_dimension_numbers<[1], [0], [0], [1], [0, 0, 1, 1], [], []>} : vector<64x128xbf16>, vector<128x256xbf16>, vector<64x256xf32> -> vector<64x256xf32>
    %c0_9 = arith.constant 0 : index
    %c0_10 = arith.constant 0 : index
    %11 = vector.load %arg6[%c0_9, %c0_10] : memref<1x256xf32, #tpu.memory_space<vmem>>, vector<1x256xf32>
    %12 = vector.broadcast %11 : vector<1x256xf32> to vector<64x256xf32>
    %13 = arith.addf %10, %12 : vector<64x256xf32>
    %c0_11 = arith.constant 0 : index
    %c0_12 = arith.constant 0 : index
    %14 = vector.load %arg2[%c0_11, %c0_12] : memref<64x64xbf16, #tpu.memory_space<vmem>>, vector<64x64xbf16>
    %c0_13 = arith.constant 0 : index
    %c0_14 = arith.constant 0 : index
    %15 = vector.load %arg7[%c0_13, %c0_14] : memref<64x256xbf16, #tpu.memory_space<vmem>>, vector<64x256xbf16>
    %cst_15 = arith.constant dense<0.000000e+00> : vector<64x256xf32>
    %16 = tpu.matmul %14, %15, %cst_15 {dimension_numbers = #tpu.dot_dimension_numbers<[1], [0], [0], [1], [0, 0, 1, 1], [], []>} : vector<64x64xbf16>, vector<64x256xbf16>, vector<64x256xf32> -> vector<64x256xf32>
    %c0_16 = arith.constant 0 : index
    %c0_17 = arith.constant 0 : index
    %17 = vector.load %arg8[%c0_16, %c0_17] : memref<1x256xf32, #tpu.memory_space<vmem>>, vector<1x256xf32>
    %18 = vector.broadcast %17 : vector<1x256xf32> to vector<64x256xf32>
    %19 = arith.addf %16, %18 : vector<64x256xf32>
    %20 = arith.addf %13, %19 : vector<64x256xf32>
    %cst_18 = arith.constant 0.000000e+00 : f32
    %21 = vector.broadcast %cst_18 : f32 to vector<64x256xf32>
    %22 = arith.maximumf %20, %21 : vector<64x256xf32>
    %23 = arith.truncf %22 : vector<64x256xf32> to vector<64x256xbf16>
    %c0_19 = arith.constant 0 : index
    %c0_20 = arith.constant 0 : index
    %24 = vector.load %arg9[%c0_19, %c0_20] : memref<64x256xbf16, #tpu.memory_space<vmem>>, vector<64x256xbf16>
    tpu.vector_store %arg9[%c0_19, %c0_20], %23 {strides = array<i32>} : memref<64x256xbf16, #tpu.memory_space<vmem>>, vector<64x256xbf16>,
    return
  }
  func.func @transform_0(%arg0: i32) -> (i32, i32) {
    %c0_i32 = arith.constant 0 : i32
    %c0_i32_0 = arith.constant 0 : i32
    return %arg0, %c0_i32 : i32, i32
  }
  func.func @transform_1(%arg0: i32) -> (i32, i32) {
    %c0_i32 = arith.constant 0 : i32
    %c0_i32_0 = arith.constant 0 : i32
    return %arg0, %c0_i32 : i32, i32
  }
  func.func @transform_2(%arg0: i32) -> (i32, i32) {
    %c0_i32 = arith.constant 0 : i32
    %c0_i32_0 = arith.constant 0 : i32
    %c0_i32_1 = arith.constant 0 : i32
    return %c0_i32, %c0_i32_0 : i32, i32
  }
  func.func @transform_3(%arg0: i32) -> (i32, i32) {
    %c0_i32 = arith.constant 0 : i32
    %c0_i32_0 = arith.constant 0 : i32
    %c0_i32_1 = arith.constant 0 : i32
    return %c0_i32, %c0_i32_0 : i32, i32
  }
  func.func @transform_4(%arg0: i32) -> (i32, i32) {
    %c0_i32 = arith.constant 0 : i32
    %c0_i32_0 = arith.constant 0 : i32
    %c0_i32_1 = arith.constant 0 : i32
    return %c0_i32, %c0_i32_0 : i32, i32
  }
  func.func @transform_5(%arg0: i32) -> (i32, i32) {
    %c0_i32 = arith.constant 0 : i32
    %c0_i32_0 = arith.constant 0 : i32
    %c0_i32_1 = arith.constant 0 : i32
    return %c0_i32, %c0_i32_0 : i32, i32
  }
  func.func @transform_6(%arg0: i32) -> (i32, i32) {
    %c0_i32 = arith.constant 0 : i32
    %c0_i32_0 = arith.constant 0 : i32
    %c0_i32_1 = arith.constant 0 : i32
    return %c0_i32, %c0_i32_0 : i32, i32
  }
  func.func @transform_7(%arg0: i32) -> (i32, i32) {
    %c0_i32 = arith.constant 0 : i32
    %c0_i32_0 = arith.constant 0 : i32
    %c0_i32_1 = arith.constant 0 : i32
    return %c0_i32, %c0_i32_0 : i32, i32
  }
  func.func @transform_8(%arg0: i32) -> (i32, i32) {
    %c0_i32 = arith.constant 0 : i32
    %c0_i32_0 = arith.constant 0 : i32
    return %arg0, %c0_i32 : i32, i32
  }
}

module attributes {stable_mosaic.version = 11 : i64} {
  func.func @head_kernel(%arg0: i32, %arg1: memref<2x64x256xbf16, #tpu.memory_space<vmem>>, %arg2: memref<256x4xf32, #tpu.memory_space<vmem>>, %arg3: memref<1x4xf32, #tpu.memory_space<vmem>>, %arg4: memref<2x4xf32, #tpu.memory_space<vmem>>, %arg5: memref<2x1xi32, #tpu.memory_space<vmem>>, %arg6: memref<2x256xf32, #tpu.memory_space<vmem>>) attributes {dimension_semantics = [#tpu.dimension_semantics<arbitrary>], iteration_bounds = array<i64: 1>, scalar_prefetch = 0 : i64, scratch_operands = 1 : i64, tpu.core_type = #tpu.core_type<tc>, window_params = [{transform_indices = @transform_0, window_bounds = array<i64: 2, 64, 256>}, {pipeline_mode = #tpu.pipeline_mode<synchronous>, transform_indices = @transform_1, window_bounds = array<i64: 256, 4>}, {pipeline_mode = #tpu.pipeline_mode<synchronous>, transform_indices = @transform_2, window_bounds = array<i64: 1, 4>}, {pipeline_mode = #tpu.pipeline_mode<synchronous>, transform_indices = @transform_3, window_bounds = array<i64: 2, 4>}, {pipeline_mode = #tpu.pipeline_mode<synchronous>, transform_indices = @transform_4, window_bounds = array<i64: 2, 1>}]} {
    %c0_i32 = arith.constant 0 : i32
    %0 = arith.cmpi eq, %arg0, %c0_i32 : i32
    %1 = arith.extui %0 : i1 to i32
    %c0_i32_0 = arith.constant 0 : i32
    %2 = arith.cmpi ne, %1, %c0_i32_0 : i32
    scf.if %2 {
      %cst_9 = arith.constant 0.000000e+00 : f32
      %12 = vector.broadcast %cst_9 : f32 to vector<2x256xf32>
      %c0_10 = arith.constant 0 : index
      %c0_11 = arith.constant 0 : index
      %13 = vector.load %arg6[%c0_10, %c0_11] : memref<2x256xf32, #tpu.memory_space<vmem>>, vector<2x256xf32>
      tpu.vector_store %arg6[%c0_10, %c0_11], %12 {strides = array<i32>} : memref<2x256xf32, #tpu.memory_space<vmem>>, vector<2x256xf32>,
    } else {
    }
    %c0 = arith.constant 0 : index
    %c0_1 = arith.constant 0 : index
    %3 = vector.load %arg6[%c0, %c0_1] : memref<2x256xf32, #tpu.memory_space<vmem>>, vector<2x256xf32>
    %c0_2 = arith.constant 0 : index
    %c0_3 = arith.constant 0 : index
    %c0_4 = arith.constant 0 : index
    %4 = vector.load %arg1[%c0_2, %c0_3, %c0_4] : memref<2x64x256xbf16, #tpu.memory_space<vmem>>, vector<2x64x256xbf16>
    %5 = arith.extf %4 : vector<2x64x256xbf16> to vector<2x64x256xf32>
    %cst = arith.constant dense<0.000000e+00> : vector<2x256xf32>
    %6 = vector.multi_reduction <add>, %5, %cst [1] : vector<2x64x256xf32> to vector<2x256xf32>
    %7 = arith.addf %3, %6 : vector<2x256xf32>
    %c0_5 = arith.constant 0 : index
    %c0_6 = arith.constant 0 : index
    %8 = vector.load %arg6[%c0_5, %c0_6] : memref<2x256xf32, #tpu.memory_space<vmem>>, vector<2x256xf32>
    tpu.vector_store %arg6[%c0_5, %c0_6], %7 {strides = array<i32>} : memref<2x256xf32, #tpu.memory_space<vmem>>, vector<2x256xf32>,
    %c0_i32_7 = arith.constant 0 : i32
    %9 = arith.cmpi eq, %arg0, %c0_i32_7 : i32
    %10 = arith.extui %9 : i1 to i32
    %c0_i32_8 = arith.constant 0 : i32
    %11 = arith.cmpi ne, %10, %c0_i32_8 : i32
    scf.if %11 {
      %c0_9 = arith.constant 0 : index
      %c0_10 = arith.constant 0 : index
      %12 = vector.load %arg6[%c0_9, %c0_10] : memref<2x256xf32, #tpu.memory_space<vmem>>, vector<2x256xf32>
      %cst_11 = arith.constant 1.562500e-02 : f32
      %13 = vector.broadcast %cst_11 : f32 to vector<2x256xf32>
      %14 = arith.mulf %12, %13 : vector<2x256xf32>
      %c0_12 = arith.constant 0 : index
      %c0_13 = arith.constant 0 : index
      %15 = vector.load %arg2[%c0_12, %c0_13] : memref<256x4xf32, #tpu.memory_space<vmem>>, vector<256x4xf32>
      %cst_14 = arith.constant dense<0.000000e+00> : vector<2x4xf32>
      %16 = tpu.matmul %14, %15, %cst_14 {dimension_numbers = #tpu.dot_dimension_numbers<[1], [0], [0], [1], [0, 0, 1, 1], [], []>} : vector<2x256xf32>, vector<256x4xf32>, vector<2x4xf32> -> vector<2x4xf32>
      %c0_15 = arith.constant 0 : index
      %c0_16 = arith.constant 0 : index
      %17 = vector.load %arg3[%c0_15, %c0_16] : memref<1x4xf32, #tpu.memory_space<vmem>>, vector<1x4xf32>
      %18 = vector.broadcast %17 : vector<1x4xf32> to vector<2x4xf32>
      %19 = arith.addf %16, %18 : vector<2x4xf32>
      %cst_17 = arith.constant dense<0xFF800000> : vector<2xf32>
      %20 = vector.multi_reduction <maximumf>, %19, %cst_17 [1] : vector<2x4xf32> to vector<2xf32>
      %21 = vector.shape_cast %20 : vector<2xf32> to vector<2x1xf32>
      %22 = vector.broadcast %21 : vector<2x1xf32> to vector<2x4xf32>
      %23 = arith.subf %19, %22 : vector<2x4xf32>
      %24 = math.exp %23 : vector<2x4xf32>
      %cst_18 = arith.constant dense<0.000000e+00> : vector<2xf32>
      %25 = vector.multi_reduction <add>, %24, %cst_18 [1] : vector<2x4xf32> to vector<2xf32>
      %26 = vector.shape_cast %25 : vector<2xf32> to vector<2x1xf32>
      %27 = vector.broadcast %26 : vector<2x1xf32> to vector<2x4xf32>
      %28 = arith.divf %24, %27 : vector<2x4xf32>
      %c0_19 = arith.constant 0 : index
      %c0_20 = arith.constant 0 : index
      %29 = vector.load %arg4[%c0_19, %c0_20] : memref<2x4xf32, #tpu.memory_space<vmem>>, vector<2x4xf32>
      tpu.vector_store %arg4[%c0_19, %c0_20], %28 {strides = array<i32>} : memref<2x4xf32, #tpu.memory_space<vmem>>, vector<2x4xf32>,
      %30 = tpu.iota {dimensions = array<i32: 1>} : vector<2x4xi32>
      %31 = vector.broadcast %21 : vector<2x1xf32> to vector<2x4xf32>
      %32 = arith.cmpf oge, %19, %31 : vector<2x4xf32>
      %c4_i32 = arith.constant 4 : i32
      %33 = vector.broadcast %c4_i32 : i32 to vector<2x4xi32>
      %34 = arith.select %32, %30, %33 : vector<2x4xi1>, vector<2x4xi32>
      %cst_21 = arith.constant dense<2147483647> : vector<2xi32>
      %35 = vector.multi_reduction <minsi>, %34, %cst_21 [1] : vector<2x4xi32> to vector<2xi32>
      %c90_i32 = arith.constant 90 : i32
      %36 = vector.broadcast %c90_i32 : i32 to vector<2xi32>
      %37 = arith.muli %36, %35 : vector<2xi32>
      %38 = vector.shape_cast %37 : vector<2xi32> to vector<2x1xi32>
      %c0_22 = arith.constant 0 : index
      %c0_23 = arith.constant 0 : index
      %39 = vector.load %arg5[%c0_22, %c0_23] : memref<2x1xi32, #tpu.memory_space<vmem>>, vector<2x1xi32>
      tpu.vector_store %arg5[%c0_22, %c0_23], %38 {strides = array<i32>} : memref<2x1xi32, #tpu.memory_space<vmem>>, vector<2x1xi32>,
    } else {
    }
    return
  }
  func.func @transform_0(%arg0: i32) -> (i32, i32, i32) {
    %c0_i32 = arith.constant 0 : i32
    %c0_i32_0 = arith.constant 0 : i32
    %c0_i32_1 = arith.constant 0 : i32
    return %c0_i32, %arg0, %c0_i32_0 : i32, i32, i32
  }
  func.func @transform_1(%arg0: i32) -> (i32, i32) {
    %c0_i32 = arith.constant 0 : i32
    %c0_i32_0 = arith.constant 0 : i32
    %c0_i32_1 = arith.constant 0 : i32
    return %c0_i32, %c0_i32_0 : i32, i32
  }
  func.func @transform_2(%arg0: i32) -> (i32, i32) {
    %c0_i32 = arith.constant 0 : i32
    %c0_i32_0 = arith.constant 0 : i32
    %c0_i32_1 = arith.constant 0 : i32
    return %c0_i32, %c0_i32_0 : i32, i32
  }
  func.func @transform_3(%arg0: i32) -> (i32, i32) {
    %c0_i32 = arith.constant 0 : i32
    %c0_i32_0 = arith.constant 0 : i32
    %c0_i32_1 = arith.constant 0 : i32
    return %c0_i32, %c0_i32_0 : i32, i32
  }
  func.func @transform_4(%arg0: i32) -> (i32, i32) {
    %c0_i32 = arith.constant 0 : i32
    %c0_i32_0 = arith.constant 0 : i32
    %c0_i32_1 = arith.constant 0 : i32
    return %c0_i32, %c0_i32_0 : i32, i32
  }
}

</mosaic_0001>

<llo_original>
// kernel: orientation_predictor_forward.4
$region0: #{orientation_predictor_forward.4}
  #allocation0 [shape = 'u32[]', space=smem, size = 0x4, offset = 0x4, fixed_abs, tag = 'smem constant byte address 0x4 - core index']
  #allocation1 [shape = 'u32[144,128]{1,0:T(1,128)}', space=vmem, size = 0x12000, scoped, tag = 'internal scratch']
  %s0 = inlined_call_operand.vmem [shape: bf16[512,147], index: 0, kind: input, shape index: {}]
  %s1 = inlined_call_operand.vmem [shape: bf16[147,64], index: 1, kind: input, shape index: {}]
  %s2 = inlined_call_operand.vmem [shape: f32[1,64], index: 2, kind: input, shape index: {}]
  %s3 = inlined_call_operand.vmem [shape: bf16[512,64], index: 3, kind: output, shape index: {}]
  %s4 = sld [smem:[#allocation0]]
  $region45: #{orientation_predictor_forward.4} parent=0
    _
  %s6 = ssub.s32 1, %s4
  %s7 = scalar_select 0, %s6, %s4
  loop: start=0, step=1, limit=4
  $region2: #{orientation_predictor_forward.4} parent=0 // loop_pre_header
    _
  $region3: #{orientation_predictor_forward.4} parent=0 // loop_header
    %s9 = sphi 0, %s13
    %p10 = scmp.ge.s32.totalorder %s9, 4
    %s19 = sphi 0, %s21
    %s22 = sphi 0, %s19
    %s23 = sphi 0, %s22
    %s39 = sphi 0, %s23
    %s43 = sphi 0, %s43
    %s45 = sphi 0, %s43
    %s46 = sphi 0, %s45
    %s60 = sphi 0, %s46
    %s64 = sphi 0, %s64
    %s66 = sphi 0, %s64
    %s67 = sphi 0, %s66
    %s81 = sphi 0, %s67
    %s87 = sphi 0, %s89
    %s90 = sphi 0, %s87
    %s91 = sphi 0, %s90
    %s107 = sphi 0, %s91
  $region4: #{orientation_predictor_forward.4} parent=0 // loop_header_branch
    %12 = sbr.rel (%p10) target = $region8
  $region5: #{orientation_predictor_forward.4} parent=0 // loop_body
    %s14 = ssub.s32 %s9, 1
    %s15 = ssub.s32 %s9, 2
    %s16 = sadd.s32 %s9, 1
    %s17 = ssub.s32 %s9, %s16
    %p18 = scmp.eq.s32.totalorder %s17, 0
    %s20 = sadd.s32 %s19, 1
    %s21 = scalar_select %p18, %s19, %s20
    %p24 = pneg %p18
    %p25 = scmp.eq.s32.totalorder %s9, 1
    %p26 = por %p24, %p25
    %p27 = scmp.ne.s32.totalorder %s19, %s22
    %p28 = scmp.eq.s32.totalorder %s9, 0
    %p29 = por %p27, %p28
    %p30 = scmp.ne.s32.totalorder %s19, %s22
    %p31 = scmp.eq.s32.totalorder %s14, 1
    %p32 = por %p30, %p31
    %p33 = scmp.ne.s32.totalorder %s22, %s23
    %p34 = scmp.eq.s32.totalorder %s14, 0
    %p35 = por %p33, %p34
    %p36 = scmp.ne.s32.totalorder %s22, %s23
    %p37 = scmp.eq.s32.totalorder %s15, 1
    %p38 = por %p36, %p37
    %p40 = scmp.ne.s32.totalorder %s23, %s39
    %p41 = scmp.eq.s32.totalorder %s15, 0
    %p42 = por %p40, %p41
    %s44 = sadd.s32 %s43, 1
    %p47 = scmp.eq.s32.totalorder %s9, 1
    %p48 = scmp.ne.s32.totalorder %s43, %s45
    %p49 = scmp.eq.s32.totalorder %s9, 0
    %p50 = por %p48, %p49
    %p51 = scmp.ne.s32.totalorder %s43, %s45
    %p52 = scmp.eq.s32.totalorder %s14, 1
    %p53 = por %p51, %p52
    %p54 = scmp.ne.s32.totalorder %s45, %s46
    %p55 = scmp.eq.s32.totalorder %s14, 0
    %p56 = por %p54, %p55
    %p57 = scmp.ne.s32.totalorder %s45, %s46
    %p58 = scmp.eq.s32.totalorder %s15, 1
    %p59 = por %p57, %p58
    %p61 = scmp.ne.s32.totalorder %s46, %s60
    %p62 = scmp.eq.s32.totalorder %s15, 0
    %p63 = por %p61, %p62
    %s65 = sadd.s32 %s64, 1
    %p68 = scmp.eq.s32.totalorder %s9, 1
    %p69 = scmp.ne.s32.totalorder %s64, %s66
    %p70 = scmp.eq.s32.totalorder %s9, 0
    %p71 = por %p69, %p70
    %p72 = scmp.ne.s32.totalorder %s64, %s66
    %p73 = scmp.eq.s32.totalorder %s14, 1
    %p74 = por %p72, %p73
    %p75 = scmp.ne.s32.totalorder %s66, %s67
    %p76 = scmp.eq.s32.totalorder %s14, 0
    %p77 = por %p75, %p76
    %p78 = scmp.ne.s32.totalorder %s66, %s67
    %p79 = scmp.eq.s32.totalorder %s15, 1
    %p80 = por %p78, %p79
    %p82 = scmp.ne.s32.totalorder %s67, %s81
    %p83 = scmp.eq.s32.totalorder %s15, 0
    %p84 = por %p82, %p83
    %s85 = ssub.s32 %s9, %s16
    %p86 = scmp.eq.s32.totalorder %s85, 0
    %s88 = sadd.s32 %s87, 1
    %s89 = scalar_select %p86, %s87, %s88
    %p92 = pneg %p86
    %p93 = scmp.eq.s32.totalorder %s9, 1
    %p94 = por %p92, %p93
    %p95 = scmp.ne.s32.totalorder %s87, %s90
    %p96 = scmp.eq.s32.totalorder %s9, 0
    %p97 = por %p95, %p96
    %p98 = scmp.ne.s32.totalorder %s87, %s90
    %p99 = scmp.eq.s32.totalorder %s14, 1
    %p100 = por %p98, %p99
    %p101 = scmp.ne.s32.totalorder %s90, %s91
    %p102 = scmp.eq.s32.totalorder %s14, 0
    %p103 = por %p101, %p102
    %p104 = scmp.ne.s32.totalorder %s90, %s91
    %p105 = scmp.eq.s32.totalorder %s15, 1
    %p106 = por %p104, %p105
    %p108 = scmp.ne.s32.totalorder %s91, %s107
    %p109 = scmp.eq.s32.totalorder %s15, 0
    %p110 = por %p108, %p109
    %p111 = scmp.le.s32.totalorder 1, %s9
    %p112 = scmp.lt.s32.totalorder %s9, 3
    %p113 = pnand %p111, %p112
    %p114 = pneg %p113
    // Predicated region
    $region9: #{orientation_predictor_forward.4} parent=5 // pred_check
      _
    $region10: #{orientation_predictor_forward.4} parent=5 // pred_check_branch
      %116 = sbr.rel (%p113) target = $region12
    $region11: #{orientation_predictor_forward.4} parent=5 // pred_region
      %s117 = ssub.s32 %s9, 1
      // Predicated region
      $region13: #{orientation_predictor_forward.4} parent=11 // pred_check
        %p118 = pneg %p56
      $region14: #{orientation_predictor_forward.4} parent=11 // pred_check_branch
        %120 = sbr.rel (%p118) target = $region16
      $region15: #{orientation_predictor_forward.4} parent=11 // pred_region
        _
      $region16: #{orientation_predictor_forward.4} parent=11 // pred_fallthru
        _
      // Predicated region
      $region17: #{orientation_predictor_forward.4} parent=11 // pred_check
        %p121 = pneg %p77
      $region18: #{orientation_predictor_forward.4} parent=11 // pred_check_branch
        %123 = sbr.rel (%p121) target = $region20
      $region19: #{orientation_predictor_forward.4} parent=11 // pred_region
        _
      $region20: #{orientation_predictor_forward.4} parent=11 // pred_fallthru
        _
    $region12: #{orientation_predictor_forward.4} parent=5 // pred_fallthru
      _
    %p124 = scmp.lt.s32.totalorder %s9, 2
    // Predicated region
    $region21: #{orientation_predictor_forward.4} parent=5 // pred_check
      %p125 = pneg %p124
    $region22: #{orientation_predictor_forward.4} parent=5 // pred_check_branch
      %127 = sbr.rel (%p125) target = $region24
    $region23: #{orientation_predictor_forward.4} parent=5 // pred_region
      // Predicated region
      $region25: #{orientation_predictor_forward.4} parent=23 // pred_check
        %p128 = pneg %p29
      $region26: #{orientation_predictor_forward.4} parent=23 // pred_check_branch
        %130 = sbr.rel (%p128) target = $region28
      $region27: #{orientation_predictor_forward.4} parent=23 // pred_region
        %s131 = smul.u32 32, %s9
        %p132 = scmp.lt.s32.totalorder %s131, 63
        %s133 = scalar_select %p132, %s131, 63
        %s134 = smul.addr %s133, 2
        %s135 = smul.addr %s134, 4
        %s136 = scalar_lea.vmem %s0, %s135
        %s137 = smul.u32 32, %s9
      $region28: #{orientation_predictor_forward.4} parent=23 // pred_fallthru
        _
    $region24: #{orientation_predictor_forward.4} parent=5 // pred_fallthru
      _
    %p138 = scmp.le.s32.totalorder 1, %s9
    %p139 = scmp.lt.s32.totalorder %s9, 3
    %p140 = pnand %p138, %p139
    %p141 = pneg %p140
    // Predicated region
    $region29: #{orientation_predictor_forward.4} parent=5 // pred_check
      _
    $region30: #{orientation_predictor_forward.4} parent=5 // pred_check_branch
      %143 = sbr.rel (%p140) target = $region32
    $region31: #{orientation_predictor_forward.4} parent=5 // pred_region
      %s144 = ssub.s32 %s9, 1
      %s145 = smul.u32 32, %s14
      %p146 = scmp.lt.s32.totalorder %s145, 63
      %s147 = scalar_select %p146, %s145, 63
      %s148 = smul.addr %s147, 2
      %s149 = smul.addr %s148, 4
      %s150 = scalar_lea.vmem %s0, %s149
      %p151 = pneg %p35
      %p152 = pneg %p32
      %p153 = pneg %p56
      %p154 = pneg %p53
      %p155 = pneg %p77
      %p156 = pneg %p74
      %p157 = pneg %p103
      %p158 = pneg %p100
      %s159 = smul.u32 32, %s14
      %p160 = scmp.lt.s32.totalorder %s159, 63
      %s161 = scalar_select %p160, %s159, 63
      %s162 = smul.addr %s161, 4
      %s163 = scalar_lea.vmem %s3, %s162
      %s164 = smul.u32 32, %s14
      %p165 = scmp.lt.s32.totalorder %s164, 63
      %s166 = scalar_select %p165, %s164, 63
      %s167 = smul.addr %s166, 2
      %s168 = smul.addr %s167, 4
      %s169 = scalar_lea.vmem %s0, %s168
      %s170 = smul.u32 32, %s14
      %s171 = smul.u32 32, %s14
      %p172 = scmp.lt.s32.totalorder %s171, 63
      %s173 = scalar_select %p172, %s171, 63
      %s174 = smul.addr %s173, 4
      %s175 = scalar_lea.vmem %s3, %s174
      %s176 = smul.u32 32, %s14
      %v178 = vld [vmem:[%s169] sm:$0xff]
      %v179 = vld [vmem:[%s169 + $0x8] sm:$0xff]
      %v180 = vld [vmem:[%s169 + $0x10] sm:$0xff]
      %v181 = vld [vmem:[%s169 + $0x18] sm:$0xff]
      %v182 = vld [vmem:[%s169 + $0x20] sm:$0xff]
      %v183 = vld [vmem:[%s169 + $0x28] sm:$0xff]
      %v184 = vld [vmem:[%s169 + $0x30] sm:$0xff]
      %v185 = vld [vmem:[%s169 + $0x38] sm:$0xff]
      %v186 = vld [vmem:[%s169 + $0x40] sm:$0xff]
      %v187 = vld [vmem:[%s169 + $0x48] sm:$0xff]
      %v188 = vld [vmem:[%s169 + $0x50] sm:$0xff]
      %v189 = vld [vmem:[%s169 + $0x58] sm:$0xff]
      %v190 = vld [vmem:[%s169 + $0x60] sm:$0xff]
      %v191 = vld [vmem:[%s169 + $0x68] sm:$0xff]
      %v192 = vld [vmem:[%s169 + $0x70] sm:$0xff]
      %v193 = vld [vmem:[%s169 + $0x78] sm:$0xff]
      %v194 = vld [vmem:[%s169 + $0x80] sm:$0xff]
      %v195 = vld [vmem:[%s169 + $0x88] sm:$0xff]
      %v196 = vld [vmem:[%s169 + $0x90] sm:$0xff]
      %v197 = vld [vmem:[%s169 + $0x98] sm:$0xff]
      %v198 = vld [vmem:[%s169 + $0xa0] sm:$0xff]
      %v199 = vld [vmem:[%s169 + $0xa8] sm:$0xff]
      %v200 = vld [vmem:[%s169 + $0xb0] sm:$0xff]
      %v201 = vld [vmem:[%s169 + $0xb8] sm:$0xff]
      %v202 = vld [vmem:[%s169 + $0xc0] sm:$0xff]
      %v203 = vld [vmem:[%s169 + $0xc8] sm:$0xff]
      %v204 = vld [vmem:[%s169 + $0xd0] sm:$0xff]
      %v205 = vld [vmem:[%s169 + $0xd8] sm:$0xff]
      %v206 = vld [vmem:[%s169 + $0xe0] sm:$0xff]
      %v207 = vld [vmem:[%s169 + $0xe8] sm:$0xff]
      %v208 = vld [vmem:[%s169 + $0xf0] sm:$0xff]
      %v209 = vld [vmem:[%s169 + $0xf8] sm:$0xff]
      %v210 = vld [vmem:[%s1] sm:$0xf]
      %v211 = vld [vmem:[%s1 + $0x4] sm:$0xf]
      %v212 = vld [vmem:[%s1 + $0x8] sm:$0xf]
      %v213 = vld [vmem:[%s1 + $0xc] sm:$0xf]
      %v214 = vld [vmem:[%s1 + $0x10] sm:$0xf]
      %v215 = vld [vmem:[%s1 + $0x14] sm:$0xf]
      %v216 = vld [vmem:[%s1 + $0x18] sm:$0xf]
      %v217 = vld [vmem:[%s1 + $0x1c] sm:$0xf]
      %v218 = vld [vmem:[%s1 + $0x20] sm:$0xf]
      %v219 = vld [vmem:[%s1 + $0x24] sm:$0xf]
      %v220 = vld [vmem:[%s1 + $0x28] sm:$0xf]
      %v221 = vld [vmem:[%s1 + $0x2c] sm:$0xf]
      %v222 = vld [vmem:[%s1 + $0x30] sm:$0xf]
      %v223 = vld [vmem:[%s1 + $0x34] sm:$0xf]
      %v224 = vld [vmem:[%s1 + $0x38] sm:$0xf]
      %v225 = vld [vmem:[%s1 + $0x3c] sm:$0xf]
      %v226 = vld [vmem:[%s1 + $0x40] sm:$0xf]
      %v227 = vld [vmem:[%s1 + $0x44] sm:$0xf]
      %v228 = vld [vmem:[%s1 + $0x48] sm:$0x3]
      %v229 = vld [vmem:[%s2] sm:$0x1]
      %v231 = vlaneseq
      %v232 = vshrl.u32 %v231, 7
      %v233 = vsub.s32 0, %v232
      %v234 = vrot.slane %v229, %v233
      %v268 = vunpack.c.l.b16 %v178
      %v269 = vunpack.c.h.b16 %v178
      %v270 = vunpack.c.l.b16 %v179
      %v271 = vunpack.c.h.b16 %v179
      %v272 = vunpack.c.l.b16 %v180
      %v273 = vunpack.c.h.b16 %v180
      %v274 = vunpack.c.l.b16 %v181
      %v275 = vunpack.c.h.b16 %v181
      %v276 = vunpack.c.l.b16 %v182
      %v277 = vunpack.c.h.b16 %v182
      %v278 = vunpack.c.l.b16 %v183
      %v279 = vunpack.c.h.b16 %v183
      %v280 = vunpack.c.l.b16 %v184
      %v281 = vunpack.c.h.b16 %v184
      %v282 = vunpack.c.l.b16 %v185
      %v283 = vunpack.c.h.b16 %v185
      %v284 = vunpack.c.l.b16 %v186
      %v285 = vunpack.c.h.b16 %v186
      %v286 = vunpack.c.l.b16 %v187
      %v287 = vunpack.c.h.b16 %v187
      %v288 = vunpack.c.l.b16 %v188
      %v289 = vunpack.c.h.b16 %v188
      %v290 = vunpack.c.l.b16 %v189
      %v291 = vunpack.c.h.b16 %v189
      %v292 = vunpack.c.l.b16 %v190
      %v293 = vunpack.c.h.b16 %v190
      %v294 = vunpack.c.l.b16 %v191
      %v295 = vunpack.c.h.b16 %v191
      %v296 = vunpack.c.l.b16 %v192
      %v297 = vunpack.c.h.b16 %v192
      %v298 = vunpack.c.l.b16 %v193
      %v299 = vunpack.c.h.b16 %v193
      %v300 = vunpack.c.l.b16 %v194
      %v301 = vunpack.c.h.b16 %v194
      %v302 = vunpack.c.l.b16 %v195
      %v303 = vunpack.c.h.b16 %v195
      %v304 = vunpack.c.l.b16 %v196
      %v305 = vunpack.c.h.b16 %v196
      %v306 = vunpack.c.l.b16 %v197
      %v307 = vunpack.c.h.b16 %v197
      %v308 = vunpack.c.l.b16 %v198
      %v309 = vunpack.c.h.b16 %v198
      %v310 = vunpack.c.l.b16 %v199
      %v311 = vunpack.c.h.b16 %v199
      %v312 = vunpack.c.l.b16 %v200
      %v313 = vunpack.c.h.b16 %v200
      %v314 = vunpack.c.l.b16 %v201
      %v315 = vunpack.c.h.b16 %v201
      %v316 = vunpack.c.l.b16 %v202
      %v317 = vunpack.c.h.b16 %v202
      %v318 = vunpack.c.l.b16 %v203
      %v319 = vunpack.c.h.b16 %v203
      %v320 = vunpack.c.l.b16 %v204
      %v321 = vunpack.c.h.b16 %v204
      %v322 = vunpack.c.l.b16 %v205
      %v323 = vunpack.c.h.b16 %v205
      %v324 = vunpack.c.l.b16 %v206
      %v325 = vunpack.c.h.b16 %v206
      %v326 = vunpack.c.l.b16 %v207
      %v327 = vunpack.c.h.b16 %v207
      %v328 = vunpack.c.l.b16 %v208
      %v329 = vunpack.c.h.b16 %v208
      %v330 = vunpack.c.l.b16 %v209
      %v331 = vunpack.c.h.b16 %v209
      %v332 = vpack.c.b16 %v270, %v268
      %v333 = vpack.c.b16 %v271, %v269
      %v334 = vpack.c.b16 %v274, %v272
      %v335 = vpack.c.b16 %v275, %v273
      %v336 = vpack.c.b16 %v278, %v276
      %v337 = vpack.c.b16 %v279, %v277
      %v338 = vpack.c.b16 %v282, %v280
      %v339 = vpack.c.b16 %v283, %v281
      %v340 = vpack.c.b16 %v286, %v284
      %v341 = vpack.c.b16 %v287, %v285
      %v342 = vpack.c.b16 %v290, %v288
      %v343 = vpack.c.b16 %v291, %v289
      %v344 = vpack.c.b16 %v294, %v292
      %v345 = vpack.c.b16 %v295, %v293
      %v346 = vpack.c.b16 %v298, %v296
      %v347 = vpack.c.b16 %v299, %v297
      %v348 = vpack.c.b16 %v302, %v300
      %v349 = vpack.c.b16 %v303, %v301
      %v350 = vpack.c.b16 %v306, %v304
      %v351 = vpack.c.b16 %v307, %v305
      %v352 = vpack.c.b16 %v310, %v308
      %v353 = vpack.c.b16 %v311, %v309
      %v354 = vpack.c.b16 %v314, %v312
      %v355 = vpack.c.b16 %v315, %v313
      %v356 = vpack.c.b16 %v318, %v316
      %v357 = vpack.c.b16 %v319, %v317
      %v358 = vpack.c.b16 %v322, %v320
      %v359 = vpack.c.b16 %v323, %v321
      %v360 = vpack.c.b16 %v326, %v324
      %v361 = vpack.c.b16 %v327, %v325
      %v362 = vpack.c.b16 %v330, %v328
      %v363 = vpack.c.b16 %v331, %v329
      %v399 = vunpack.c.l.b16 %v210
      %v400 = vunpack.c.l.b16 %v211
      %v401 = vunpack.c.l.b16 %v212
      %v402 = vunpack.c.l.b16 %v213
      %v403 = vunpack.c.l.b16 %v214
      %v404 = vunpack.c.l.b16 %v215
      %v405 = vunpack.c.l.b16 %v216
      %v406 = vunpack.c.l.b16 %v217
      %v407 = vunpack.c.l.b16 %v218
      %v408 = vunpack.c.l.b16 %v219
      %v409 = vunpack.c.l.b16 %v220
      %v410 = vunpack.c.l.b16 %v221
      %v411 = vunpack.c.l.b16 %v222
      %v412 = vunpack.c.l.b16 %v223
      %v413 = vunpack.c.l.b16 %v224
      %v414 = vunpack.c.l.b16 %v225
      %v415 = vunpack.c.l.b16 %v226
      %v416 = vunpack.c.l.b16 %v227
      %v417 = vunpack.c.l.b16 %v228
      %v418 = vpack.c.b16 %v400, %v399
      %v419 = vpack.c.b16 %v402, %v401
      %v420 = vpack.c.b16 %v404, %v403
      %v421 = vpack.c.b16 %v406, %v405
      %v422 = vpack.c.b16 %v408, %v407
      %v423 = vpack.c.b16 %v410, %v409
      %v424 = vpack.c.b16 %v412, %v411
      %v425 = vpack.c.b16 %v414, %v413
      %v426 = vpack.c.b16 %v416, %v415
      %v427 = vpack.c.b16 %v417, %v417
      %vm437 = vcmask 154624
      %v439 = vsel %vm437, %v333, 0
      %v442 = vsel %vm437, %v335, 0
      %v445 = vsel %vm437, %v337, 0
      %v448 = vsel %vm437, %v339, 0
      %v451 = vsel %vm437, %v341, 0
      %v454 = vsel %vm437, %v343, 0
      %v457 = vsel %vm437, %v345, 0
      %v460 = vsel %vm437, %v347, 0
      %v463 = vsel %vm437, %v349, 0
      %v466 = vsel %vm437, %v351, 0
      %v469 = vsel %vm437, %v353, 0
      %v472 = vsel %vm437, %v355, 0
      %v475 = vsel %vm437, %v357, 0
      %v478 = vsel %vm437, %v359, 0
      %v481 = vsel %vm437, %v361, 0
      %v484 = vsel %vm437, %v363, 0
      %vm486 = vcmask 1040384
      %vm487 = vcmask 1041408
      %v488 = vsel %vm486, 4294967295, 65535
      %v489 = vsel %vm487, %v488, 0
      %v491 = vand.u32 %v427, %v489
      %493 = vmatprep.subr.bf16.mxu0 0
      %494 = vmatpush1.bf16.msra.mxu0 %v425
      %495 = vmatprep.subr.bf16.mxu0 0
      %496 = vmatpush1.bf16.msra.mxu0 %v424
      %497 = vmatprep.subr.bf16.mxu0 0
      %498 = vmatpush1.bf16.msra.mxu0 %v423
      %499 = vmatprep.subr.bf16.mxu0 0
      %500 = vmatpush1.bf16.msra.mxu0 %v422
      %501 = vmatprep.subr.bf16.mxu0 0
      %502 = vmatpush1.bf16.msra.mxu0 %v421
      %503 = vmatprep.subr.bf16.mxu0 0
      %504 = vmatpush1.bf16.msra.mxu0 %v420
      %505 = vmatprep.subr.bf16.mxu0 0
      %506 = vmatpush1.bf16.msra.mxu0 %v419
      %507 = vmatprep.subr.bf16.mxu0 0
      %508 = vmatpush1.bf16.msra.mxu0 %v418
      %509 = vmatprep.subr.bf16.mxu0 0
      %510 = vmatpush2.bf16.msra.mxu0 0
      %511 = vmatprep.subr.bf16.mxu0 0
      %512 = vmatpush2.bf16.msra.mxu0 0
      %513 = vmatprep.subr.bf16.mxu0 0
      %514 = vmatpush2.bf16.msra.mxu0 0
      %515 = vmatprep.subr.bf16.mxu0 0
      %516 = vmatpush2.bf16.msra.mxu0 0
      %517 = vmatprep.subr.bf16.mxu0 0
      %518 = vmatpush2.bf16.msra.mxu0 0
      %519 = vmatprep.subr.bf16.mxu0 0
      %520 = vmatpush2.bf16.msra.mxu0 0
      %521 = vmatprep.subr.bf16.mxu0 0
      %522 = vmatpush2.bf16.msra.mxu0 %v491
      %523 = vmatprep.subr.bf16.mxu0 0
      %524 = vmatpush2.bf16.msra.mxu0 %v426
      %525 = vmatprep.mubr.bf16.mxu0 %v439
      %526 = vmatmul.mubr.bf16.gmra.mxu0 %v332
      %v527 = vpop.f32.mrf.mxu0
      %v528 = vadd.f32 %v234, %v527
      %v529 = vpop.f32.mrf.mxu0
      %v530 = vpop.f32.mrf.mxu0
      %v531 = vadd.f32 %v234, %v530
      %v532 = vpop.f32.mrf.mxu0
      %533 = vmatprep.mubr.bf16.mxu0 %v442
      %534 = vmatmul.mubr.bf16.gmra.mxu0 %v334
      %v535 = vpop.f32.mrf.mxu0
      %v536 = vadd.f32 %v234, %v535
      %v537 = vpop.f32.mrf.mxu0
      %v538 = vpop.f32.mrf.mxu0
      %v539 = vadd.f32 %v234, %v538
      %v540 = vpop.f32.mrf.mxu0
      %541 = vmatprep.mubr.bf16.mxu0 %v445
      %542 = vmatmul.mubr.bf16.gmra.mxu0 %v336
      %v543 = vpop.f32.mrf.mxu0
      %v544 = vadd.f32 %v234, %v543
      %v545 = vpop.f32.mrf.mxu0
      %v546 = vpop.f32.mrf.mxu0
      %v547 = vadd.f32 %v234, %v546
      %v548 = vpop.f32.mrf.mxu0
      %549 = vmatprep.mubr.bf16.mxu0 %v448
      %550 = vmatmul.mubr.bf16.gmra.mxu0 %v338
      %v551 = vpop.f32.mrf.mxu0
      %v552 = vadd.f32 %v234, %v551
      %v553 = vpop.f32.mrf.mxu0
      %v554 = vpop.f32.mrf.mxu0
      %v555 = vadd.f32 %v234, %v554
      %v556 = vpop.f32.mrf.mxu0
      %557 = vmatprep.mubr.bf16.mxu0 %v451
      %558 = vmatmul.mubr.bf16.gmra.mxu0 %v340
      %v559 = vpop.f32.mrf.mxu0
      %v560 = vadd.f32 %v234, %v559
      %v561 = vpop.f32.mrf.mxu0
      %v562 = vpop.f32.mrf.mxu0
      %v563 = vadd.f32 %v234, %v562
      %v564 = vpop.f32.mrf.mxu0
      %565 = vmatprep.mubr.bf16.mxu0 %v454
      %566 = vmatmul.mubr.bf16.gmra.mxu0 %v342
      %v567 = vpop.f32.mrf.mxu0
      %v568 = vadd.f32 %v234, %v567
      %v569 = vpop.f32.mrf.mxu0
      %v570 = vpop.f32.mrf.mxu0
      %v571 = vadd.f32 %v234, %v570
      %v572 = vpop.f32.mrf.mxu0
      %573 = vmatprep.mubr.bf16.mxu0 %v457
      %574 = vmatmul.mubr.bf16.gmra.mxu0 %v344
      %v575 = vpop.f32.mrf.mxu0
      %v576 = vadd.f32 %v234, %v575
      %v577 = vpop.f32.mrf.mxu0
      %v578 = vpop.f32.mrf.mxu0
      %v579 = vadd.f32 %v234, %v578
      %v580 = vpop.f32.mrf.mxu0
      %581 = vmatprep.mubr.bf16.mxu0 %v460
      %582 = vmatmul.mubr.bf16.gmra.mxu0 %v346
      %v583 = vpop.f32.mrf.mxu0
      %v584 = vadd.f32 %v234, %v583
      %v585 = vpop.f32.mrf.mxu0
      %v586 = vpop.f32.mrf.mxu0
      %v587 = vadd.f32 %v234, %v586
      %v588 = vpop.f32.mrf.mxu0
      %589 = vmatprep.mubr.bf16.mxu0 %v463
      %590 = vmatmul.mubr.bf16.gmra.mxu0 %v348
      %v591 = vpop.f32.mrf.mxu0
      %v592 = vadd.f32 %v234, %v591
      %v593 = vpop.f32.mrf.mxu0
      %v594 = vpop.f32.mrf.mxu0
      %v595 = vadd.f32 %v234, %v594
      %v596 = vpop.f32.mrf.mxu0
      %597 = vmatprep.mubr.bf16.mxu0 %v466
      %598 = vmatmul.mubr.bf16.gmra.mxu0 %v350
      %v599 = vpop.f32.mrf.mxu0
      %v600 = vadd.f32 %v234, %v599
      %v601 = vpop.f32.mrf.mxu0
      %v602 = vpop.f32.mrf.mxu0
      %v603 = vadd.f32 %v234, %v602
      %v604 = vpop.f32.mrf.mxu0
      %605 = vmatprep.mubr.bf16.mxu0 %v469
      %606 = vmatmul.mubr.bf16.gmra.mxu0 %v352
      %v607 = vpop.f32.mrf.mxu0
      %v608 = vadd.f32 %v234, %v607
      %v609 = vpop.f32.mrf.mxu0
      %v610 = vpop.f32.mrf.mxu0
      %v611 = vadd.f32 %v234, %v610
      %v612 = vpop.f32.mrf.mxu0
      %613 = vmatprep.mubr.bf16.mxu0 %v472
      %614 = vmatmul.mubr.bf16.gmra.mxu0 %v354
      %v615 = vpop.f32.mrf.mxu0
      %v616 = vadd.f32 %v234, %v615
      %v617 = vpop.f32.mrf.mxu0
      %v618 = vpop.f32.mrf.mxu0
      %v619 = vadd.f32 %v234, %v618
      %v620 = vpop.f32.mrf.mxu0
      %621 = vmatprep.mubr.bf16.mxu0 %v475
      %622 = vmatmul.mubr.bf16.gmra.mxu0 %v356
      %v623 = vpop.f32.mrf.mxu0
      %v624 = vadd.f32 %v234, %v623
      %v625 = vpop.f32.mrf.mxu0
      %v626 = vpop.f32.mrf.mxu0
      %v627 = vadd.f32 %v234, %v626
      %v628 = vpop.f32.mrf.mxu0
      %629 = vmatprep.mubr.bf16.mxu0 %v478
      %630 = vmatmul.mubr.bf16.gmra.mxu0 %v358
      %v631 = vpop.f32.mrf.mxu0
      %v632 = vadd.f32 %v234, %v631
      %v633 = vpop.f32.mrf.mxu0
      %v634 = vpop.f32.mrf.mxu0
      %v635 = vadd.f32 %v234, %v634
      %v636 = vpop.f32.mrf.mxu0
      %637 = vmatprep.mubr.bf16.mxu0 %v481
      %638 = vmatmul.mubr.bf16.gmra.mxu0 %v360
      %v639 = vpop.f32.mrf.mxu0
      %v640 = vadd.f32 %v234, %v639
      %v641 = vpop.f32.mrf.mxu0
      %v642 = vpop.f32.mrf.mxu0
      %v643 = vadd.f32 %v234, %v642
      %v644 = vpop.f32.mrf.mxu0
      %645 = vmatprep.mubr.bf16.mxu0 %v484
      %646 = vmatmul.mubr.bf16.gmra.mxu0 %v362
      %v647 = vpop.f32.mrf.mxu0
      %v648 = vadd.f32 %v234, %v647
      %v649 = vpop.f32.mrf.mxu0
      %v650 = vpop.f32.mrf.mxu0
      %v651 = vadd.f32 %v234, %v650
      %v652 = vpop.f32.mrf.mxu0
      %653 = vdwg.mxu0
      %v654 = vmax.f32 %v528, 0.0
      %v655 = vmax.f32 %v531, 0.0
      %v656 = vmax.f32 %v536, 0.0
      %v657 = vmax.f32 %v539, 0.0
      %v658 = vmax.f32 %v544, 0.0
      %v659 = vmax.f32 %v547, 0.0
      %v660 = vmax.f32 %v552, 0.0
      %v661 = vmax.f32 %v555, 0.0
      %v662 = vmax.f32 %v560, 0.0
      %v663 = vmax.f32 %v563, 0.0
      %v664 = vmax.f32 %v568, 0.0
      %v665 = vmax.f32 %v571, 0.0
      %v666 = vmax.f32 %v576, 0.0
      %v667 = vmax.f32 %v579, 0.0
      %v668 = vmax.f32 %v584, 0.0
      %v669 = vmax.f32 %v587, 0.0
      %v670 = vmax.f32 %v592, 0.0
      %v671 = vmax.f32 %v595, 0.0
      %v672 = vmax.f32 %v600, 0.0
      %v673 = vmax.f32 %v603, 0.0
      %v674 = vmax.f32 %v608, 0.0
      %v675 = vmax.f32 %v611, 0.0
      %v676 = vmax.f32 %v616, 0.0
      %v677 = vmax.f32 %v619, 0.0
      %v678 = vmax.f32 %v624, 0.0
      %v679 = vmax.f32 %v627, 0.0
      %v680 = vmax.f32 %v632, 0.0
      %v681 = vmax.f32 %v635, 0.0
      %v682 = vmax.f32 %v640, 0.0
      %v683 = vmax.f32 %v643, 0.0
      %v684 = vmax.f32 %v648, 0.0
      %v685 = vmax.f32 %v651, 0.0
      %v686 = vpack.c.bf16 %v655, %v654
      %v687 = vpack.c.bf16 %v657, %v656
      %v688 = vpack.c.bf16 %v659, %v658
      %v689 = vpack.c.bf16 %v661, %v660
      %v690 = vpack.c.bf16 %v663, %v662
      %v691 = vpack.c.bf16 %v665, %v664
      %v692 = vpack.c.bf16 %v667, %v666
      %v693 = vpack.c.bf16 %v669, %v668
      %v694 = vpack.c.bf16 %v671, %v670
      %v695 = vpack.c.bf16 %v673, %v672
      %v696 = vpack.c.bf16 %v675, %v674
      %v697 = vpack.c.bf16 %v677, %v676
      %v698 = vpack.c.bf16 %v679, %v678
      %v699 = vpack.c.bf16 %v681, %v680
      %v700 = vpack.c.bf16 %v683, %v682
      %v701 = vpack.c.bf16 %v685, %v684
      %v718 = vunpack.c.l.b16 %v686
      %v719 = vunpack.c.h.b16 %v686
      %v720 = vunpack.c.l.b16 %v687
      %v721 = vunpack.c.h.b16 %v687
      %v722 = vunpack.c.l.b16 %v688
      %v723 = vunpack.c.h.b16 %v688
      %v724 = vunpack.c.l.b16 %v689
      %v725 = vunpack.c.h.b16 %v689
      %v726 = vunpack.c.l.b16 %v690
      %v727 = vunpack.c.h.b16 %v690
      %v728 = vunpack.c.l.b16 %v691
      %v729 = vunpack.c.h.b16 %v691
      %v730 = vunpack.c.l.b16 %v692
      %v731 = vunpack.c.h.b16 %v692
      %v732 = vunpack.c.l.b16 %v693
      %v733 = vunpack.c.h.b16 %v693
      %v734 = vunpack.c.l.b16 %v694
      %v735 = vunpack.c.h.b16 %v694
      %v736 = vunpack.c.l.b16 %v695
      %v737 = vunpack.c.h.b16 %v695
      %v738 = vunpack.c.l.b16 %v696
      %v739 = vunpack.c.h.b16 %v696
      %v740 = vunpack.c.l.b16 %v697
      %v741 = vunpack.c.h.b16 %v697
      %v742 = vunpack.c.l.b16 %v698
      %v743 = vunpack.c.h.b16 %v698
      %v744 = vunpack.c.l.b16 %v699
      %v745 = vunpack.c.h.b16 %v699
      %v746 = vunpack.c.l.b16 %v700
      %v747 = vunpack.c.h.b16 %v700
      %v748 = vunpack.c.l.b16 %v701
      %v749 = vunpack.c.h.b16 %v701
      %v750 = vpack.c.b16 %v718, %v718
      %v751 = vpack.c.b16 %v719, %v719
      %v752 = vpack.c.b16 %v720, %v720
      %v753 = vpack.c.b16 %v721, %v721
      %v754 = vpack.c.b16 %v722, %v722
      %v755 = vpack.c.b16 %v723, %v723
      %v756 = vpack.c.b16 %v724, %v724
      %v757 = vpack.c.b16 %v725, %v725
      %v758 = vpack.c.b16 %v726, %v726
      %v759 = vpack.c.b16 %v727, %v727
      %v760 = vpack.c.b16 %v728, %v728
      %v761 = vpack.c.b16 %v729, %v729
      %v762 = vpack.c.b16 %v730, %v730
      %v763 = vpack.c.b16 %v731, %v731
      %v764 = vpack.c.b16 %v732, %v732
      %v765 = vpack.c.b16 %v733, %v733
      %v766 = vpack.c.b16 %v734, %v734
      %v767 = vpack.c.b16 %v735, %v735
      %v768 = vpack.c.b16 %v736, %v736
      %v769 = vpack.c.b16 %v737, %v737
      %v770 = vpack.c.b16 %v738, %v738
      %v771 = vpack.c.b16 %v739, %v739
      %v772 = vpack.c.b16 %v740, %v740
      %v773 = vpack.c.b16 %v741, %v741
      %v774 = vpack.c.b16 %v742, %v742
      %v775 = vpack.c.b16 %v743, %v743
      %v776 = vpack.c.b16 %v744, %v744
      %v777 = vpack.c.b16 %v745, %v745
      %v778 = vpack.c.b16 %v746, %v746
      %v779 = vpack.c.b16 %v747, %v747
      %v780 = vpack.c.b16 %v748, %v748
      %v781 = vpack.c.b16 %v749, %v749
      %vm814 = vcmask 519168
      %815 = vst.msk [vmem:[%s175] sm:$0xf] %vm814, %v750
      %816 = vst.msk [vmem:[%s175 + $0x4] sm:$0xf] %vm814, %v751
      %817 = vst.msk [vmem:[%s175 + $0x8] sm:$0xf] %vm814, %v752
      %818 = vst.msk [vmem:[%s175 + $0xc] sm:$0xf] %vm814, %v753
      %819 = vst.msk [vmem:[%s175 + $0x10] sm:$0xf] %vm814, %v754
      %820 = vst.msk [vmem:[%s175 + $0x14] sm:$0xf] %vm814, %v755
      %821 = vst.msk [vmem:[%s175 + $0x18] sm:$0xf] %vm814, %v756
      %822 = vst.msk [vmem:[%s175 + $0x1c] sm:$0xf] %vm814, %v757
      %823 = vst.msk [vmem:[%s175 + $0x20] sm:$0xf] %vm814, %v758
      %824 = vst.msk [vmem:[%s175 + $0x24] sm:$0xf] %vm814, %v759
      %825 = vst.msk [vmem:[%s175 + $0x28] sm:$0xf] %vm814, %v760
      %826 = vst.msk [vmem:[%s175 + $0x2c] sm:$0xf] %vm814, %v761
      %827 = vst.msk [vmem:[%s175 + $0x30] sm:$0xf] %vm814, %v762
      %828 = vst.msk [vmem:[%s175 + $0x34] sm:$0xf] %vm814, %v763
      %829 = vst.msk [vmem:[%s175 + $0x38] sm:$0xf] %vm814, %v764
      %830 = vst.msk [vmem:[%s175 + $0x3c] sm:$0xf] %vm814, %v765
      %831 = vst.msk [vmem:[%s175 + $0x40] sm:$0xf] %vm814, %v766
      %832 = vst.msk [vmem:[%s175 + $0x44] sm:$0xf] %vm814, %v767
      %833 = vst.msk [vmem:[%s175 + $0x48] sm:$0xf] %vm814, %v768
      %834 = vst.msk [vmem:[%s175 + $0x4c] sm:$0xf] %vm814, %v769
      %835 = vst.msk [vmem:[%s175 + $0x50] sm:$0xf] %vm814, %v770
      %836 = vst.msk [vmem:[%s175 + $0x54] sm:$0xf] %vm814, %v771
      %837 = vst.msk [vmem:[%s175 + $0x58] sm:$0xf] %vm814, %v772
      %838 = vst.msk [vmem:[%s175 + $0x5c] sm:$0xf] %vm814, %v773
      %839 = vst.msk [vmem:[%s175 + $0x60] sm:$0xf] %vm814, %v774
      %840 = vst.msk [vmem:[%s175 + $0x64] sm:$0xf] %vm814, %v775
      %841 = vst.msk [vmem:[%s175 + $0x68] sm:$0xf] %vm814, %v776
      %842 = vst.msk [vmem:[%s175 + $0x6c] sm:$0xf] %vm814, %v777
      %843 = vst.msk [vmem:[%s175 + $0x70] sm:$0xf] %vm814, %v778
      %844 = vst.msk [vmem:[%s175 + $0x74] sm:$0xf] %vm814, %v779
      %845 = vst.msk [vmem:[%s175 + $0x78] sm:$0xf] %vm814, %v780
      %846 = vst.msk [vmem:[%s175 + $0x7c] sm:$0xf] %vm814, %v781
      %s847 = smul.u32 32, %s14
      %p848 = scmp.lt.s32.totalorder %s847, 63
      %s849 = scalar_select %p848, %s847, 63
      %s850 = smul.addr %s849, 4
      %s851 = scalar_lea.vmem %s3, %s850
      // Predicated region
      $region33: #{orientation_predictor_forward.4} parent=31 // pred_check
        %p852 = pneg %p100
      $region34: #{orientation_predictor_forward.4} parent=31 // pred_check_branch
        %854 = sbr.rel (%p852) target = $region36
      $region35: #{orientation_predictor_forward.4} parent=31 // pred_region
        %s855 = smul.u32 32, %s14
      $region36: #{orientation_predictor_forward.4} parent=31 // pred_fallthru
        _
    $region32: #{orientation_predictor_forward.4} parent=5 // pred_fallthru
      _
    %p856 = scmp.le.s32.totalorder 2, %s9
    // Predicated region
    $region37: #{orientation_predictor_forward.4} parent=5 // pred_check
      %p857 = pneg %p856
    $region38: #{orientation_predictor_forward.4} parent=5 // pred_check_branch
      %859 = sbr.rel (%p857) target = $region40
    $region39: #{orientation_predictor_forward.4} parent=5 // pred_region
      %s860 = ssub.s32 %s9, 2
      // Predicated region
      $region41: #{orientation_predictor_forward.4} parent=39 // pred_check
        %p861 = pneg %p106
      $region42: #{orientation_predictor_forward.4} parent=39 // pred_check_branch
        %863 = sbr.rel (%p861) target = $region44
      $region43: #{orientation_predictor_forward.4} parent=39 // pred_region
        %s864 = smul.u32 32, %s15
        %p865 = scmp.lt.s32.totalorder %s864, 63
        %s866 = scalar_select %p865, %s864, 63
        %s867 = smul.addr %s866, 4
        %s868 = scalar_lea.vmem %s3, %s867
      $region44: #{orientation_predictor_forward.4} parent=39 // pred_fallthru
        _
    $region40: #{orientation_predictor_forward.4} parent=5 // pred_fallthru
      _
  $region6: #{orientation_predictor_forward.4} parent=0 // loop_footer
    %s13 = sadd.s32 1, %s9
  $region7: #{orientation_predictor_forward.4} parent=0 // loop_footer_branch
    %8 = sbr.rel target = $region3
  $region8: #{orientation_predictor_forward.4} parent=0 // loop_exit
    _

// kernel: orientation_predictor_forward.5
$region0: #{orientation_predictor_forward.5}
  #allocation0 [shape = 'u32[]', space=smem, size = 0x4, offset = 0x4, fixed_abs, tag = 'smem constant byte address 0x4 - core index']
  #allocation1 [shape = 'u32[144,128]{1,0:T(1,128)}', space=vmem, size = 0x12000, scoped, tag = 'internal scratch']
  %s0 = inlined_call_operand.vmem [shape: bf16[128,64], index: 0, kind: input, shape index: {}]
  %s1 = inlined_call_operand.vmem [shape: bf16[128,64], index: 1, kind: input, shape index: {}]
  %s2 = inlined_call_operand.vmem [shape: bf16[128,64], index: 2, kind: input, shape index: {}]
  %s3 = inlined_call_operand.vmem [shape: bf16[128,64], index: 3, kind: input, shape index: {}]
  %s4 = inlined_call_operand.vmem [shape: bf16[128,64], index: 4, kind: input, shape index: {}]
  %s5 = inlined_call_operand.vmem [shape: bf16[128,64], index: 5, kind: input, shape index: {}]
  %s6 = inlined_call_operand.vmem [shape: bf16[128,64], index: 6, kind: input, shape index: {}]
  %s7 = inlined_call_operand.vmem [shape: bf16[128,64], index: 7, kind: input, shape index: {}]
  %s8 = inlined_call_operand.vmem [shape: bf16[128,64], index: 8, kind: input, shape index: {}]
  %s9 = inlined_call_operand.vmem [shape: bf16[64,128], index: 9, kind: input, shape index: {}]
  %s10 = inlined_call_operand.vmem [shape: f32[1,128], index: 10, kind: input, shape index: {}]
  %s11 = inlined_call_operand.vmem [shape: bf16[128,64], index: 11, kind: output, shape index: {0}]
  %s12 = inlined_call_operand.vmem [shape: bf16[128,128], index: 12, kind: output, shape index: {1}]
  %13 = xla_tuple %s11, %s12
  %s14 = sld [smem:[#allocation0]]
  $region85: #{orientation_predictor_forward.5} parent=0
    _
  %s16 = ssub.s32 1, %s14
  %s17 = scalar_select 0, %s16, %s14
  loop: start=0, step=1, limit=4
  $region2: #{orientation_predictor_forward.5} parent=0 // loop_pre_header
    _
  $region3: #{orientation_predictor_forward.5} parent=0 // loop_header
    %s19 = sphi 0, %s23
    %p20 = scmp.ge.s32.totalorder %s19, 4
    %s29 = sphi 0, %s31
    %s32 = sphi 0, %s29
    %s33 = sphi 0, %s32
    %s49 = sphi 0, %s33
    %s55 = sphi 0, %s57
    %s58 = sphi 0, %s55
    %s59 = sphi 0, %s58
    %s75 = sphi 0, %s59
    %s81 = sphi 0, %s83
    %s84 = sphi 0, %s81
    %s85 = sphi 0, %s84
    %s101 = sphi 0, %s85
    %s107 = sphi 0, %s109
    %s110 = sphi 0, %s107
    %s111 = sphi 0, %s110
    %s127 = sphi 0, %s111
    %s133 = sphi 0, %s135
    %s136 = sphi 0, %s133
    %s137 = sphi 0, %s136
    %s153 = sphi 0, %s137
    %s159 = sphi 0, %s161
    %s162 = sphi 0, %s159
    %s163 = sphi 0, %s162
    %s179 = sphi 0, %s163
    %s185 = sphi 0, %s187
    %s188 = sphi 0, %s185
    %s189 = sphi 0, %s188
    %s205 = sphi 0, %s189
    %s211 = sphi 0, %s213
    %s214 = sphi 0, %s211
    %s215 = sphi 0, %s214
    %s231 = sphi 0, %s215
    %s237 = sphi 0, %s239
    %s240 = sphi 0, %s237
    %s241 = sphi 0, %s240
    %s257 = sphi 0, %s241
    %s261 = sphi 0, %s261
    %s263 = sphi 0, %s261
    %s264 = sphi 0, %s263
    %s278 = sphi 0, %s264
    %s282 = sphi 0, %s282
    %s284 = sphi 0, %s282
    %s285 = sphi 0, %s284
    %s299 = sphi 0, %s285
    %s305 = sphi 0, %s307
    %s308 = sphi 0, %s305
    %s309 = sphi 0, %s308
    %s325 = sphi 0, %s309
    %s331 = sphi 0, %s333
    %s334 = sphi 0, %s331
    %s335 = sphi 0, %s334
    %s351 = sphi 0, %s335
  $region4: #{orientation_predictor_forward.5} parent=0 // loop_header_branch
    %22 = sbr.rel (%p20) target = $region8
  $region5: #{orientation_predictor_forward.5} parent=0 // loop_body
    %s24 = ssub.s32 %s19, 1
    %s25 = ssub.s32 %s19, 2
    %s26 = sadd.s32 %s19, 1
    %s27 = ssub.s32 %s19, %s26
    %p28 = scmp.eq.s32.totalorder %s27, 0
    %s30 = sadd.s32 %s29, 1
    %s31 = scalar_select %p28, %s29, %s30
    %p34 = pneg %p28
    %p35 = scmp.eq.s32.totalorder %s19, 1
    %p36 = por %p34, %p35
    %p37 = scmp.ne.s32.totalorder %s29, %s32
    %p38 = scmp.eq.s32.totalorder %s19, 0
    %p39 = por %p37, %p38
    %p40 = scmp.ne.s32.totalorder %s29, %s32
    %p41 = scmp.eq.s32.totalorder %s24, 1
    %p42 = por %p40, %p41
    %p43 = scmp.ne.s32.totalorder %s32, %s33
    %p44 = scmp.eq.s32.totalorder %s24, 0
    %p45 = por %p43, %p44
    %p46 = scmp.ne.s32.totalorder %s32, %s33
    %p47 = scmp.eq.s32.totalorder %s25, 1
    %p48 = por %p46, %p47
    %p50 = scmp.ne.s32.totalorder %s33, %s49
    %p51 = scmp.eq.s32.totalorder %s25, 0
    %p52 = por %p50, %p51
    %s53 = ssub.s32 %s19, %s26
    %p54 = scmp.eq.s32.totalorder %s53, 0
    %s56 = sadd.s32 %s55, 1
    %s57 = scalar_select %p54, %s55, %s56
    %p60 = pneg %p54
    %p61 = scmp.eq.s32.totalorder %s19, 1
    %p62 = por %p60, %p61
    %p63 = scmp.ne.s32.totalorder %s55, %s58
    %p64 = scmp.eq.s32.totalorder %s19, 0
    %p65 = por %p63, %p64
    %p66 = scmp.ne.s32.totalorder %s55, %s58
    %p67 = scmp.eq.s32.totalorder %s24, 1
    %p68 = por %p66, %p67
    %p69 = scmp.ne.s32.totalorder %s58, %s59
    %p70 = scmp.eq.s32.totalorder %s24, 0
    %p71 = por %p69, %p70
    %p72 = scmp.ne.s32.totalorder %s58, %s59
    %p73 = scmp.eq.s32.totalorder %s25, 1
    %p74 = por %p72, %p73
    %p76 = scmp.ne.s32.totalorder %s59, %s75
    %p77 = scmp.eq.s32.totalorder %s25, 0
    %p78 = por %p76, %p77
    %s79 = ssub.s32 %s19, %s26
    %p80 = scmp.eq.s32.totalorder %s79, 0
    %s82 = sadd.s32 %s81, 1
    %s83 = scalar_select %p80, %s81, %s82
    %p86 = pneg %p80
    %p87 = scmp.eq.s32.totalorder %s19, 1
    %p88 = por %p86, %p87
    %p89 = scmp.ne.s32.totalorder %s81, %s84
    %p90 = scmp.eq.s32.totalorder %s19, 0
    %p91 = por %p89, %p90
    %p92 = scmp.ne.s32.totalorder %s81, %s84
    %p93 = scmp.eq.s32.totalorder %s24, 1
    %p94 = por %p92, %p93
    %p95 = scmp.ne.s32.totalorder %s84, %s85
    %p96 = scmp.eq.s32.totalorder %s24, 0
    %p97 = por %p95, %p96
    %p98 = scmp.ne.s32.totalorder %s84, %s85
    %p99 = scmp.eq.s32.totalorder %s25, 1
    %p100 = por %p98, %p99
    %p102 = scmp.ne.s32.totalorder %s85, %s101
    %p103 = scmp.eq.s32.totalorder %s25, 0
    %p104 = por %p102, %p103
    %s105 = ssub.s32 %s19, %s26
    %p106 = scmp.eq.s32.totalorder %s105, 0
    %s108 = sadd.s32 %s107, 1
    %s109 = scalar_select %p106, %s107, %s108
    %p112 = pneg %p106
    %p113 = scmp.eq.s32.totalorder %s19, 1
    %p114 = por %p112, %p113
    %p115 = scmp.ne.s32.totalorder %s107, %s110
    %p116 = scmp.eq.s32.totalorder %s19, 0
    %p117 = por %p115, %p116
    %p118 = scmp.ne.s32.totalorder %s107, %s110
    %p119 = scmp.eq.s32.totalorder %s24, 1
    %p120 = por %p118, %p119
    %p121 = scmp.ne.s32.totalorder %s110, %s111
    %p122 = scmp.eq.s32.totalorder %s24, 0
    %p123 = por %p121, %p122
    %p124 = scmp.ne.s32.totalorder %s110, %s111
    %p125 = scmp.eq.s32.totalorder %s25, 1
    %p126 = por %p124, %p125
    %p128 = scmp.ne.s32.totalorder %s111, %s127
    %p129 = scmp.eq.s32.totalorder %s25, 0
    %p130 = por %p128, %p129
    %s131 = ssub.s32 %s19, %s26
    %p132 = scmp.eq.s32.totalorder %s131, 0
    %s134 = sadd.s32 %s133, 1
    %s135 = scalar_select %p132, %s133, %s134
    %p138 = pneg %p132
    %p139 = scmp.eq.s32.totalorder %s19, 1
    %p140 = por %p138, %p139
    %p141 = scmp.ne.s32.totalorder %s133, %s136
    %p142 = scmp.eq.s32.totalorder %s19, 0
    %p143 = por %p141, %p142
    %p144 = scmp.ne.s32.totalorder %s133, %s136
    %p145 = scmp.eq.s32.totalorder %s24, 1
    %p146 = por %p144, %p145
    %p147 = scmp.ne.s32.totalorder %s136, %s137
    %p148 = scmp.eq.s32.totalorder %s24, 0
    %p149 = por %p147, %p148
    %p150 = scmp.ne.s32.totalorder %s136, %s137
    %p151 = scmp.eq.s32.totalorder %s25, 1
    %p152 = por %p150, %p151
    %p154 = scmp.ne.s32.totalorder %s137, %s153
    %p155 = scmp.eq.s32.totalorder %s25, 0
    %p156 = por %p154, %p155
    %s157 = ssub.s32 %s19, %s26
    %p158 = scmp.eq.s32.totalorder %s157, 0
    %s160 = sadd.s32 %s159, 1
    %s161 = scalar_select %p158, %s159, %s160
    %p164 = pneg %p158
    %p165 = scmp.eq.s32.totalorder %s19, 1
    %p166 = por %p164, %p165
    %p167 = scmp.ne.s32.totalorder %s159, %s162
    %p168 = scmp.eq.s32.totalorder %s19, 0
    %p169 = por %p167, %p168
    %p170 = scmp.ne.s32.totalorder %s159, %s162
    %p171 = scmp.eq.s32.totalorder %s24, 1
    %p172 = por %p170, %p171
    %p173 = scmp.ne.s32.totalorder %s162, %s163
    %p174 = scmp.eq.s32.totalorder %s24, 0
    %p175 = por %p173, %p174
    %p176 = scmp.ne.s32.totalorder %s162, %s163
    %p177 = scmp.eq.s32.totalorder %s25, 1
    %p178 = por %p176, %p177
    %p180 = scmp.ne.s32.totalorder %s163, %s179
    %p181 = scmp.eq.s32.totalorder %s25, 0
    %p182 = por %p180, %p181
    %s183 = ssub.s32 %s19, %s26
    %p184 = scmp.eq.s32.totalorder %s183, 0
    %s186 = sadd.s32 %s185, 1
    %s187 = scalar_select %p184, %s185, %s186
    %p190 = pneg %p184
    %p191 = scmp.eq.s32.totalorder %s19, 1
    %p192 = por %p190, %p191
    %p193 = scmp.ne.s32.totalorder %s185, %s188
    %p194 = scmp.eq.s32.totalorder %s19, 0
    %p195 = por %p193, %p194
    %p196 = scmp.ne.s32.totalorder %s185, %s188
    %p197 = scmp.eq.s32.totalorder %s24, 1
    %p198 = por %p196, %p197
    %p199 = scmp.ne.s32.totalorder %s188, %s189
    %p200 = scmp.eq.s32.totalorder %s24, 0
    %p201 = por %p199, %p200
    %p202 = scmp.ne.s32.totalorder %s188, %s189
    %p203 = scmp.eq.s32.totalorder %s25, 1
    %p204 = por %p202, %p203
    %p206 = scmp.ne.s32.totalorder %s189, %s205
    %p207 = scmp.eq.s32.totalorder %s25, 0
    %p208 = por %p206, %p207
    %s209 = ssub.s32 %s19, %s26
    %p210 = scmp.eq.s32.totalorder %s209, 0
    %s212 = sadd.s32 %s211, 1
    %s213 = scalar_select %p210, %s211, %s212
    %p216 = pneg %p210
    %p217 = scmp.eq.s32.totalorder %s19, 1
    %p218 = por %p216, %p217
    %p219 = scmp.ne.s32.totalorder %s211, %s214
    %p220 = scmp.eq.s32.totalorder %s19, 0
    %p221 = por %p219, %p220
    %p222 = scmp.ne.s32.totalorder %s211, %s214
    %p223 = scmp.eq.s32.totalorder %s24, 1
    %p224 = por %p222, %p223
    %p225 = scmp.ne.s32.totalorder %s214, %s215
    %p226 = scmp.eq.s32.totalorder %s24, 0
    %p227 = por %p225, %p226
    %p228 = scmp.ne.s32.totalorder %s214, %s215
    %p229 = scmp.eq.s32.totalorder %s25, 1
    %p230 = por %p228, %p229
    %p232 = scmp.ne.s32.totalorder %s215, %s231
    %p233 = scmp.eq.s32.totalorder %s25, 0
    %p234 = por %p232, %p233
    %s235 = ssub.s32 %s19, %s26
    %p236 = scmp.eq.s32.totalorder %s235, 0
    %s238 = sadd.s32 %s237, 1
    %s239 = scalar_select %p236, %s237, %s238
    %p242 = pneg %p236
    %p243 = scmp.eq.s32.totalorder %s19, 1
    %p244 = por %p242, %p243
    %p245 = scmp.ne.s32.totalorder %s237, %s240
    %p246 = scmp.eq.s32.totalorder %s19, 0
    %p247 = por %p245, %p246
    %p248 = scmp.ne.s32.totalorder %s237, %s240
    %p249 = scmp.eq.s32.totalorder %s24, 1
    %p250 = por %p248, %p249
    %p251 = scmp.ne.s32.totalorder %s240, %s241
    %p252 = scmp.eq.s32.totalorder %s24, 0
    %p253 = por %p251, %p252
    %p254 = scmp.ne.s32.totalorder %s240, %s241
    %p255 = scmp.eq.s32.totalorder %s25, 1
    %p256 = por %p254, %p255
    %p258 = scmp.ne.s32.totalorder %s241, %s257
    %p259 = scmp.eq.s32.totalorder %s25, 0
    %p260 = por %p258, %p259
    %s262 = sadd.s32 %s261, 1
    %p265 = scmp.eq.s32.totalorder %s19, 1
    %p266 = scmp.ne.s32.totalorder %s261, %s263
    %p267 = scmp.eq.s32.totalorder %s19, 0
    %p268 = por %p266, %p267
    %p269 = scmp.ne.s32.totalorder %s261, %s263
    %p270 = scmp.eq.s32.totalorder %s24, 1
    %p271 = por %p269, %p270
    %p272 = scmp.ne.s32.totalorder %s263, %s264
    %p273 = scmp.eq.s32.totalorder %s24, 0
    %p274 = por %p272, %p273
    %p275 = scmp.ne.s32.totalorder %s263, %s264
    %p276 = scmp.eq.s32.totalorder %s25, 1
    %p277 = por %p275, %p276
    %p279 = scmp.ne.s32.totalorder %s264, %s278
    %p280 = scmp.eq.s32.totalorder %s25, 0
    %p281 = por %p279, %p280
    %s283 = sadd.s32 %s282, 1
    %p286 = scmp.eq.s32.totalorder %s19, 1
    %p287 = scmp.ne.s32.totalorder %s282, %s284
    %p288 = scmp.eq.s32.totalorder %s19, 0
    %p289 = por %p287, %p288
    %p290 = scmp.ne.s32.totalorder %s282, %s284
    %p291 = scmp.eq.s32.totalorder %s24, 1
    %p292 = por %p290, %p291
    %p293 = scmp.ne.s32.totalorder %s284, %s285
    %p294 = scmp.eq.s32.totalorder %s24, 0
    %p295 = por %p293, %p294
    %p296 = scmp.ne.s32.totalorder %s284, %s285
    %p297 = scmp.eq.s32.totalorder %s25, 1
    %p298 = por %p296, %p297
    %p300 = scmp.ne.s32.totalorder %s285, %s299
    %p301 = scmp.eq.s32.totalorder %s25, 0
    %p302 = por %p300, %p301
    %s303 = ssub.s32 %s19, %s26
    %p304 = scmp.eq.s32.totalorder %s303, 0
    %s306 = sadd.s32 %s305, 1
    %s307 = scalar_select %p304, %s305, %s306
    %p310 = pneg %p304
    %p311 = scmp.eq.s32.totalorder %s19, 1
    %p312 = por %p310, %p311
    %p313 = scmp.ne.s32.totalorder %s305, %s308
    %p314 = scmp.eq.s32.totalorder %s19, 0
    %p315 = por %p313, %p314
    %p316 = scmp.ne.s32.totalorder %s305, %s308
    %p317 = scmp.eq.s32.totalorder %s24, 1
    %p318 = por %p316, %p317
    %p319 = scmp.ne.s32.totalorder %s308, %s309
    %p320 = scmp.eq.s32.totalorder %s24, 0
    %p321 = por %p319, %p320
    %p322 = scmp.ne.s32.totalorder %s308, %s309
    %p323 = scmp.eq.s32.totalorder %s25, 1
    %p324 = por %p322, %p323
    %p326 = scmp.ne.s32.totalorder %s309, %s325
    %p327 = scmp.eq.s32.totalorder %s25, 0
    %p328 = por %p326, %p327
    %s329 = ssub.s32 %s19, %s26
    %p330 = scmp.eq.s32.totalorder %s329, 0
    %s332 = sadd.s32 %s331, 1
    %s333 = scalar_select %p330, %s331, %s332
    %p336 = pneg %p330
    %p337 = scmp.eq.s32.totalorder %s19, 1
    %p338 = por %p336, %p337
    %p339 = scmp.ne.s32.totalorder %s331, %s334
    %p340 = scmp.eq.s32.totalorder %s19, 0
    %p341 = por %p339, %p340
    %p342 = scmp.ne.s32.totalorder %s331, %s334
    %p343 = scmp.eq.s32.totalorder %s24, 1
    %p344 = por %p342, %p343
    %p345 = scmp.ne.s32.totalorder %s334, %s335
    %p346 = scmp.eq.s32.totalorder %s24, 0
    %p347 = por %p345, %p346
    %p348 = scmp.ne.s32.totalorder %s334, %s335
    %p349 = scmp.eq.s32.totalorder %s25, 1
    %p350 = por %p348, %p349
    %p352 = scmp.ne.s32.totalorder %s335, %s351
    %p353 = scmp.eq.s32.totalorder %s25, 0
    %p354 = por %p352, %p353
    %p355 = scmp.le.s32.totalorder 1, %s19
    %p356 = scmp.lt.s32.totalorder %s19, 3
    %p357 = pnand %p355, %p356
    %p358 = pneg %p357
    // Predicated region
    $region9: #{orientation_predictor_forward.5} parent=5 // pred_check
      _
    $region10: #{orientation_predictor_forward.5} parent=5 // pred_check_branch
      %360 = sbr.rel (%p357) target = $region12
    $region11: #{orientation_predictor_forward.5} parent=5 // pred_region
      %s361 = ssub.s32 %s19, 1
      // Predicated region
      $region13: #{orientation_predictor_forward.5} parent=11 // pred_check
        %p362 = pneg %p274
      $region14: #{orientation_predictor_forward.5} parent=11 // pred_check_branch
        %364 = sbr.rel (%p362) target = $region16
      $region15: #{orientation_predictor_forward.5} parent=11 // pred_region
        _
      $region16: #{orientation_predictor_forward.5} parent=11 // pred_fallthru
        _
      // Predicated region
      $region17: #{orientation_predictor_forward.5} parent=11 // pred_check
        %p365 = pneg %p295
      $region18: #{orientation_predictor_forward.5} parent=11 // pred_check_branch
        %367 = sbr.rel (%p365) target = $region20
      $region19: #{orientation_predictor_forward.5} parent=11 // pred_region
        _
      $region20: #{orientation_predictor_forward.5} parent=11 // pred_fallthru
        _
    $region12: #{orientation_predictor_forward.5} parent=5 // pred_fallthru
      _
    %p368 = scmp.lt.s32.totalorder %s19, 2
    // Predicated region
    $region21: #{orientation_predictor_forward.5} parent=5 // pred_check
      %p369 = pneg %p368
    $region22: #{orientation_predictor_forward.5} parent=5 // pred_check_branch
      %371 = sbr.rel (%p369) target = $region24
    $region23: #{orientation_predictor_forward.5} parent=5 // pred_region
      // Predicated region
      $region25: #{orientation_predictor_forward.5} parent=23 // pred_check
        %p372 = pneg %p39
      $region26: #{orientation_predictor_forward.5} parent=23 // pred_check_branch
        %374 = sbr.rel (%p372) target = $region28
      $region27: #{orientation_predictor_forward.5} parent=23 // pred_region
        %s375 = smul.u32 8, %s19
        %p376 = scmp.lt.s32.totalorder %s375, 15
        %s377 = scalar_select %p376, %s375, 15
        %s378 = smul.addr %s377, 4
        %s379 = scalar_lea.vmem %s0, %s378
        %s380 = smul.u32 8, %s19
      $region28: #{orientation_predictor_forward.5} parent=23 // pred_fallthru
        _
      // Predicated region
      $region29: #{orientation_predictor_forward.5} parent=23 // pred_check
        %p381 = pneg %p65
      $region30: #{orientation_predictor_forward.5} parent=23 // pred_check_branch
        %383 = sbr.rel (%p381) target = $region32
      $region31: #{orientation_predictor_forward.5} parent=23 // pred_region
        %s384 = smul.u32 8, %s19
        %p385 = scmp.lt.s32.totalorder %s384, 15
        %s386 = scalar_select %p385, %s384, 15
        %s387 = smul.addr %s386, 4
        %s388 = scalar_lea.vmem %s1, %s387
        %s389 = smul.u32 8, %s19
      $region32: #{orientation_predictor_forward.5} parent=23 // pred_fallthru
        _
      // Predicated region
      $region33: #{orientation_predictor_forward.5} parent=23 // pred_check
        %p390 = pneg %p91
      $region34: #{orientation_predictor_forward.5} parent=23 // pred_check_branch
        %392 = sbr.rel (%p390) target = $region36
      $region35: #{orientation_predictor_forward.5} parent=23 // pred_region
        %s393 = smul.u32 8, %s19
        %p394 = scmp.lt.s32.totalorder %s393, 15
        %s395 = scalar_select %p394, %s393, 15
        %s396 = smul.addr %s395, 4
        %s397 = scalar_lea.vmem %s2, %s396
        %s398 = smul.u32 8, %s19
      $region36: #{orientation_predictor_forward.5} parent=23 // pred_fallthru
        _
      // Predicated region
      $region37: #{orientation_predictor_forward.5} parent=23 // pred_check
        %p399 = pneg %p117
      $region38: #{orientation_predictor_forward.5} parent=23 // pred_check_branch
        %401 = sbr.rel (%p399) target = $region40
      $region39: #{orientation_predictor_forward.5} parent=23 // pred_region
        %s402 = smul.u32 8, %s19
        %p403 = scmp.lt.s32.totalorder %s402, 15
        %s404 = scalar_select %p403, %s402, 15
        %s405 = smul.addr %s404, 4
        %s406 = scalar_lea.vmem %s3, %s405
        %s407 = smul.u32 8, %s19
      $region40: #{orientation_predictor_forward.5} parent=23 // pred_fallthru
        _
      // Predicated region
      $region41: #{orientation_predictor_forward.5} parent=23 // pred_check
        %p408 = pneg %p143
      $region42: #{orientation_predictor_forward.5} parent=23 // pred_check_branch
        %410 = sbr.rel (%p408) target = $region44
      $region43: #{orientation_predictor_forward.5} parent=23 // pred_region
        %s411 = smul.u32 8, %s19
        %p412 = scmp.lt.s32.totalorder %s411, 15
        %s413 = scalar_select %p412, %s411, 15
        %s414 = smul.addr %s413, 4
        %s415 = scalar_lea.vmem %s4, %s414
        %s416 = smul.u32 8, %s19
      $region44: #{orientation_predictor_forward.5} parent=23 // pred_fallthru
        _
      // Predicated region
      $region45: #{orientation_predictor_forward.5} parent=23 // pred_check
        %p417 = pneg %p169
      $region46: #{orientation_predictor_forward.5} parent=23 // pred_check_branch
        %419 = sbr.rel (%p417) target = $region48
      $region47: #{orientation_predictor_forward.5} parent=23 // pred_region
        %s420 = smul.u32 8, %s19
        %p421 = scmp.lt.s32.totalorder %s420, 15
        %s422 = scalar_select %p421, %s420, 15
        %s423 = smul.addr %s422, 4
        %s424 = scalar_lea.vmem %s5, %s423
        %s425 = smul.u32 8, %s19
      $region48: #{orientation_predictor_forward.5} parent=23 // pred_fallthru
        _
      // Predicated region
      $region49: #{orientation_predictor_forward.5} parent=23 // pred_check
        %p426 = pneg %p195
      $region50: #{orientation_predictor_forward.5} parent=23 // pred_check_branch
        %428 = sbr.rel (%p426) target = $region52
      $region51: #{orientation_predictor_forward.5} parent=23 // pred_region
        %s429 = smul.u32 8, %s19
        %p430 = scmp.lt.s32.totalorder %s429, 15
        %s431 = scalar_select %p430, %s429, 15
        %s432 = smul.addr %s431, 4
        %s433 = scalar_lea.vmem %s6, %s432
        %s434 = smul.u32 8, %s19
      $region52: #{orientation_predictor_forward.5} parent=23 // pred_fallthru
        _
      // Predicated region
      $region53: #{orientation_predictor_forward.5} parent=23 // pred_check
        %p435 = pneg %p221
      $region54: #{orientation_predictor_forward.5} parent=23 // pred_check_branch
        %437 = sbr.rel (%p435) target = $region56
      $region55: #{orientation_predictor_forward.5} parent=23 // pred_region
        %s438 = smul.u32 8, %s19
        %p439 = scmp.lt.s32.totalorder %s438, 15
        %s440 = scalar_select %p439, %s438, 15
        %s441 = smul.addr %s440, 4
        %s442 = scalar_lea.vmem %s7, %s441
        %s443 = smul.u32 8, %s19
      $region56: #{orientation_predictor_forward.5} parent=23 // pred_fallthru
        _
      // Predicated region
      $region57: #{orientation_predictor_forward.5} parent=23 // pred_check
        %p444 = pneg %p247
      $region58: #{orientation_predictor_forward.5} parent=23 // pred_check_branch
        %446 = sbr.rel (%p444) target = $region60
      $region59: #{orientation_predictor_forward.5} parent=23 // pred_region
        %s447 = smul.u32 8, %s19
        %p448 = scmp.lt.s32.totalorder %s447, 15
        %s449 = scalar_select %p448, %s447, 15
        %s450 = smul.addr %s449, 4
        %s451 = scalar_lea.vmem %s8, %s450
        %s452 = smul.u32 8, %s19
      $region60: #{orientation_predictor_forward.5} parent=23 // pred_fallthru
        _
    $region24: #{orientation_predictor_forward.5} parent=5 // pred_fallthru
      _
    %p453 = scmp.le.s32.totalorder 1, %s19
    %p454 = scmp.lt.s32.totalorder %s19, 3
    %p455 = pnand %p453, %p454
    %p456 = pneg %p455
    // Predicated region
    $region61: #{orientation_predictor_forward.5} parent=5 // pred_check
      _
    $region62: #{orientation_predictor_forward.5} parent=5 // pred_check_branch
      %458 = sbr.rel (%p455) target = $region64
    $region63: #{orientation_predictor_forward.5} parent=5 // pred_region
      %s459 = ssub.s32 %s19, 1
      %s460 = smul.u32 8, %s24
      %p461 = scmp.lt.s32.totalorder %s460, 15
      %s462 = scalar_select %p461, %s460, 15
      %s463 = smul.addr %s462, 4
      %s464 = scalar_lea.vmem %s0, %s463
      %p465 = pneg %p45
      %p466 = pneg %p42
      %s467 = smul.u32 8, %s24
      %p468 = scmp.lt.s32.totalorder %s467, 15
      %s469 = scalar_select %p468, %s467, 15
      %s470 = smul.addr %s469, 4
      %s471 = scalar_lea.vmem %s1, %s470
      %p472 = pneg %p71
      %p473 = pneg %p68
      %s474 = smul.u32 8, %s24
      %p475 = scmp.lt.s32.totalorder %s474, 15
      %s476 = scalar_select %p475, %s474, 15
      %s477 = smul.addr %s476, 4
      %s478 = scalar_lea.vmem %s2, %s477
      %p479 = pneg %p97
      %p480 = pneg %p94
      %s481 = smul.u32 8, %s24
      %p482 = scmp.lt.s32.totalorder %s481, 15
      %s483 = scalar_select %p482, %s481, 15
      %s484 = smul.addr %s483, 4
      %s485 = scalar_lea.vmem %s3, %s484
      %p486 = pneg %p123
      %p487 = pneg %p120
      %s488 = smul.u32 8, %s24
      %p489 = scmp.lt.s32.totalorder %s488, 15
      %s490 = scalar_select %p489, %s488, 15
      %s491 = smul.addr %s490, 4
      %s492 = scalar_lea.vmem %s4, %s491
      %p493 = pneg %p149
      %p494 = pneg %p146
      %s495 = smul.u32 8, %s24
      %p496 = scmp.lt.s32.totalorder %s495, 15
      %s497 = scalar_select %p496, %s495, 15
      %s498 = smul.addr %s497, 4
      %s499 = scalar_lea.vmem %s5, %s498
      %p500 = pneg %p175
      %p501 = pneg %p172
      %s502 = smul.u32 8, %s24
      %p503 = scmp.lt.s32.totalorder %s502, 15
      %s504 = scalar_select %p503, %s502, 15
      %s505 = smul.addr %s504, 4
      %s506 = scalar_lea.vmem %s6, %s505
      %p507 = pneg %p201
      %p508 = pneg %p198
      %s509 = smul.u32 8, %s24
      %p510 = scmp.lt.s32.totalorder %s509, 15
      %s511 = scalar_select %p510, %s509, 15
      %s512 = smul.addr %s511, 4
      %s513 = scalar_lea.vmem %s7, %s512
      %p514 = pneg %p227
      %p515 = pneg %p224
      %s516 = smul.u32 8, %s24
      %p517 = scmp.lt.s32.totalorder %s516, 15
      %s518 = scalar_select %p517, %s516, 15
      %s519 = smul.addr %s518, 4
      %s520 = scalar_lea.vmem %s8, %s519
      %p521 = pneg %p253
      %p522 = pneg %p250
      %p523 = pneg %p274
      %p524 = pneg %p271
      %p525 = pneg %p295
      %p526 = pneg %p292
      %p527 = pneg %p321
      %p528 = pneg %p318
      %s529 = smul.u32 8, %s24
      %p530 = scmp.lt.s32.totalorder %s529, 15
      %s531 = scalar_select %p530, %s529, 15
      %s532 = smul.addr %s531, 4
      %s533 = scalar_lea.vmem %s11, %s532
      %p534 = pneg %p347
      %p535 = pneg %p344
      %s536 = smul.u32 8, %s24
      %p537 = scmp.lt.s32.totalorder %s536, 15
      %s538 = scalar_select %p537, %s536, 15
      %s539 = smul.addr %s538, 4
      %s540 = scalar_lea.vmem %s12, %s539
      %s541 = smul.u32 8, %s24
      %p542 = scmp.lt.s32.totalorder %s541, 15
      %s543 = scalar_select %p542, %s541, 15
      %s544 = smul.addr %s543, 4
      %s545 = scalar_lea.vmem %s0, %s544
      %s546 = smul.u32 8, %s24
      %s547 = smul.u32 8, %s24
      %p548 = scmp.lt.s32.totalorder %s547, 15
      %s549 = scalar_select %p548, %s547, 15
      %s550 = smul.addr %s549, 4
      %s551 = scalar_lea.vmem %s1, %s550
      %s552 = smul.u32 8, %s24
      %s553 = smul.u32 8, %s24
      %p554 = scmp.lt.s32.totalorder %s553, 15
      %s555 = scalar_select %p554, %s553, 15
      %s556 = smul.addr %s555, 4
      %s557 = scalar_lea.vmem %s2, %s556
      %s558 = smul.u32 8, %s24
      %s559 = smul.u32 8, %s24
      %p560 = scmp.lt.s32.totalorder %s559, 15
      %s561 = scalar_select %p560, %s559, 15
      %s562 = smul.addr %s561, 4
      %s563 = scalar_lea.vmem %s3, %s562
      %s564 = smul.u32 8, %s24
      %s565 = smul.u32 8, %s24
      %p566 = scmp.lt.s32.totalorder %s565, 15
      %s567 = scalar_select %p566, %s565, 15
      %s568 = smul.addr %s567, 4
      %s569 = scalar_lea.vmem %s4, %s568
      %s570 = smul.u32 8, %s24
      %s571 = smul.u32 8, %s24
      %p572 = scmp.lt.s32.totalorder %s571, 15
      %s573 = scalar_select %p572, %s571, 15
      %s574 = smul.addr %s573, 4
      %s575 = scalar_lea.vmem %s5, %s574
      %s576 = smul.u32 8, %s24
      %s577 = smul.u32 8, %s24
      %p578 = scmp.lt.s32.totalorder %s577, 15
      %s579 = scalar_select %p578, %s577, 15
      %s580 = smul.addr %s579, 4
      %s581 = scalar_lea.vmem %s6, %s580
      %s582 = smul.u32 8, %s24
      %s583 = smul.u32 8, %s24
      %p584 = scmp.lt.s32.totalorder %s583, 15
      %s585 = scalar_select %p584, %s583, 15
      %s586 = smul.addr %s585, 4
      %s587 = scalar_lea.vmem %s7, %s586
      %s588 = smul.u32 8, %s24
      %s589 = smul.u32 8, %s24
      %p590 = scmp.lt.s32.totalorder %s589, 15
      %s591 = scalar_select %p590, %s589, 15
      %s592 = smul.addr %s591, 4
      %s593 = scalar_lea.vmem %s8, %s592
      %s594 = smul.u32 8, %s24
      %s595 = smul.u32 8, %s24
      %p596 = scmp.lt.s32.totalorder %s595, 15
      %s597 = scalar_select %p596, %s595, 15
      %s598 = smul.addr %s597, 4
      %s599 = scalar_lea.vmem %s11, %s598
      %s600 = smul.u32 8, %s24
      %s601 = smul.u32 8, %s24
      %p602 = scmp.lt.s32.totalorder %s601, 15
      %s603 = scalar_select %p602, %s601, 15
      %s604 = smul.addr %s603, 4
      %s605 = scalar_lea.vmem %s12, %s604
      %s606 = smul.u32 8, %s24
      %v608 = vld [vmem:[%s545] sm:$0xf]
      %v609 = vld [vmem:[%s545 + $0x4] sm:$0xf]
      %v610 = vld [vmem:[%s545 + $0x8] sm:$0xf]
      %v611 = vld [vmem:[%s545 + $0xc] sm:$0xf]
      %v612 = vld [vmem:[%s545 + $0x10] sm:$0xf]
      %v613 = vld [vmem:[%s545 + $0x14] sm:$0xf]
      %v614 = vld [vmem:[%s545 + $0x18] sm:$0xf]
      %v615 = vld [vmem:[%s545 + $0x1c] sm:$0xf]
      %v616 = vld [vmem:[%s551] sm:$0xf]
      %v617 = vld [vmem:[%s551 + $0x4] sm:$0xf]
      %v618 = vld [vmem:[%s551 + $0x8] sm:$0xf]
      %v619 = vld [vmem:[%s551 + $0xc] sm:$0xf]
      %v620 = vld [vmem:[%s551 + $0x10] sm:$0xf]
      %v621 = vld [vmem:[%s551 + $0x14] sm:$0xf]
      %v622 = vld [vmem:[%s551 + $0x18] sm:$0xf]
      %v623 = vld [vmem:[%s551 + $0x1c] sm:$0xf]
      %v624 = vmax.bf16 %v608, %v616
      %v625 = vmax.bf16 %v609, %v617
      %v626 = vmax.bf16 %v610, %v618
      %v627 = vmax.bf16 %v611, %v619
      %v628 = vmax.bf16 %v612, %v620
      %v629 = vmax.bf16 %v613, %v621
      %v630 = vmax.bf16 %v614, %v622
      %v631 = vmax.bf16 %v615, %v623
      %v632 = vld [vmem:[%s557] sm:$0xf]
      %v633 = vld [vmem:[%s557 + $0x4] sm:$0xf]
      %v634 = vld [vmem:[%s557 + $0x8] sm:$0xf]
      %v635 = vld [vmem:[%s557 + $0xc] sm:$0xf]
      %v636 = vld [vmem:[%s557 + $0x10] sm:$0xf]
      %v637 = vld [vmem:[%s557 + $0x14] sm:$0xf]
      %v638 = vld [vmem:[%s557 + $0x18] sm:$0xf]
      %v639 = vld [vmem:[%s557 + $0x1c] sm:$0xf]
      %v640 = vmax.bf16 %v624, %v632
      %v641 = vmax.bf16 %v625, %v633
      %v642 = vmax.bf16 %v626, %v634
      %v643 = vmax.bf16 %v627, %v635
      %v644 = vmax.bf16 %v628, %v636
      %v645 = vmax.bf16 %v629, %v637
      %v646 = vmax.bf16 %v630, %v638
      %v647 = vmax.bf16 %v631, %v639
      %v648 = vld [vmem:[%s563] sm:$0xf]
      %v649 = vld [vmem:[%s563 + $0x4] sm:$0xf]
      %v650 = vld [vmem:[%s563 + $0x8] sm:$0xf]
      %v651 = vld [vmem:[%s563 + $0xc] sm:$0xf]
      %v652 = vld [vmem:[%s563 + $0x10] sm:$0xf]
      %v653 = vld [vmem:[%s563 + $0x14] sm:$0xf]
      %v654 = vld [vmem:[%s563 + $0x18] sm:$0xf]
      %v655 = vld [vmem:[%s563 + $0x1c] sm:$0xf]
      %v656 = vmax.bf16 %v640, %v648
      %v657 = vmax.bf16 %v641, %v649
      %v658 = vmax.bf16 %v642, %v650
      %v659 = vmax.bf16 %v643, %v651
      %v660 = vmax.bf16 %v644, %v652
      %v661 = vmax.bf16 %v645, %v653
      %v662 = vmax.bf16 %v646, %v654
      %v663 = vmax.bf16 %v647, %v655
      %v664 = vld [vmem:[%s569] sm:$0xf]
      %v665 = vld [vmem:[%s569 + $0x4] sm:$0xf]
      %v666 = vld [vmem:[%s569 + $0x8] sm:$0xf]
      %v667 = vld [vmem:[%s569 + $0xc] sm:$0xf]
      %v668 = vld [vmem:[%s569 + $0x10] sm:$0xf]
      %v669 = vld [vmem:[%s569 + $0x14] sm:$0xf]
      %v670 = vld [vmem:[%s569 + $0x18] sm:$0xf]
      %v671 = vld [vmem:[%s569 + $0x1c] sm:$0xf]
      %v672 = vmax.bf16 %v656, %v664
      %v673 = vmax.bf16 %v657, %v665
      %v674 = vmax.bf16 %v658, %v666
      %v675 = vmax.bf16 %v659, %v667
      %v676 = vmax.bf16 %v660, %v668
      %v677 = vmax.bf16 %v661, %v669
      %v678 = vmax.bf16 %v662, %v670
      %v679 = vmax.bf16 %v663, %v671
      %v680 = vld [vmem:[%s575] sm:$0xf]
      %v681 = vld [vmem:[%s575 + $0x4] sm:$0xf]
      %v682 = vld [vmem:[%s575 + $0x8] sm:$0xf]
      %v683 = vld [vmem:[%s575 + $0xc] sm:$0xf]
      %v684 = vld [vmem:[%s575 + $0x10] sm:$0xf]
      %v685 = vld [vmem:[%s575 + $0x14] sm:$0xf]
      %v686 = vld [vmem:[%s575 + $0x18] sm:$0xf]
      %v687 = vld [vmem:[%s575 + $0x1c] sm:$0xf]
      %v688 = vmax.bf16 %v672, %v680
      %v689 = vmax.bf16 %v673, %v681
      %v690 = vmax.bf16 %v674, %v682
      %v691 = vmax.bf16 %v675, %v683
      %v692 = vmax.bf16 %v676, %v684
      %v693 = vmax.bf16 %v677, %v685
      %v694 = vmax.bf16 %v678, %v686
      %v695 = vmax.bf16 %v679, %v687
      %v696 = vld [vmem:[%s581] sm:$0xf]
      %v697 = vld [vmem:[%s581 + $0x4] sm:$0xf]
      %v698 = vld [vmem:[%s581 + $0x8] sm:$0xf]
      %v699 = vld [vmem:[%s581 + $0xc] sm:$0xf]
      %v700 = vld [vmem:[%s581 + $0x10] sm:$0xf]
      %v701 = vld [vmem:[%s581 + $0x14] sm:$0xf]
      %v702 = vld [vmem:[%s581 + $0x18] sm:$0xf]
      %v703 = vld [vmem:[%s581 + $0x1c] sm:$0xf]
      %v704 = vmax.bf16 %v688, %v696
      %v705 = vmax.bf16 %v689, %v697
      %v706 = vmax.bf16 %v690, %v698
      %v707 = vmax.bf16 %v691, %v699
      %v708 = vmax.bf16 %v692, %v700
      %v709 = vmax.bf16 %v693, %v701
      %v710 = vmax.bf16 %v694, %v702
      %v711 = vmax.bf16 %v695, %v703
      %v712 = vld [vmem:[%s587] sm:$0xf]
      %v713 = vld [vmem:[%s587 + $0x4] sm:$0xf]
      %v714 = vld [vmem:[%s587 + $0x8] sm:$0xf]
      %v715 = vld [vmem:[%s587 + $0xc] sm:$0xf]
      %v716 = vld [vmem:[%s587 + $0x10] sm:$0xf]
      %v717 = vld [vmem:[%s587 + $0x14] sm:$0xf]
      %v718 = vld [vmem:[%s587 + $0x18] sm:$0xf]
      %v719 = vld [vmem:[%s587 + $0x1c] sm:$0xf]
      %v720 = vmax.bf16 %v704, %v712
      %v721 = vmax.bf16 %v705, %v713
      %v722 = vmax.bf16 %v706, %v714
      %v723 = vmax.bf16 %v707, %v715
      %v724 = vmax.bf16 %v708, %v716
      %v725 = vmax.bf16 %v709, %v717
      %v726 = vmax.bf16 %v710, %v718
      %v727 = vmax.bf16 %v711, %v719
      %v728 = vld [vmem:[%s593] sm:$0xf]
      %v729 = vld [vmem:[%s593 + $0x4] sm:$0xf]
      %v730 = vld [vmem:[%s593 + $0x8] sm:$0xf]
      %v731 = vld [vmem:[%s593 + $0xc] sm:$0xf]
      %v732 = vld [vmem:[%s593 + $0x10] sm:$0xf]
      %v733 = vld [vmem:[%s593 + $0x14] sm:$0xf]
      %v734 = vld [vmem:[%s593 + $0x18] sm:$0xf]
      %v735 = vld [vmem:[%s593 + $0x1c] sm:$0xf]
      %v736 = vmax.bf16 %v720, %v728
      %v737 = vmax.bf16 %v721, %v729
      %v738 = vmax.bf16 %v722, %v730
      %v739 = vmax.bf16 %v723, %v731
      %v740 = vmax.bf16 %v724, %v732
      %v741 = vmax.bf16 %v725, %v733
      %v742 = vmax.bf16 %v726, %v734
      %v743 = vmax.bf16 %v727, %v735
      %vm744 = vcmask 519168
      %745 = vst.msk [vmem:[%s599] sm:$0xf] %vm744, %v736
      %746 = vst.msk [vmem:[%s599 + $0x4] sm:$0xf] %vm744, %v737
      %747 = vst.msk [vmem:[%s599 + $0x8] sm:$0xf] %vm744, %v738
      %748 = vst.msk [vmem:[%s599 + $0xc] sm:$0xf] %vm744, %v739
      %749 = vst.msk [vmem:[%s599 + $0x10] sm:$0xf] %vm744, %v740
      %750 = vst.msk [vmem:[%s599 + $0x14] sm:$0xf] %vm744, %v741
      %751 = vst.msk [vmem:[%s599 + $0x18] sm:$0xf] %vm744, %v742
      %752 = vst.msk [vmem:[%s599 + $0x1c] sm:$0xf] %vm744, %v743
      %v753 = vld [vmem:[%s9] sm:$0xf]
      %v754 = vld [vmem:[%s9 + $0x4] sm:$0xf]
      %v755 = vld [vmem:[%s9 + $0x8] sm:$0xf]
      %v756 = vld [vmem:[%s9 + $0xc] sm:$0xf]
      %v757 = vld [vmem:[%s9 + $0x10] sm:$0xf]
      %v758 = vld [vmem:[%s9 + $0x14] sm:$0xf]
      %v759 = vld [vmem:[%s9 + $0x18] sm:$0xf]
      %v760 = vld [vmem:[%s9 + $0x1c] sm:$0xf]
      %v761 = vld [vmem:[%s10] sm:$0x1]
      %v763 = vlaneseq
      %v764 = vshrl.u32 %v763, 7
      %v765 = vsub.s32 0, %v764
      %v766 = vrot.slane %v761, %v765
      %v776 = vunpack.c.l.b16 %v736
      %v777 = vunpack.c.l.b16 %v737
      %v778 = vunpack.c.l.b16 %v738
      %v779 = vunpack.c.l.b16 %v739
      %v780 = vunpack.c.l.b16 %v740
      %v781 = vunpack.c.l.b16 %v741
      %v782 = vunpack.c.l.b16 %v742
      %v783 = vunpack.c.l.b16 %v743
      %v784 = vpack.c.b16 %v777, %v776
      %v785 = vpack.c.b16 %v779, %v778
      %v786 = vpack.c.b16 %v781, %v780
      %v787 = vpack.c.b16 %v783, %v782
      %v796 = vunpack.c.l.b16 %v753
      %v797 = vunpack.c.l.b16 %v754
      %v798 = vunpack.c.l.b16 %v755
      %v799 = vunpack.c.l.b16 %v756
      %v800 = vunpack.c.l.b16 %v757
      %v801 = vunpack.c.l.b16 %v758
      %v802 = vunpack.c.l.b16 %v759
      %v803 = vunpack.c.l.b16 %v760
      %v804 = vpack.c.b16 %v797, %v796
      %v805 = vpack.c.b16 %v799, %v798
      %v806 = vpack.c.b16 %v801, %v800
      %v807 = vpack.c.b16 %v803, %v802
      %vm812 = vcmask 523264
      %v814 = vsel %vm812, %v784, 0
      %v817 = vsel %vm812, %v785, 0
      %v820 = vsel %vm812, %v786, 0
      %v823 = vsel %vm812, %v787, 0
      %825 = vmatprep.subr.bf16.mxu0 0
      %826 = vmatpush1.bf16.msra.mxu0 0
      %827 = vmatprep.subr.bf16.mxu0 0
      %828 = vmatpush1.bf16.msra.mxu0 0
      %829 = vmatprep.subr.bf16.mxu0 0
      %830 = vmatpush1.bf16.msra.mxu0 0
      %831 = vmatprep.subr.bf16.mxu0 0
      %832 = vmatpush1.bf16.msra.mxu0 0
      %833 = vmatprep.subr.bf16.mxu0 0
      %834 = vmatpush1.bf16.msra.mxu0 %v807
      %835 = vmatprep.subr.bf16.mxu0 0
      %836 = vmatpush1.bf16.msra.mxu0 %v806
      %837 = vmatprep.subr.bf16.mxu0 0
      %838 = vmatpush1.bf16.msra.mxu0 %v805
      %839 = vmatprep.subr.bf16.mxu0 0
      %840 = vmatpush1.bf16.msra.mxu0 %v804
      %841 = vmatprep.subr.bf16.mxu0 0
      %842 = vmatpush2.bf16.msra.mxu0 0
      %843 = vmatprep.subr.bf16.mxu0 0
      %844 = vmatpush2.bf16.msra.mxu0 0
      %845 = vmatprep.subr.bf16.mxu0 0
      %846 = vmatpush2.bf16.msra.mxu0 0
      %847 = vmatprep.subr.bf16.mxu0 0
      %848 = vmatpush2.bf16.msra.mxu0 0
      %849 = vmatprep.subr.bf16.mxu0 0
      %850 = vmatpush2.bf16.msra.mxu0 0
      %851 = vmatprep.subr.bf16.mxu0 0
      %852 = vmatpush2.bf16.msra.mxu0 0
      %853 = vmatprep.subr.bf16.mxu0 0
      %854 = vmatpush2.bf16.msra.mxu0 0
      %855 = vmatprep.subr.bf16.mxu0 0
      %856 = vmatpush2.bf16.msra.mxu0 0
      %857 = vmatprep.mubr.bf16.mxu0 0
      %858 = vmatmul.mubr.bf16.gmra.mxu0 %v814
      %v859 = vpop.f32.mrf.mxu0
      %v860 = vadd.f32 %v766, %v859
      %v861 = vpop.f32.mrf.mxu0
      %v862 = vpop.f32.mrf.mxu0
      %v863 = vadd.f32 %v766, %v862
      %v864 = vpop.f32.mrf.mxu0
      %865 = vmatprep.mubr.bf16.mxu0 0
      %866 = vmatmul.mubr.bf16.gmra.mxu0 %v817
      %v867 = vpop.f32.mrf.mxu0
      %v868 = vadd.f32 %v766, %v867
      %v869 = vpop.f32.mrf.mxu0
      %v870 = vpop.f32.mrf.mxu0
      %v871 = vadd.f32 %v766, %v870
      %v872 = vpop.f32.mrf.mxu0
      %873 = vmatprep.mubr.bf16.mxu0 0
      %874 = vmatmul.mubr.bf16.gmra.mxu0 %v820
      %v875 = vpop.f32.mrf.mxu0
      %v876 = vadd.f32 %v766, %v875
      %v877 = vpop.f32.mrf.mxu0
      %v878 = vpop.f32.mrf.mxu0
      %v879 = vadd.f32 %v766, %v878
      %v880 = vpop.f32.mrf.mxu0
      %881 = vmatprep.mubr.bf16.mxu0 0
      %882 = vmatmul.mubr.bf16.gmra.mxu0 %v823
      %v883 = vpop.f32.mrf.mxu0
      %v884 = vadd.f32 %v766, %v883
      %v885 = vpop.f32.mrf.mxu0
      %v886 = vpop.f32.mrf.mxu0
      %v887 = vadd.f32 %v766, %v886
      %v888 = vpop.f32.mrf.mxu0
      %889 = vdwg.mxu0
      %v890 = vmax.f32 %v860, 0.0
      %v891 = vmax.f32 %v863, 0.0
      %v892 = vmax.f32 %v868, 0.0
      %v893 = vmax.f32 %v871, 0.0
      %v894 = vmax.f32 %v876, 0.0
      %v895 = vmax.f32 %v879, 0.0
      %v896 = vmax.f32 %v884, 0.0
      %v897 = vmax.f32 %v887, 0.0
      %v898 = vpack.c.bf16 %v891, %v890
      %v899 = vpack.c.bf16 %v893, %v892
      %v900 = vpack.c.bf16 %v895, %v894
      %v901 = vpack.c.bf16 %v897, %v896
      %v906 = vunpack.c.l.b16 %v898
      %v907 = vunpack.c.h.b16 %v898
      %v908 = vunpack.c.l.b16 %v899
      %v909 = vunpack.c.h.b16 %v899
      %v910 = vunpack.c.l.b16 %v900
      %v911 = vunpack.c.h.b16 %v900
      %v912 = vunpack.c.l.b16 %v901
      %v913 = vunpack.c.h.b16 %v901
      %v914 = vpack.c.b16 %v906, %v906
      %v915 = vpack.c.b16 %v907, %v907
      %v916 = vpack.c.b16 %v908, %v908
      %v917 = vpack.c.b16 %v909, %v909
      %v918 = vpack.c.b16 %v910, %v910
      %v919 = vpack.c.b16 %v911, %v911
      %v920 = vpack.c.b16 %v912, %v912
      %v921 = vpack.c.b16 %v913, %v913
      %930 = vst [vmem:[%s605] sm:$0xf] %v914
      %931 = vst [vmem:[%s605 + $0x4] sm:$0xf] %v915
      %932 = vst [vmem:[%s605 + $0x8] sm:$0xf] %v916
      %933 = vst [vmem:[%s605 + $0xc] sm:$0xf] %v917
      %934 = vst [vmem:[%s605 + $0x10] sm:$0xf] %v918
      %935 = vst [vmem:[%s605 + $0x14] sm:$0xf] %v919
      %936 = vst [vmem:[%s605 + $0x18] sm:$0xf] %v920
      %937 = vst [vmem:[%s605 + $0x1c] sm:$0xf] %v921
      %s938 = smul.u32 8, %s24
      %p939 = scmp.lt.s32.totalorder %s938, 15
      %s940 = scalar_select %p939, %s938, 15
      %s941 = smul.addr %s940, 4
      %s942 = scalar_lea.vmem %s11, %s941
      %s943 = smul.u32 8, %s24
      %p944 = scmp.lt.s32.totalorder %s943, 15
      %s945 = scalar_select %p944, %s943, 15
      %s946 = smul.addr %s945, 4
      %s947 = scalar_lea.vmem %s12, %s946
      // Predicated region
      $region65: #{orientation_predictor_forward.5} parent=63 // pred_check
        %p948 = pneg %p318
      $region66: #{orientation_predictor_forward.5} parent=63 // pred_check_branch
        %950 = sbr.rel (%p948) target = $region68
      $region67: #{orientation_predictor_forward.5} parent=63 // pred_region
        %s951 = smul.u32 8, %s24
      $region68: #{orientation_predictor_forward.5} parent=63 // pred_fallthru
        _
      // Predicated region
      $region69: #{orientation_predictor_forward.5} parent=63 // pred_check
        %p952 = pneg %p344
      $region70: #{orientation_predictor_forward.5} parent=63 // pred_check_branch
        %954 = sbr.rel (%p952) target = $region72
      $region71: #{orientation_predictor_forward.5} parent=63 // pred_region
        %s955 = smul.u32 8, %s24
      $region72: #{orientation_predictor_forward.5} parent=63 // pred_fallthru
        _
    $region64: #{orientation_predictor_forward.5} parent=5 // pred_fallthru
      _
    %p956 = scmp.le.s32.totalorder 2, %s19
    // Predicated region
    $region73: #{orientation_predictor_forward.5} parent=5 // pred_check
      %p957 = pneg %p956
    $region74: #{orientation_predictor_forward.5} parent=5 // pred_check_branch
      %959 = sbr.rel (%p957) target = $region76
    $region75: #{orientation_predictor_forward.5} parent=5 // pred_region
      %s960 = ssub.s32 %s19, 2
      // Predicated region
      $region77: #{orientation_predictor_forward.5} parent=75 // pred_check
        %p961 = pneg %p324
      $region78: #{orientation_predictor_forward.5} parent=75 // pred_check_branch
        %963 = sbr.rel (%p961) target = $region80
      $region79: #{orientation_predictor_forward.5} parent=75 // pred_region
        %s964 = smul.u32 8, %s25
        %p965 = scmp.lt.s32.totalorder %s964, 15
        %s966 = scalar_select %p965, %s964, 15
        %s967 = smul.addr %s966, 4
        %s968 = scalar_lea.vmem %s11, %s967
      $region80: #{orientation_predictor_forward.5} parent=75 // pred_fallthru
        _
      // Predicated region
      $region81: #{orientation_predictor_forward.5} parent=75 // pred_check
        %p969 = pneg %p350
      $region82: #{orientation_predictor_forward.5} parent=75 // pred_check_branch
        %971 = sbr.rel (%p969) target = $region84
      $region83: #{orientation_predictor_forward.5} parent=75 // pred_region
        %s972 = smul.u32 8, %s25
        %p973 = scmp.lt.s32.totalorder %s972, 15
        %s974 = scalar_select %p973, %s972, 15
        %s975 = smul.addr %s974, 4
        %s976 = scalar_lea.vmem %s12, %s975
      $region84: #{orientation_predictor_forward.5} parent=75 // pred_fallthru
        _
    $region76: #{orientation_predictor_forward.5} parent=5 // pred_fallthru
      _
  $region6: #{orientation_predictor_forward.5} parent=0 // loop_footer
    %s23 = sadd.s32 1, %s19
  $region7: #{orientation_predictor_forward.5} parent=0 // loop_footer_branch
    %18 = sbr.rel target = $region3
  $region8: #{orientation_predictor_forward.5} parent=0 // loop_exit
    _

// kernel: mul.21
$region0: #{mul.21}
  %s0 = inlined_call_operand.vmem [shape: f32[128], index: 0, kind: input, shape index: {}]
  %s1 = inlined_call_operand.vmem [shape: f32[32,4], index: 1, kind: output, shape index: {}]
  $region1: #{mul.21} parent=0
    #allocation0 [shape = 'u8[4096]{0}', space=vmem, size = 0x1000, scoped, tag = 'scoped mem for input reshape']
    %s3 = sshll.u32 1, 1
    %s4 = ssub.s32 %s3, 1
    %v5 = vld [vmem:[%s0] sm:%s4]
    %6 = vst [vmem:[#allocation0] sm:%s4] %v5
    %v7 = vld [vmem:[#allocation0] sm:$0x1]
    %vm8 = vcmask 31744
    %9 = vst.msk [vmem:[%s1] sm:$0x1] %vm8, %v7
    %v10 = vld [vmem:[#allocation0] sm:$0x1]
    %11 = vrot.lane.b32.xlu0 %v10, 124
    %v12 = vpop.permute.xlu0 %11
    %vm13 = vcmask 31744
    %s14 = scalar_lea.vmem %s1, 1
    %15 = vst.msk [vmem:[%s14] sm:$0x1] %vm13, %v12
    %v16 = vld [vmem:[#allocation0] sm:$0x1]
    %17 = vrot.lane.b32.xlu0 %v16, 120
    %v18 = vpop.permute.xlu0 %17
    %vm19 = vcmask 31744
    %s20 = scalar_lea.vmem %s1, 2
    %21 = vst.msk [vmem:[%s20] sm:$0x1] %vm19, %v18
    %v22 = vld [vmem:[#allocation0] sm:$0x1]
    %23 = vrot.lane.b32.xlu0 %v22, 116
    %v24 = vpop.permute.xlu0 %23
    %vm25 = vcmask 31744
    %s26 = scalar_lea.vmem %s1, 3
    %27 = vst.msk [vmem:[%s26] sm:$0x1] %vm25, %v24
    %v28 = vld [vmem:[#allocation0] sm:$0x1]
    %29 = vrot.lane.b32.xlu0 %v28, 112
    %v30 = vpop.permute.xlu0 %29
    %vm31 = vcmask 31744
    %s32 = scalar_lea.vmem %s1, 4
    %33 = vst.msk [vmem:[%s32] sm:$0x1] %vm31, %v30
    %v34 = vld [vmem:[#allocation0] sm:$0x1]
    %35 = vrot.lane.b32.xlu0 %v34, 108
    %v36 = vpop.permute.xlu0 %35
    %vm37 = vcmask 31744
    %s38 = scalar_lea.vmem %s1, 5
    %39 = vst.msk [vmem:[%s38] sm:$0x1] %vm37, %v36
    %v40 = vld [vmem:[#allocation0] sm:$0x1]
    %41 = vrot.lane.b32.xlu0 %v40, 104
    %v42 = vpop.permute.xlu0 %41
    %vm43 = vcmask 31744
    %s44 = scalar_lea.vmem %s1, 6
    %45 = vst.msk [vmem:[%s44] sm:$0x1] %vm43, %v42
    %v46 = vld [vmem:[#allocation0] sm:$0x1]
    %47 = vrot.lane.b32.xlu0 %v46, 100
    %v48 = vpop.permute.xlu0 %47
    %vm49 = vcmask 31744
    %s50 = scalar_lea.vmem %s1, 7
    %51 = vst.msk [vmem:[%s50] sm:$0x1] %vm49, %v48
    %v52 = vld [vmem:[#allocation0] sm:$0x1]
    %53 = vrot.lane.b32.xlu0 %v52, 96
    %v54 = vpop.permute.xlu0 %53
    %vm55 = vcmask 31744
    %s56 = scalar_lea.vmem %s1, 8
    %57 = vst.msk [vmem:[%s56] sm:$0x1] %vm55, %v54
    %v58 = vld [vmem:[#allocation0] sm:$0x1]
    %59 = vrot.lane.b32.xlu0 %v58, 92
    %v60 = vpop.permute.xlu0 %59
    %vm61 = vcmask 31744
    %s62 = scalar_lea.vmem %s1, 9
    %63 = vst.msk [vmem:[%s62] sm:$0x1] %vm61, %v60
    %v64 = vld [vmem:[#allocation0] sm:$0x1]
    %65 = vrot.lane.b32.xlu0 %v64, 88
    %v66 = vpop.permute.xlu0 %65
    %vm67 = vcmask 31744
    %s68 = scalar_lea.vmem %s1, 10
    %69 = vst.msk [vmem:[%s68] sm:$0x1] %vm67, %v66
    %v70 = vld [vmem:[#allocation0] sm:$0x1]
    %71 = vrot.lane.b32.xlu0 %v70, 84
    %v72 = vpop.permute.xlu0 %71
    %vm73 = vcmask 31744
    %s74 = scalar_lea.vmem %s1, 11
    %75 = vst.msk [vmem:[%s74] sm:$0x1] %vm73, %v72
    %v76 = vld [vmem:[#allocation0] sm:$0x1]
    %77 = vrot.lane.b32.xlu0 %v76, 80
    %v78 = vpop.permute.xlu0 %77
    %vm79 = vcmask 31744
    %s80 = scalar_lea.vmem %s1, 12
    %81 = vst.msk [vmem:[%s80] sm:$0x1] %vm79, %v78
    %v82 = vld [vmem:[#allocation0] sm:$0x1]
    %83 = vrot.lane.b32.xlu0 %v82, 76
    %v84 = vpop.permute.xlu0 %83
    %vm85 = vcmask 31744
    %s86 = scalar_lea.vmem %s1, 13
    %87 = vst.msk [vmem:[%s86] sm:$0x1] %vm85, %v84
    %v88 = vld [vmem:[#allocation0] sm:$0x1]
    %89 = vrot.lane.b32.xlu0 %v88, 72
    %v90 = vpop.permute.xlu0 %89
    %vm91 = vcmask 31744
    %s92 = scalar_lea.vmem %s1, 14
    %93 = vst.msk [vmem:[%s92] sm:$0x1] %vm91, %v90
    %v94 = vld [vmem:[#allocation0] sm:$0x1]
    %95 = vrot.lane.b32.xlu0 %v94, 68
    %v96 = vpop.permute.xlu0 %95
    %vm97 = vcmask 31744
    %s98 = scalar_lea.vmem %s1, 15
    %99 = vst.msk [vmem:[%s98] sm:$0x1] %vm97, %v96
    %v100 = vld [vmem:[#allocation0] sm:$0x1]
    %101 = vrot.lane.b32.xlu0 %v100, 64
    %v102 = vpop.permute.xlu0 %101
    %vm103 = vcmask 31744
    %s104 = scalar_lea.vmem %s1, 16
    %105 = vst.msk [vmem:[%s104] sm:$0x1] %vm103, %v102
    %v106 = vld [vmem:[#allocation0] sm:$0x1]
    %107 = vrot.lane.b32.xlu0 %v106, 60
    %v108 = vpop.permute.xlu0 %107
    %vm109 = vcmask 31744
    %s110 = scalar_lea.vmem %s1, 17
    %111 = vst.msk [vmem:[%s110] sm:$0x1] %vm109, %v108
    %v112 = vld [vmem:[#allocation0] sm:$0x1]
    %113 = vrot.lane.b32.xlu0 %v112, 56
    %v114 = vpop.permute.xlu0 %113
    %vm115 = vcmask 31744
    %s116 = scalar_lea.vmem %s1, 18
    %117 = vst.msk [vmem:[%s116] sm:$0x1] %vm115, %v114
    %v118 = vld [vmem:[#allocation0] sm:$0x1]
    %119 = vrot.lane.b32.xlu0 %v118, 52
    %v120 = vpop.permute.xlu0 %119
    %vm121 = vcmask 31744
    %s122 = scalar_lea.vmem %s1, 19
    %123 = vst.msk [vmem:[%s122] sm:$0x1] %vm121, %v120
    %v124 = vld [vmem:[#allocation0] sm:$0x1]
    %125 = vrot.lane.b32.xlu0 %v124, 48
    %v126 = vpop.permute.xlu0 %125
    %vm127 = vcmask 31744
    %s128 = scalar_lea.vmem %s1, 20
    %129 = vst.msk [vmem:[%s128] sm:$0x1] %vm127, %v126
    %v130 = vld [vmem:[#allocation0] sm:$0x1]
    %131 = vrot.lane.b32.xlu0 %v130, 44
    %v132 = vpop.permute.xlu0 %131
    %vm133 = vcmask 31744
    %s134 = scalar_lea.vmem %s1, 21
    %135 = vst.msk [vmem:[%s134] sm:$0x1] %vm133, %v132
    %v136 = vld [vmem:[#allocation0] sm:$0x1]
    %137 = vrot.lane.b32.xlu0 %v136, 40
    %v138 = vpop.permute.xlu0 %137
    %vm139 = vcmask 31744
    %s140 = scalar_lea.vmem %s1, 22
    %141 = vst.msk [vmem:[%s140] sm:$0x1] %vm139, %v138
    %v142 = vld [vmem:[#allocation0] sm:$0x1]
    %143 = vrot.lane.b32.xlu0 %v142, 36
    %v144 = vpop.permute.xlu0 %143
    %vm145 = vcmask 31744
    %s146 = scalar_lea.vmem %s1, 23
    %147 = vst.msk [vmem:[%s146] sm:$0x1] %vm145, %v144
    %v148 = vld [vmem:[#allocation0] sm:$0x1]
    %149 = vrot.lane.b32.xlu0 %v148, 32
    %v150 = vpop.permute.xlu0 %149
    %vm151 = vcmask 31744
    %s152 = scalar_lea.vmem %s1, 24
    %153 = vst.msk [vmem:[%s152] sm:$0x1] %vm151, %v150
    %v154 = vld [vmem:[#allocation0] sm:$0x1]
    %155 = vrot.lane.b32.xlu0 %v154, 28
    %v156 = vpop.permute.xlu0 %155
    %vm157 = vcmask 31744
    %s158 = scalar_lea.vmem %s1, 25
    %159 = vst.msk [vmem:[%s158] sm:$0x1] %vm157, %v156
    %v160 = vld [vmem:[#allocation0] sm:$0x1]
    %161 = vrot.lane.b32.xlu0 %v160, 24
    %v162 = vpop.permute.xlu0 %161
    %vm163 = vcmask 31744
    %s164 = scalar_lea.vmem %s1, 26
    %165 = vst.msk [vmem:[%s164] sm:$0x1] %vm163, %v162
    %v166 = vld [vmem:[#allocation0] sm:$0x1]
    %167 = vrot.lane.b32.xlu0 %v166, 20
    %v168 = vpop.permute.xlu0 %167
    %vm169 = vcmask 31744
    %s170 = scalar_lea.vmem %s1, 27
    %171 = vst.msk [vmem:[%s170] sm:$0x1] %vm169, %v168
    %v172 = vld [vmem:[#allocation0] sm:$0x1]
    %173 = vrot.lane.b32.xlu0 %v172, 16
    %v174 = vpop.permute.xlu0 %173
    %vm175 = vcmask 31744
    %s176 = scalar_lea.vmem %s1, 28
    %177 = vst.msk [vmem:[%s176] sm:$0x1] %vm175, %v174
    %v178 = vld [vmem:[#allocation0] sm:$0x1]
    %179 = vrot.lane.b32.xlu0 %v178, 12
    %v180 = vpop.permute.xlu0 %179
    %vm181 = vcmask 31744
    %s182 = scalar_lea.vmem %s1, 29
    %183 = vst.msk [vmem:[%s182] sm:$0x1] %vm181, %v180
    %v184 = vld [vmem:[#allocation0] sm:$0x1]
    %185 = vrot.lane.b32.xlu0 %v184, 8
    %v186 = vpop.permute.xlu0 %185
    %vm187 = vcmask 31744
    %s188 = scalar_lea.vmem %s1, 30
    %189 = vst.msk [vmem:[%s188] sm:$0x1] %vm187, %v186
    %v190 = vld [vmem:[#allocation0] sm:$0x1]
    %191 = vrot.lane.b32.xlu0 %v190, 4
    %v192 = vpop.permute.xlu0 %191
    %vm193 = vcmask 31744
    %s194 = scalar_lea.vmem %s1, 31
    %195 = vst.msk [vmem:[%s194] sm:$0x1] %vm193, %v192

// kernel: orientation_predictor_forward.7
$region0: #{orientation_predictor_forward.7}
  #allocation0 [shape = 'u32[]', space=smem, size = 0x4, offset = 0x4, fixed_abs, tag = 'smem constant byte address 0x4 - core index']
  #allocation1 [shape = 'u32[144,128]{1,0:T(1,128)}', space=vmem, size = 0x12000, scoped, tag = 'internal scratch']
  #allocation2 [shape = 'f32[2,256]{1,0:T(2,128)}', space=vmem, size = 0x800, scoped, tag = 'scratch operand']
  %s0 = inlined_call_operand.vmem [shape: bf16[2,64,256], index: 0, kind: input, shape index: {}]
  %s1 = inlined_call_operand.vmem [shape: f32[256,4], index: 1, kind: input, shape index: {}]
  %s2 = inlined_call_operand.vmem [shape: f32[1,4], index: 2, kind: input, shape index: {}]
  %s3 = inlined_call_operand.hbm [shape: f32[2,4], index: 3, kind: output, shape index: {0}]
  %s4 = inlined_call_operand.vmem [shape: s32[2,1], index: 4, kind: output, shape index: {1}]
  %5 = xla_tuple %s3, %s4
  %s6 = sld [smem:[#allocation0]]
  $region38: #{orientation_predictor_forward.7} parent=0
    _
  %s8 = ssub.s32 1, %s6
  %s9 = scalar_select 0, %s8, %s6
  $region1: #{orientation_predictor_forward.7} parent=0
    #allocation3 [shape = 'u8[1024]{0}', space=vmem, size = 0x400, scoped, tag = 'output window, operand 0, single buffered']
    #allocation4 [shape = 's32[1]{0}', space=sflag, size = 0x4, scoped, tag = 'scoped memory for orientation_predictor_forward.7']
    %10 = vsyncpa [#allocation4], 0
    // Predicated region
    $region2: #{orientation_predictor_forward.7} parent=1 // pred_check
      _
    $region3: #{orientation_predictor_forward.7} parent=1 // pred_check_branch
      %12 = sbr.rel (0) target = $region5
    $region4: #{orientation_predictor_forward.7} parent=1 // pred_region
      _
    $region5: #{orientation_predictor_forward.7} parent=1 // pred_fallthru
      _
    // Predicated region
    $region6: #{orientation_predictor_forward.7} parent=1 // pred_check
      _
    $region7: #{orientation_predictor_forward.7} parent=1 // pred_check_branch
      %14 = sbr.rel (0) target = $region9
    $region8: #{orientation_predictor_forward.7} parent=1 // pred_region
      _
    $region9: #{orientation_predictor_forward.7} parent=1 // pred_fallthru
      _
    // Predicated region
    $region10: #{orientation_predictor_forward.7} parent=1 // pred_check
      _
    $region11: #{orientation_predictor_forward.7} parent=1 // pred_check_branch
      %16 = sbr.rel (0) target = $region13
    $region12: #{orientation_predictor_forward.7} parent=1 // pred_region
      _
    $region13: #{orientation_predictor_forward.7} parent=1 // pred_fallthru
      _
    %p17 = scmp.eq.s32.totalorder 0, 0
    // Predicated region
    $region14: #{orientation_predictor_forward.7} parent=1 // pred_check
      %p18 = pneg %p17
    $region15: #{orientation_predictor_forward.7} parent=1 // pred_check_branch
      %20 = sbr.rel (%p18) target = $region17
    $region16: #{orientation_predictor_forward.7} parent=1 // pred_region
      %21 = vst [vmem:[#allocation2] sm:$0xf] 0.0
    $region17: #{orientation_predictor_forward.7} parent=1 // pred_fallthru
      _
    %v22 = vld [vmem:[#allocation2] sm:$0xf]
    %v23 = vld [vmem:[%s0] sm:$0xff]
    %v24 = vld [vmem:[%s0 + $0x8] sm:$0xff]
    %v25 = vld [vmem:[%s0 + $0x10] sm:$0xff]
    %v26 = vld [vmem:[%s0 + $0x18] sm:$0xff]
    %v27 = vld [vmem:[%s0 + $0x20] sm:$0xff]
    %v28 = vld [vmem:[%s0 + $0x28] sm:$0xff]
    %v29 = vld [vmem:[%s0 + $0x30] sm:$0xff]
    %v30 = vld [vmem:[%s0 + $0x38] sm:$0xff]
    %v31 = vld [vmem:[%s0 + $0x40] sm:$0xff]
    %v32 = vld [vmem:[%s0 + $0x48] sm:$0xff]
    %v33 = vld [vmem:[%s0 + $0x50] sm:$0xff]
    %v34 = vld [vmem:[%s0 + $0x58] sm:$0xff]
    %v35 = vld [vmem:[%s0 + $0x60] sm:$0xff]
    %v36 = vld [vmem:[%s0 + $0x68] sm:$0xff]
    %v37 = vld [vmem:[%s0 + $0x70] sm:$0xff]
    %v38 = vld [vmem:[%s0 + $0x78] sm:$0xff]
    %v39 = vunpack.c.l.bf16 %v23
    %v40 = vunpack.c.h.bf16 %v23
    %v41 = vunpack.c.l.bf16 %v24
    %v42 = vunpack.c.h.bf16 %v24
    %v43 = vunpack.c.l.bf16 %v25
    %v44 = vunpack.c.h.bf16 %v25
    %v45 = vunpack.c.l.bf16 %v26
    %v46 = vunpack.c.h.bf16 %v26
    %v47 = vunpack.c.l.bf16 %v27
    %v48 = vunpack.c.h.bf16 %v27
    %v49 = vunpack.c.l.bf16 %v28
    %v50 = vunpack.c.h.bf16 %v28
    %v51 = vunpack.c.l.bf16 %v29
    %v52 = vunpack.c.h.bf16 %v29
    %v53 = vunpack.c.l.bf16 %v30
    %v54 = vunpack.c.h.bf16 %v30
    %v55 = vunpack.c.l.bf16 %v31
    %v56 = vunpack.c.h.bf16 %v31
    %v57 = vunpack.c.l.bf16 %v32
    %v58 = vunpack.c.h.bf16 %v32
    %v59 = vunpack.c.l.bf16 %v33
    %v60 = vunpack.c.h.bf16 %v33
    %v61 = vunpack.c.l.bf16 %v34
    %v62 = vunpack.c.h.bf16 %v34
    %v63 = vunpack.c.l.bf16 %v35
    %v64 = vunpack.c.h.bf16 %v35
    %v65 = vunpack.c.l.bf16 %v36
    %v66 = vunpack.c.h.bf16 %v36
    %v67 = vunpack.c.l.bf16 %v37
    %v68 = vunpack.c.h.bf16 %v37
    %v69 = vunpack.c.l.bf16 %v38
    %v70 = vunpack.c.h.bf16 %v38
    %v71 = vadd.f32 %v39, %v41
    %v72 = vadd.f32 %v71, %v43
    %v73 = vadd.f32 %v72, %v45
    %v74 = vadd.f32 %v73, %v47
    %v75 = vadd.f32 %v74, %v49
    %v76 = vadd.f32 %v75, %v51
    %v77 = vadd.f32 %v76, %v53
    %v78 = vrot.slane %v77, 4
    %v79 = vadd.f32 %v77, %v78
    %v80 = vrot.slane %v79, 2
    %v81 = vadd.f32 %v79, %v80
    %v82 = vrot.slane %v81, 1
    %v83 = vadd.f32 %v81, %v82
    %v84 = vadd.f32 %v40, %v42
    %v85 = vadd.f32 %v84, %v44
    %v86 = vadd.f32 %v85, %v46
    %v87 = vadd.f32 %v86, %v48
    %v88 = vadd.f32 %v87, %v50
    %v89 = vadd.f32 %v88, %v52
    %v90 = vadd.f32 %v89, %v54
    %v91 = vrot.slane %v90, 4
    %v92 = vadd.f32 %v90, %v91
    %v93 = vrot.slane %v92, 2
    %v94 = vadd.f32 %v92, %v93
    %v95 = vrot.slane %v94, 1
    %v96 = vadd.f32 %v94, %v95
    %v97 = vadd.f32 %v55, %v57
    %v98 = vadd.f32 %v97, %v59
    %v99 = vadd.f32 %v98, %v61
    %v100 = vadd.f32 %v99, %v63
    %v101 = vadd.f32 %v100, %v65
    %v102 = vadd.f32 %v101, %v67
    %v103 = vadd.f32 %v102, %v69
    %v104 = vrot.slane %v103, 4
    %v105 = vadd.f32 %v103, %v104
    %v106 = vrot.slane %v105, 2
    %v107 = vadd.f32 %v105, %v106
    %v108 = vrot.slane %v107, 1
    %v109 = vadd.f32 %v107, %v108
    %v110 = vadd.f32 %v56, %v58
    %v111 = vadd.f32 %v110, %v60
    %v112 = vadd.f32 %v111, %v62
    %v113 = vadd.f32 %v112, %v64
    %v114 = vadd.f32 %v113, %v66
    %v115 = vadd.f32 %v114, %v68
    %v116 = vadd.f32 %v115, %v70
    %v117 = vrot.slane %v116, 4
    %v118 = vadd.f32 %v116, %v117
    %v119 = vrot.slane %v118, 2
    %v120 = vadd.f32 %v118, %v119
    %v121 = vrot.slane %v120, 1
    %v122 = vadd.f32 %v120, %v121
    %v127 = vcombine.low %v83, %v96
    %v129 = vunpack.c.l.s4 1983009808
    %v130 = vunpack.c.0.s8 %v129
    %v131 = vlaneseq
    %v132 = vshrl.u32 %v131, 7
    %v133 = vsub.s32 %v130, %v132
    %v134 = vrot.slane %v127, %v133
    %v135 = vcombine.low %v109, %v122
    %v137 = vunpack.c.l.s4 1983009808
    %v138 = vunpack.c.0.s8 %v137
    %v139 = vlaneseq
    %v140 = vshrl.u32 %v139, 7
    %v141 = vsub.s32 %v138, %v140
    %v142 = vrot.slane %v135, %v141
    %vm143 = vcmask 1044484
    %v144 = vsel %vm143, %v134, %v134
    %vm145 = vcmask 1046534
    %v146 = vsel %vm145, %v134, %v144
    %v147 = vrot.slane %v142, 7
    %vm148 = vcmask 1041409
    %v149 = vsel %vm148, %v147, %v146
    %vm150 = vcmask 1043459
    %v151 = vsel %vm150, %v147, %v149
    %vm152 = vcmask 1045509
    %v153 = vsel %vm152, %v147, %v151
    %vm154 = vcmask 1047559
    %v155 = vsel %vm154, %v147, %v153
    %v157 = vadd.f32 %v22, %v155
    %158 = vst [vmem:[#allocation2] sm:$0xf] %v157
    // Predicated region
    $region18: #{orientation_predictor_forward.7} parent=1 // pred_check
      %p159 = pneg %p17
    $region19: #{orientation_predictor_forward.7} parent=1 // pred_check_branch
      %161 = sbr.rel (%p159) target = $region21
    $region20: #{orientation_predictor_forward.7} parent=1 // pred_region
      %v162 = vld [vmem:[#allocation2] sm:$0xf]
      %v163 = vmul.f32 %v162, 0.015625
      %v164 = vld [vmem:[%s1] sm:$0xff]
      %v165 = vld [vmem:[%s1 + $0x8] sm:$0xff]
      %v166 = vld [vmem:[%s1 + $0x10] sm:$0xff]
      %v167 = vld [vmem:[%s1 + $0x18] sm:$0xff]
      %v168 = vld [vmem:[%s1 + $0x20] sm:$0xff]
      %v169 = vld [vmem:[%s1 + $0x28] sm:$0xff]
      %v170 = vld [vmem:[%s1 + $0x30] sm:$0xff]
      %v171 = vld [vmem:[%s1 + $0x38] sm:$0xff]
      %v172 = vld [vmem:[%s1 + $0x40] sm:$0xff]
      %v173 = vld [vmem:[%s1 + $0x48] sm:$0xff]
      %v174 = vld [vmem:[%s1 + $0x50] sm:$0xff]
      %v175 = vld [vmem:[%s1 + $0x58] sm:$0xff]
      %v176 = vld [vmem:[%s1 + $0x60] sm:$0xff]
      %v177 = vld [vmem:[%s1 + $0x68] sm:$0xff]
      %v178 = vld [vmem:[%s1 + $0x70] sm:$0xff]
      %v179 = vld [vmem:[%s1 + $0x78] sm:$0xff]
      %v180 = vld [vmem:[%s1 + $0x80] sm:$0xff]
      %v181 = vld [vmem:[%s1 + $0x88] sm:$0xff]
      %v182 = vld [vmem:[%s1 + $0x90] sm:$0xff]
      %v183 = vld [vmem:[%s1 + $0x98] sm:$0xff]
      %v184 = vld [vmem:[%s1 + $0xa0] sm:$0xff]
      %v185 = vld [vmem:[%s1 + $0xa8] sm:$0xff]
      %v186 = vld [vmem:[%s1 + $0xb0] sm:$0xff]
      %v187 = vld [vmem:[%s1 + $0xb8] sm:$0xff]
      %v188 = vld [vmem:[%s1 + $0xc0] sm:$0xff]
      %v189 = vld [vmem:[%s1 + $0xc8] sm:$0xff]
      %v190 = vld [vmem:[%s1 + $0xd0] sm:$0xff]
      %v191 = vld [vmem:[%s1 + $0xd8] sm:$0xff]
      %v192 = vld [vmem:[%s1 + $0xe0] sm:$0xff]
      %v193 = vld [vmem:[%s1 + $0xe8] sm:$0xff]
      %v194 = vld [vmem:[%s1 + $0xf0] sm:$0xff]
      %v195 = vld [vmem:[%s1 + $0xf8] sm:$0xff]
      %v196 = vld [vmem:[%s2] sm:$0x1]
      %v198 = vlaneseq
      %v199 = vshrl.u32 %v198, 7
      %v200 = vsub.s32 0, %v199
      %v201 = vrot.slane %v196, %v200
      %v205 = vunpack.c.l.s4 1983009808
      %v206 = vunpack.c.0.s8 %v205
      %v207 = vlaneseq
      %v208 = vshrl.u32 %v207, 7
      %v209 = vsub.s32 %v206, %v208
      %v210 = vrot.slane %v163, %v209
      %v211 = vcombine.high %v210, %v210
      %214 = vmatprep.subr.mxu0 0.0
      %215 = vmatpush1.msra.mxu0 %v179
      %216 = vmatprep.subr.mxu0 0.0
      %217 = vmatpush1.msra.mxu0 %v178
      %218 = vmatprep.subr.mxu0 0.0
      %219 = vmatpush1.msra.mxu0 %v177
      %220 = vmatprep.subr.mxu0 0.0
      %221 = vmatpush1.msra.mxu0 %v176
      %222 = vmatprep.subr.mxu0 0.0
      %223 = vmatpush1.msra.mxu0 %v175
      %224 = vmatprep.subr.mxu0 0.0
      %225 = vmatpush1.msra.mxu0 %v174
      %226 = vmatprep.subr.mxu0 0.0
      %227 = vmatpush1.msra.mxu0 %v173
      %228 = vmatprep.subr.mxu0 0.0
      %229 = vmatpush1.msra.mxu0 %v172
      %230 = vmatprep.subr.mxu0 0.0
      %231 = vmatpush1.msra.mxu0 %v171
      %232 = vmatprep.subr.mxu0 0.0
      %233 = vmatpush1.msra.mxu0 %v170
      %234 = vmatprep.subr.mxu0 0.0
      %235 = vmatpush1.msra.mxu0 %v169
      %236 = vmatprep.subr.mxu0 0.0
      %237 = vmatpush1.msra.mxu0 %v168
      %238 = vmatprep.subr.mxu0 0.0
      %239 = vmatpush1.msra.mxu0 %v167
      %240 = vmatprep.subr.mxu0 0.0
      %241 = vmatpush1.msra.mxu0 %v166
      %242 = vmatprep.subr.mxu0 0.0
      %243 = vmatpush1.msra.mxu0 %v165
      %244 = vmatprep.subr.mxu0 0.0
      %245 = vmatpush1.msra.mxu0 %v164
      %246 = vmatprep.subr.mxu0 0.0
      %247 = vmatpush2.msra.mxu0 %v195
      %248 = vmatprep.subr.mxu0 0.0
      %249 = vmatpush2.msra.mxu0 %v194
      %250 = vmatprep.subr.mxu0 0.0
      %251 = vmatpush2.msra.mxu0 %v193
      %252 = vmatprep.subr.mxu0 0.0
      %253 = vmatpush2.msra.mxu0 %v192
      %254 = vmatprep.subr.mxu0 0.0
      %255 = vmatpush2.msra.mxu0 %v191
      %256 = vmatprep.subr.mxu0 0.0
      %257 = vmatpush2.msra.mxu0 %v190
      %258 = vmatprep.subr.mxu0 0.0
      %259 = vmatpush2.msra.mxu0 %v189
      %260 = vmatprep.subr.mxu0 0.0
      %261 = vmatpush2.msra.mxu0 %v188
      %262 = vmatprep.subr.mxu0 0.0
      %263 = vmatpush2.msra.mxu0 %v187
      %264 = vmatprep.subr.mxu0 0.0
      %265 = vmatpush2.msra.mxu0 %v186
      %266 = vmatprep.subr.mxu0 0.0
      %267 = vmatpush2.msra.mxu0 %v185
      %268 = vmatprep.subr.mxu0 0.0
      %269 = vmatpush2.msra.mxu0 %v184
      %270 = vmatprep.subr.mxu0 0.0
      %271 = vmatpush2.msra.mxu0 %v183
      %272 = vmatprep.subr.mxu0 0.0
      %273 = vmatpush2.msra.mxu0 %v182
      %274 = vmatprep.subr.mxu0 0.0
      %275 = vmatpush2.msra.mxu0 %v181
      %276 = vmatprep.subr.mxu0 0.0
      %277 = vmatpush2.msra.mxu0 %v180
      %278 = vmatprep.mubr.f32.mxu0 %v211
      %279 = vmatmul.mubr.f32.gmra.mxu0 %v210
      %v280 = vpop.f32.mrf.mxu0
      %v281 = vadd.f32 %v201, %v280
      %v282 = vpop.f32.mrf.mxu0
      %283 = vdwg.mxu0
      %vm284 = vcmask 25600
      %v285 = vsel %vm284, %v281, -inf
      %286 = vmax.xlane.f32.xlu0 %v285
      %v287 = vpop.xlane.xlu0 %286
      %v288 = vsub.f32 %v281, %v287
      %v289 = vmul.f32 %v288, 1.442695
      %v290 = vpow.pop %v289
      %v291 = vsel %vm284, %v290, 0.0
      %292 = vadd.xlane.f32.xlu0 %v291
      %v293 = vpop.xlane.xlu0 %292
      %v294 = vrcp.pop %v293
      %v295 = vmul.f32 %v290, %v294
      %296 = vst.msk [vmem:[#allocation3] sm:$0x3] %vm284, %v295
      %v297 = vlaneseq
      %v298 = vand.u32 %v297, 127
      %vm299 = vcmp.ge.f32.partialorder %v281, %v287
      %v300 = vsel %vm299, %v298, 4
      %v301 = vsel %vm284, %v300, 2147483647
      %v302 = vand.u32 %v301, 65535
      %v303 = vshra.s32 %v301, 16
      %v304 = vcvt.s32.f32 %v302
      %v305 = vcvt.s32.f32 %v303
      %306 = vmin.xlane.f32.xlu0 %v305
      %v307 = vpop.xlane.xlu0 %306
      %vm308 = vcmp.eq.f32.partialorder %v305, %v307
      %v309 = vsel %vm308, %v304, inf
      %310 = vmin.xlane.f32.xlu0 %v309
      %v311 = vpop.xlane.xlu0 %310
      %v312 = vcvt.f32.s32 %v311
      %v313 = vcvt.f32.s32 %v307
      %v314 = vshll.u32 %v313, 16
      %v315 = vadd.s32 %v314, %v312
      %v316 = vmul.u32 %v315, 90
      %vm317 = vcmask 1024
      %318 = vst.msk [vmem:[%s4] sm:$0x3] %vm317, %v316
    $region21: #{orientation_predictor_forward.7} parent=1 // pred_fallthru
      _
    // Predicated region
    $region22: #{orientation_predictor_forward.7} parent=1 // pred_check
      _
    $region23: #{orientation_predictor_forward.7} parent=1 // pred_check_branch
      %320 = sbr.rel (0) target = $region25
    $region24: #{orientation_predictor_forward.7} parent=1 // pred_region
      %s322 = ssub.s32 32, 32
      %323 = vsyncadd [#allocation4], %s322
      %s325 = sshll.u32 [#allocation3], 4
      %s326 = int_to_ptr.vmem [resolvable:$true] %s325
      %328 = dma.vmem_to_hbm [thread:$0]  %s326, 32, %s3, [#allocation4]
    $region25: #{orientation_predictor_forward.7} parent=1 // pred_fallthru
      _
    // Predicated region
    $region26: #{orientation_predictor_forward.7} parent=1 // pred_check
      _
    $region27: #{orientation_predictor_forward.7} parent=1 // pred_check_branch
      %330 = sbr.rel (0) target = $region29
    $region28: #{orientation_predictor_forward.7} parent=1 // pred_region
      _
    $region29: #{orientation_predictor_forward.7} parent=1 // pred_fallthru
      _
    // Predicated region
    $region30: #{orientation_predictor_forward.7} parent=1 // pred_check
      _
    $region31: #{orientation_predictor_forward.7} parent=1 // pred_check_branch
      %332 = sbr.rel (0) target = $region33
    $region32: #{orientation_predictor_forward.7} parent=1 // pred_region
      %333 = dma.done [#allocation4], 32
    $region33: #{orientation_predictor_forward.7} parent=1 // pred_fallthru
      _
    // Predicated region
    $region34: #{orientation_predictor_forward.7} parent=1 // pred_check
      _
    $region35: #{orientation_predictor_forward.7} parent=1 // pred_check_branch
      %335 = sbr.rel (0) target = $region37
    $region36: #{orientation_predictor_forward.7} parent=1 // pred_region
      _
    $region37: #{orientation_predictor_forward.7} parent=1 // pred_fallthru
      _
    %336 = vsyncpa [#allocation4], 1

// kernel: orientation_predictor_forward.6
$region0: #{orientation_predictor_forward.6}
  #allocation0 [shape = 'u32[]', space=smem, size = 0x4, offset = 0x4, fixed_abs, tag = 'smem constant byte address 0x4 - core index']
  #allocation1 [shape = 'u32[144,128]{1,0:T(1,128)}', space=vmem, size = 0x12000, scoped, tag = 'internal scratch']
  %s0 = inlined_call_operand.vmem [shape: bf16[128,1152], index: 0, kind: input, shape index: {}]
  %s1 = inlined_call_operand.vmem [shape: bf16[128,64], index: 1, kind: input, shape index: {}]
  %s2 = inlined_call_operand.vmem [shape: bf16[1152,128], index: 2, kind: input, shape index: {}]
  %s3 = inlined_call_operand.vmem [shape: f32[1,128], index: 3, kind: input, shape index: {}]
  %s4 = inlined_call_operand.vmem [shape: bf16[128,256], index: 4, kind: input, shape index: {}]
  %s5 = inlined_call_operand.vmem [shape: f32[1,256], index: 5, kind: input, shape index: {}]
  %s6 = inlined_call_operand.vmem [shape: bf16[64,256], index: 6, kind: input, shape index: {}]
  %s7 = inlined_call_operand.vmem [shape: f32[1,256], index: 7, kind: input, shape index: {}]
  %s8 = inlined_call_operand.vmem [shape: bf16[128,256], index: 8, kind: output, shape index: {}]
  %s9 = sld [smem:[#allocation0]]
  $region65: #{orientation_predictor_forward.6} parent=0
    _
  %s11 = ssub.s32 1, %s9
  %s12 = scalar_select 0, %s11, %s9
  loop: start=0, step=1, limit=4
  $region2: #{orientation_predictor_forward.6} parent=0 // loop_pre_header
    _
  $region3: #{orientation_predictor_forward.6} parent=0 // loop_header
    %s14 = sphi 0, %s18
    %p15 = scmp.ge.s32.totalorder %s14, 4
    %s24 = sphi 0, %s26
    %s27 = sphi 0, %s24
    %s28 = sphi 0, %s27
    %s44 = sphi 0, %s28
    %s50 = sphi 0, %s52
    %s53 = sphi 0, %s50
    %s54 = sphi 0, %s53
    %s70 = sphi 0, %s54
    %s74 = sphi 0, %s74
    %s76 = sphi 0, %s74
    %s77 = sphi 0, %s76
    %s91 = sphi 0, %s77
    %s95 = sphi 0, %s95
    %s97 = sphi 0, %s95
    %s98 = sphi 0, %s97
    %s112 = sphi 0, %s98
    %s116 = sphi 0, %s116
    %s118 = sphi 0, %s116
    %s119 = sphi 0, %s118
    %s133 = sphi 0, %s119
    %s137 = sphi 0, %s137
    %s139 = sphi 0, %s137
    %s140 = sphi 0, %s139
    %s154 = sphi 0, %s140
    %s158 = sphi 0, %s158
    %s160 = sphi 0, %s158
    %s161 = sphi 0, %s160
    %s175 = sphi 0, %s161
    %s179 = sphi 0, %s179
    %s181 = sphi 0, %s179
    %s182 = sphi 0, %s181
    %s196 = sphi 0, %s182
    %s202 = sphi 0, %s204
    %s205 = sphi 0, %s202
    %s206 = sphi 0, %s205
    %s222 = sphi 0, %s206
  $region4: #{orientation_predictor_forward.6} parent=0 // loop_header_branch
    %17 = sbr.rel (%p15) target = $region8
  $region5: #{orientation_predictor_forward.6} parent=0 // loop_body
    %s19 = ssub.s32 %s14, 1
    %s20 = ssub.s32 %s14, 2
    %s21 = sadd.s32 %s14, 1
    %s22 = ssub.s32 %s14, %s21
    %p23 = scmp.eq.s32.totalorder %s22, 0
    %s25 = sadd.s32 %s24, 1
    %s26 = scalar_select %p23, %s24, %s25
    %p29 = pneg %p23
    %p30 = scmp.eq.s32.totalorder %s14, 1
    %p31 = por %p29, %p30
    %p32 = scmp.ne.s32.totalorder %s24, %s27
    %p33 = scmp.eq.s32.totalorder %s14, 0
    %p34 = por %p32, %p33
    %p35 = scmp.ne.s32.totalorder %s24, %s27
    %p36 = scmp.eq.s32.totalorder %s19, 1
    %p37 = por %p35, %p36
    %p38 = scmp.ne.s32.totalorder %s27, %s28
    %p39 = scmp.eq.s32.totalorder %s19, 0
    %p40 = por %p38, %p39
    %p41 = scmp.ne.s32.totalorder %s27, %s28
    %p42 = scmp.eq.s32.totalorder %s20, 1
    %p43 = por %p41, %p42
    %p45 = scmp.ne.s32.totalorder %s28, %s44
    %p46 = scmp.eq.s32.totalorder %s20, 0
    %p47 = por %p45, %p46
    %s48 = ssub.s32 %s14, %s21
    %p49 = scmp.eq.s32.totalorder %s48, 0
    %s51 = sadd.s32 %s50, 1
    %s52 = scalar_select %p49, %s50, %s51
    %p55 = pneg %p49
    %p56 = scmp.eq.s32.totalorder %s14, 1
    %p57 = por %p55, %p56
    %p58 = scmp.ne.s32.totalorder %s50, %s53
    %p59 = scmp.eq.s32.totalorder %s14, 0
    %p60 = por %p58, %p59
    %p61 = scmp.ne.s32.totalorder %s50, %s53
    %p62 = scmp.eq.s32.totalorder %s19, 1
    %p63 = por %p61, %p62
    %p64 = scmp.ne.s32.totalorder %s53, %s54
    %p65 = scmp.eq.s32.totalorder %s19, 0
    %p66 = por %p64, %p65
    %p67 = scmp.ne.s32.totalorder %s53, %s54
    %p68 = scmp.eq.s32.totalorder %s20, 1
    %p69 = por %p67, %p68
    %p71 = scmp.ne.s32.totalorder %s54, %s70
    %p72 = scmp.eq.s32.totalorder %s20, 0
    %p73 = por %p71, %p72
    %s75 = sadd.s32 %s74, 1
    %p78 = scmp.eq.s32.totalorder %s14, 1
    %p79 = scmp.ne.s32.totalorder %s74, %s76
    %p80 = scmp.eq.s32.totalorder %s14, 0
    %p81 = por %p79, %p80
    %p82 = scmp.ne.s32.totalorder %s74, %s76
    %p83 = scmp.eq.s32.totalorder %s19, 1
    %p84 = por %p82, %p83
    %p85 = scmp.ne.s32.totalorder %s76, %s77
    %p86 = scmp.eq.s32.totalorder %s19, 0
    %p87 = por %p85, %p86
    %p88 = scmp.ne.s32.totalorder %s76, %s77
    %p89 = scmp.eq.s32.totalorder %s20, 1
    %p90 = por %p88, %p89
    %p92 = scmp.ne.s32.totalorder %s77, %s91
    %p93 = scmp.eq.s32.totalorder %s20, 0
    %p94 = por %p92, %p93
    %s96 = sadd.s32 %s95, 1
    %p99 = scmp.eq.s32.totalorder %s14, 1
    %p100 = scmp.ne.s32.totalorder %s95, %s97
    %p101 = scmp.eq.s32.totalorder %s14, 0
    %p102 = por %p100, %p101
    %p103 = scmp.ne.s32.totalorder %s95, %s97
    %p104 = scmp.eq.s32.totalorder %s19, 1
    %p105 = por %p103, %p104
    %p106 = scmp.ne.s32.totalorder %s97, %s98
    %p107 = scmp.eq.s32.totalorder %s19, 0
    %p108 = por %p106, %p107
    %p109 = scmp.ne.s32.totalorder %s97, %s98
    %p110 = scmp.eq.s32.totalorder %s20, 1
    %p111 = por %p109, %p110
    %p113 = scmp.ne.s32.totalorder %s98, %s112
    %p114 = scmp.eq.s32.totalorder %s20, 0
    %p115 = por %p113, %p114
    %s117 = sadd.s32 %s116, 1
    %p120 = scmp.eq.s32.totalorder %s14, 1
    %p121 = scmp.ne.s32.totalorder %s116, %s118
    %p122 = scmp.eq.s32.totalorder %s14, 0
    %p123 = por %p121, %p122
    %p124 = scmp.ne.s32.totalorder %s116, %s118
    %p125 = scmp.eq.s32.totalorder %s19, 1
    %p126 = por %p124, %p125
    %p127 = scmp.ne.s32.totalorder %s118, %s119
    %p128 = scmp.eq.s32.totalorder %s19, 0
    %p129 = por %p127, %p128
    %p130 = scmp.ne.s32.totalorder %s118, %s119
    %p131 = scmp.eq.s32.totalorder %s20, 1
    %p132 = por %p130, %p131
    %p134 = scmp.ne.s32.totalorder %s119, %s133
    %p135 = scmp.eq.s32.totalorder %s20, 0
    %p136 = por %p134, %p135
    %s138 = sadd.s32 %s137, 1
    %p141 = scmp.eq.s32.totalorder %s14, 1
    %p142 = scmp.ne.s32.totalorder %s137, %s139
    %p143 = scmp.eq.s32.totalorder %s14, 0
    %p144 = por %p142, %p143
    %p145 = scmp.ne.s32.totalorder %s137, %s139
    %p146 = scmp.eq.s32.totalorder %s19, 1
    %p147 = por %p145, %p146
    %p148 = scmp.ne.s32.totalorder %s139, %s140
    %p149 = scmp.eq.s32.totalorder %s19, 0
    %p150 = por %p148, %p149
    %p151 = scmp.ne.s32.totalorder %s139, %s140
    %p152 = scmp.eq.s32.totalorder %s20, 1
    %p153 = por %p151, %p152
    %p155 = scmp.ne.s32.totalorder %s140, %s154
    %p156 = scmp.eq.s32.totalorder %s20, 0
    %p157 = por %p155, %p156
    %s159 = sadd.s32 %s158, 1
    %p162 = scmp.eq.s32.totalorder %s14, 1
    %p163 = scmp.ne.s32.totalorder %s158, %s160
    %p164 = scmp.eq.s32.totalorder %s14, 0
    %p165 = por %p163, %p164
    %p166 = scmp.ne.s32.totalorder %s158, %s160
    %p167 = scmp.eq.s32.totalorder %s19, 1
    %p168 = por %p166, %p167
    %p169 = scmp.ne.s32.totalorder %s160, %s161
    %p170 = scmp.eq.s32.totalorder %s19, 0
    %p171 = por %p169, %p170
    %p172 = scmp.ne.s32.totalorder %s160, %s161
    %p173 = scmp.eq.s32.totalorder %s20, 1
    %p174 = por %p172, %p173
    %p176 = scmp.ne.s32.totalorder %s161, %s175
    %p177 = scmp.eq.s32.totalorder %s20, 0
    %p178 = por %p176, %p177
    %s180 = sadd.s32 %s179, 1
    %p183 = scmp.eq.s32.totalorder %s14, 1
    %p184 = scmp.ne.s32.totalorder %s179, %s181
    %p185 = scmp.eq.s32.totalorder %s14, 0
    %p186 = por %p184, %p185
    %p187 = scmp.ne.s32.totalorder %s179, %s181
    %p188 = scmp.eq.s32.totalorder %s19, 1
    %p189 = por %p187, %p188
    %p190 = scmp.ne.s32.totalorder %s181, %s182
    %p191 = scmp.eq.s32.totalorder %s19, 0
    %p192 = por %p190, %p191
    %p193 = scmp.ne.s32.totalorder %s181, %s182
    %p194 = scmp.eq.s32.totalorder %s20, 1
    %p195 = por %p193, %p194
    %p197 = scmp.ne.s32.totalorder %s182, %s196
    %p198 = scmp.eq.s32.totalorder %s20, 0
    %p199 = por %p197, %p198
    %s200 = ssub.s32 %s14, %s21
    %p201 = scmp.eq.s32.totalorder %s200, 0
    %s203 = sadd.s32 %s202, 1
    %s204 = scalar_select %p201, %s202, %s203
    %p207 = pneg %p201
    %p208 = scmp.eq.s32.totalorder %s14, 1
    %p209 = por %p207, %p208
    %p210 = scmp.ne.s32.totalorder %s202, %s205
    %p211 = scmp.eq.s32.totalorder %s14, 0
    %p212 = por %p210, %p211
    %p213 = scmp.ne.s32.totalorder %s202, %s205
    %p214 = scmp.eq.s32.totalorder %s19, 1
    %p215 = por %p213, %p214
    %p216 = scmp.ne.s32.totalorder %s205, %s206
    %p217 = scmp.eq.s32.totalorder %s19, 0
    %p218 = por %p216, %p217
    %p219 = scmp.ne.s32.totalorder %s205, %s206
    %p220 = scmp.eq.s32.totalorder %s20, 1
    %p221 = por %p219, %p220
    %p223 = scmp.ne.s32.totalorder %s206, %s222
    %p224 = scmp.eq.s32.totalorder %s20, 0
    %p225 = por %p223, %p224
    %p226 = scmp.le.s32.totalorder 1, %s14
    %p227 = scmp.lt.s32.totalorder %s14, 3
    %p228 = pnand %p226, %p227
    %p229 = pneg %p228
    // Predicated region
    $region9: #{orientation_predictor_forward.6} parent=5 // pred_check
      _
    $region10: #{orientation_predictor_forward.6} parent=5 // pred_check_branch
      %231 = sbr.rel (%p228) target = $region12
    $region11: #{orientation_predictor_forward.6} parent=5 // pred_region
      %s232 = ssub.s32 %s14, 1
      // Predicated region
      $region13: #{orientation_predictor_forward.6} parent=11 // pred_check
        %p233 = pneg %p87
      $region14: #{orientation_predictor_forward.6} parent=11 // pred_check_branch
        %235 = sbr.rel (%p233) target = $region16
      $region15: #{orientation_predictor_forward.6} parent=11 // pred_region
        _
      $region16: #{orientation_predictor_forward.6} parent=11 // pred_fallthru
        _
      // Predicated region
      $region17: #{orientation_predictor_forward.6} parent=11 // pred_check
        %p236 = pneg %p108
      $region18: #{orientation_predictor_forward.6} parent=11 // pred_check_branch
        %238 = sbr.rel (%p236) target = $region20
      $region19: #{orientation_predictor_forward.6} parent=11 // pred_region
        _
      $region20: #{orientation_predictor_forward.6} parent=11 // pred_fallthru
        _
      // Predicated region
      $region21: #{orientation_predictor_forward.6} parent=11 // pred_check
        %p239 = pneg %p129
      $region22: #{orientation_predictor_forward.6} parent=11 // pred_check_branch
        %241 = sbr.rel (%p239) target = $region24
      $region23: #{orientation_predictor_forward.6} parent=11 // pred_region
        _
      $region24: #{orientation_predictor_forward.6} parent=11 // pred_fallthru
        _
      // Predicated region
      $region25: #{orientation_predictor_forward.6} parent=11 // pred_check
        %p242 = pneg %p150
      $region26: #{orientation_predictor_forward.6} parent=11 // pred_check_branch
        %244 = sbr.rel (%p242) target = $region28
      $region27: #{orientation_predictor_forward.6} parent=11 // pred_region
        _
      $region28: #{orientation_predictor_forward.6} parent=11 // pred_fallthru
        _
      // Predicated region
      $region29: #{orientation_predictor_forward.6} parent=11 // pred_check
        %p245 = pneg %p171
      $region30: #{orientation_predictor_forward.6} parent=11 // pred_check_branch
        %247 = sbr.rel (%p245) target = $region32
      $region31: #{orientation_predictor_forward.6} parent=11 // pred_region
        _
      $region32: #{orientation_predictor_forward.6} parent=11 // pred_fallthru
        _
      // Predicated region
      $region33: #{orientation_predictor_forward.6} parent=11 // pred_check
        %p248 = pneg %p192
      $region34: #{orientation_predictor_forward.6} parent=11 // pred_check_branch
        %250 = sbr.rel (%p248) target = $region36
      $region35: #{orientation_predictor_forward.6} parent=11 // pred_region
        _
      $region36: #{orientation_predictor_forward.6} parent=11 // pred_fallthru
        _
    $region12: #{orientation_predictor_forward.6} parent=5 // pred_fallthru
      _
    %p251 = scmp.lt.s32.totalorder %s14, 2
    // Predicated region
    $region37: #{orientation_predictor_forward.6} parent=5 // pred_check
      %p252 = pneg %p251
    $region38: #{orientation_predictor_forward.6} parent=5 // pred_check_branch
      %254 = sbr.rel (%p252) target = $region40
    $region39: #{orientation_predictor_forward.6} parent=5 // pred_region
      // Predicated region
      $region41: #{orientation_predictor_forward.6} parent=39 // pred_check
        %p255 = pneg %p34
      $region42: #{orientation_predictor_forward.6} parent=39 // pred_check_branch
        %257 = sbr.rel (%p255) target = $region44
      $region43: #{orientation_predictor_forward.6} parent=39 // pred_region
        %s258 = smul.u32 8, %s14
        %p259 = scmp.lt.s32.totalorder %s258, 15
        %s260 = scalar_select %p259, %s258, 15
        %s261 = smul.addr %s260, 9
        %s262 = smul.addr %s261, 4
        %s263 = scalar_lea.vmem %s0, %s262
        %s264 = smul.u32 8, %s14
      $region44: #{orientation_predictor_forward.6} parent=39 // pred_fallthru
        _
      // Predicated region
      $region45: #{orientation_predictor_forward.6} parent=39 // pred_check
        %p265 = pneg %p60
      $region46: #{orientation_predictor_forward.6} parent=39 // pred_check_branch
        %267 = sbr.rel (%p265) target = $region48
      $region47: #{orientation_predictor_forward.6} parent=39 // pred_region
        %s268 = smul.u32 8, %s14
        %p269 = scmp.lt.s32.totalorder %s268, 15
        %s270 = scalar_select %p269, %s268, 15
        %s271 = smul.addr %s270, 4
        %s272 = scalar_lea.vmem %s1, %s271
        %s273 = smul.u32 8, %s14
      $region48: #{orientation_predictor_forward.6} parent=39 // pred_fallthru
        _
    $region40: #{orientation_predictor_forward.6} parent=5 // pred_fallthru
      _
    %p274 = scmp.le.s32.totalorder 1, %s14
    %p275 = scmp.lt.s32.totalorder %s14, 3
    %p276 = pnand %p274, %p275
    %p277 = pneg %p276
    // Predicated region
    $region49: #{orientation_predictor_forward.6} parent=5 // pred_check
      _
    $region50: #{orientation_predictor_forward.6} parent=5 // pred_check_branch
      %279 = sbr.rel (%p276) target = $region52
    $region51: #{orientation_predictor_forward.6} parent=5 // pred_region
      %s280 = ssub.s32 %s14, 1
      %s281 = smul.u32 8, %s19
      %p282 = scmp.lt.s32.totalorder %s281, 15
      %s283 = scalar_select %p282, %s281, 15
      %s284 = smul.addr %s283, 9
      %s285 = smul.addr %s284, 4
      %s286 = scalar_lea.vmem %s0, %s285
      %p287 = pneg %p40
      %p288 = pneg %p37
      %s289 = smul.u32 8, %s19
      %p290 = scmp.lt.s32.totalorder %s289, 15
      %s291 = scalar_select %p290, %s289, 15
      %s292 = smul.addr %s291, 4
      %s293 = scalar_lea.vmem %s1, %s292
      %p294 = pneg %p66
      %p295 = pneg %p63
      %p296 = pneg %p87
      %p297 = pneg %p84
      %p298 = pneg %p108
      %p299 = pneg %p105
      %p300 = pneg %p129
      %p301 = pneg %p126
      %p302 = pneg %p150
      %p303 = pneg %p147
      %p304 = pneg %p171
      %p305 = pneg %p168
      %p306 = pneg %p192
      %p307 = pneg %p189
      %p308 = pneg %p218
      %p309 = pneg %p215
      %s310 = smul.u32 8, %s19
      %p311 = scmp.lt.s32.totalorder %s310, 15
      %s312 = scalar_select %p311, %s310, 15
      %s313 = smul.addr %s312, 2
      %s314 = smul.addr %s313, 4
      %s315 = scalar_lea.vmem %s8, %s314
      %s316 = smul.u32 8, %s19
      %p317 = scmp.lt.s32.totalorder %s316, 15
      %s318 = scalar_select %p317, %s316, 15
      %s319 = smul.addr %s318, 9
      %s320 = smul.addr %s319, 4
      %s321 = scalar_lea.vmem %s0, %s320
      %s322 = smul.u32 8, %s19
      %s323 = smul.u32 8, %s19
      %p324 = scmp.lt.s32.totalorder %s323, 15
      %s325 = scalar_select %p324, %s323, 15
      %s326 = smul.addr %s325, 4
      %s327 = scalar_lea.vmem %s1, %s326
      %s328 = smul.u32 8, %s19
      %s329 = smul.u32 8, %s19
      %p330 = scmp.lt.s32.totalorder %s329, 15
      %s331 = scalar_select %p330, %s329, 15
      %s332 = smul.addr %s331, 2
      %s333 = smul.addr %s332, 4
      %s334 = scalar_lea.vmem %s8, %s333
      %s335 = smul.u32 8, %s19
      %v337 = vld [vmem:[%s321] sm:$0xff]
      %v338 = vld [vmem:[%s321 + $0x8] sm:$0xff]
      %v339 = vld [vmem:[%s321 + $0x10] sm:$0xff]
      %v340 = vld [vmem:[%s321 + $0x18] sm:$0xff]
      %v341 = vld [vmem:[%s321 + $0x20] sm:$0xf]
      %v342 = vld [vmem:[%s321 + $0x24] sm:$0xff]
      %v343 = vld [vmem:[%s321 + $0x2c] sm:$0xff]
      %v344 = vld [vmem:[%s321 + $0x34] sm:$0xff]
      %v345 = vld [vmem:[%s321 + $0x3c] sm:$0xff]
      %v346 = vld [vmem:[%s321 + $0x44] sm:$0xf]
      %v347 = vld [vmem:[%s321 + $0x48] sm:$0xff]
      %v348 = vld [vmem:[%s321 + $0x50] sm:$0xff]
      %v349 = vld [vmem:[%s321 + $0x58] sm:$0xff]
      %v350 = vld [vmem:[%s321 + $0x60] sm:$0xff]
      %v351 = vld [vmem:[%s321 + $0x68] sm:$0xf]
      %v352 = vld [vmem:[%s321 + $0x6c] sm:$0xff]
      %v353 = vld [vmem:[%s321 + $0x74] sm:$0xff]
      %v354 = vld [vmem:[%s321 + $0x7c] sm:$0xff]
      %v355 = vld [vmem:[%s321 + $0x84] sm:$0xff]
      %v356 = vld [vmem:[%s321 + $0x8c] sm:$0xf]
      %v357 = vld [vmem:[%s321 + $0x90] sm:$0xff]
      %v358 = vld [vmem:[%s321 + $0x98] sm:$0xff]
      %v359 = vld [vmem:[%s321 + $0xa0] sm:$0xff]
      %v360 = vld [vmem:[%s321 + $0xa8] sm:$0xff]
      %v361 = vld [vmem:[%s321 + $0xb0] sm:$0xf]
      %v362 = vld [vmem:[%s321 + $0xb4] sm:$0xff]
      %v363 = vld [vmem:[%s321 + $0xbc] sm:$0xff]
      %v364 = vld [vmem:[%s321 + $0xc4] sm:$0xff]
      %v365 = vld [vmem:[%s321 + $0xcc] sm:$0xff]
      %v366 = vld [vmem:[%s321 + $0xd4] sm:$0xf]
      %v367 = vld [vmem:[%s321 + $0xd8] sm:$0xff]
      %v368 = vld [vmem:[%s321 + $0xe0] sm:$0xff]
      %v369 = vld [vmem:[%s321 + $0xe8] sm:$0xff]
      %v370 = vld [vmem:[%s321 + $0xf0] sm:$0xff]
      %v371 = vld [vmem:[%s321 + $0xf8] sm:$0xf]
      %v372 = vld [vmem:[%s321 + $0xfc] sm:$0xff]
      %v373 = vld [vmem:[%s321 + $0x104] sm:$0xff]
      %v374 = vld [vmem:[%s321 + $0x10c] sm:$0xff]
      %v375 = vld [vmem:[%s321 + $0x114] sm:$0xff]
      %v376 = vld [vmem:[%s321 + $0x11c] sm:$0xf]
      %v377 = vld [vmem:[%s2] sm:$0xf]
      %v378 = vld [vmem:[%s2 + $0x4] sm:$0xf]
      %v379 = vld [vmem:[%s2 + $0x8] sm:$0xf]
      %v380 = vld [vmem:[%s2 + $0xc] sm:$0xf]
      %v381 = vld [vmem:[%s2 + $0x10] sm:$0xf]
      %v382 = vld [vmem:[%s2 + $0x14] sm:$0xf]
      %v383 = vld [vmem:[%s2 + $0x18] sm:$0xf]
      %v384 = vld [vmem:[%s2 + $0x1c] sm:$0xf]
      %v385 = vld [vmem:[%s2 + $0x20] sm:$0xf]
      %v386 = vld [vmem:[%s2 + $0x24] sm:$0xf]
      %v387 = vld [vmem:[%s2 + $0x28] sm:$0xf]
      %v388 = vld [vmem:[%s2 + $0x2c] sm:$0xf]
      %v389 = vld [vmem:[%s2 + $0x30] sm:$0xf]
      %v390 = vld [vmem:[%s2 + $0x34] sm:$0xf]
      %v391 = vld [vmem:[%s2 + $0x38] sm:$0xf]
      %v392 = vld [vmem:[%s2 + $0x3c] sm:$0xf]
      %v393 = vld [vmem:[%s2 + $0x40] sm:$0xf]
      %v394 = vld [vmem:[%s2 + $0x44] sm:$0xf]
      %v395 = vld [vmem:[%s2 + $0x48] sm:$0xf]
      %v396 = vld [vmem:[%s2 + $0x4c] sm:$0xf]
      %v397 = vld [vmem:[%s2 + $0x50] sm:$0xf]
      %v398 = vld [vmem:[%s2 + $0x54] sm:$0xf]
      %v399 = vld [vmem:[%s2 + $0x58] sm:$0xf]
      %v400 = vld [vmem:[%s2 + $0x5c] sm:$0xf]
      %v401 = vld [vmem:[%s2 + $0x60] sm:$0xf]
      %v402 = vld [vmem:[%s2 + $0x64] sm:$0xf]
      %v403 = vld [vmem:[%s2 + $0x68] sm:$0xf]
      %v404 = vld [vmem:[%s2 + $0x6c] sm:$0xf]
      %v405 = vld [vmem:[%s2 + $0x70] sm:$0xf]
      %v406 = vld [vmem:[%s2 + $0x74] sm:$0xf]
      %v407 = vld [vmem:[%s2 + $0x78] sm:$0xf]
      %v408 = vld [vmem:[%s2 + $0x7c] sm:$0xf]
      %v409 = vld [vmem:[%s2 + $0x80] sm:$0xf]
      %v410 = vld [vmem:[%s2 + $0x84] sm:$0xf]
      %v411 = vld [vmem:[%s2 + $0x88] sm:$0xf]
      %v412 = vld [vmem:[%s2 + $0x8c] sm:$0xf]
      %v413 = vld [vmem:[%s2 + $0x90] sm:$0xf]
      %v414 = vld [vmem:[%s2 + $0x94] sm:$0xf]
      %v415 = vld [vmem:[%s2 + $0x98] sm:$0xf]
      %v416 = vld [vmem:[%s2 + $0x9c] sm:$0xf]
      %v417 = vld [vmem:[%s2 + $0xa0] sm:$0xf]
      %v418 = vld [vmem:[%s2 + $0xa4] sm:$0xf]
      %v419 = vld [vmem:[%s2 + $0xa8] sm:$0xf]
      %v420 = vld [vmem:[%s2 + $0xac] sm:$0xf]
      %v421 = vld [vmem:[%s2 + $0xb0] sm:$0xf]
      %v422 = vld [vmem:[%s2 + $0xb4] sm:$0xf]
      %v423 = vld [vmem:[%s2 + $0xb8] sm:$0xf]
      %v424 = vld [vmem:[%s2 + $0xbc] sm:$0xf]
      %v425 = vld [vmem:[%s2 + $0xc0] sm:$0xf]
      %v426 = vld [vmem:[%s2 + $0xc4] sm:$0xf]
      %v427 = vld [vmem:[%s2 + $0xc8] sm:$0xf]
      %v428 = vld [vmem:[%s2 + $0xcc] sm:$0xf]
      %v429 = vld [vmem:[%s2 + $0xd0] sm:$0xf]
      %v430 = vld [vmem:[%s2 + $0xd4] sm:$0xf]
      %v431 = vld [vmem:[%s2 + $0xd8] sm:$0xf]
      %v432 = vld [vmem:[%s2 + $0xdc] sm:$0xf]
      %v433 = vld [vmem:[%s2 + $0xe0] sm:$0xf]
      %v434 = vld [vmem:[%s2 + $0xe4] sm:$0xf]
      %v435 = vld [vmem:[%s2 + $0xe8] sm:$0xf]
      %v436 = vld [vmem:[%s2 + $0xec] sm:$0xf]
      %v437 = vld [vmem:[%s2 + $0xf0] sm:$0xf]
      %v438 = vld [vmem:[%s2 + $0xf4] sm:$0xf]
      %v439 = vld [vmem:[%s2 + $0xf8] sm:$0xf]
      %v440 = vld [vmem:[%s2 + $0xfc] sm:$0xf]
      %v441 = vld [vmem:[%s2 + $0x100] sm:$0xf]
      %v442 = vld [vmem:[%s2 + $0x104] sm:$0xf]
      %v443 = vld [vmem:[%s2 + $0x108] sm:$0xf]
      %v444 = vld [vmem:[%s2 + $0x10c] sm:$0xf]
      %v445 = vld [vmem:[%s2 + $0x110] sm:$0xf]
      %v446 = vld [vmem:[%s2 + $0x114] sm:$0xf]
      %v447 = vld [vmem:[%s2 + $0x118] sm:$0xf]
      %v448 = vld [vmem:[%s2 + $0x11c] sm:$0xf]
      %v449 = vld [vmem:[%s2 + $0x120] sm:$0xf]
      %v450 = vld [vmem:[%s2 + $0x124] sm:$0xf]
      %v451 = vld [vmem:[%s2 + $0x128] sm:$0xf]
      %v452 = vld [vmem:[%s2 + $0x12c] sm:$0xf]
      %v453 = vld [vmem:[%s2 + $0x130] sm:$0xf]
      %v454 = vld [vmem:[%s2 + $0x134] sm:$0xf]
      %v455 = vld [vmem:[%s2 + $0x138] sm:$0xf]
      %v456 = vld [vmem:[%s2 + $0x13c] sm:$0xf]
      %v457 = vld [vmem:[%s2 + $0x140] sm:$0xf]
      %v458 = vld [vmem:[%s2 + $0x144] sm:$0xf]
      %v459 = vld [vmem:[%s2 + $0x148] sm:$0xf]
      %v460 = vld [vmem:[%s2 + $0x14c] sm:$0xf]
      %v461 = vld [vmem:[%s2 + $0x150] sm:$0xf]
      %v462 = vld [vmem:[%s2 + $0x154] sm:$0xf]
      %v463 = vld [vmem:[%s2 + $0x158] sm:$0xf]
      %v464 = vld [vmem:[%s2 + $0x15c] sm:$0xf]
      %v465 = vld [vmem:[%s2 + $0x160] sm:$0xf]
      %v466 = vld [vmem:[%s2 + $0x164] sm:$0xf]
      %v467 = vld [vmem:[%s2 + $0x168] sm:$0xf]
      %v468 = vld [vmem:[%s2 + $0x16c] sm:$0xf]
      %v469 = vld [vmem:[%s2 + $0x170] sm:$0xf]
      %v470 = vld [vmem:[%s2 + $0x174] sm:$0xf]
      %v471 = vld [vmem:[%s2 + $0x178] sm:$0xf]
      %v472 = vld [vmem:[%s2 + $0x17c] sm:$0xf]
      %v473 = vld [vmem:[%s2 + $0x180] sm:$0xf]
      %v474 = vld [vmem:[%s2 + $0x184] sm:$0xf]
      %v475 = vld [vmem:[%s2 + $0x188] sm:$0xf]
      %v476 = vld [vmem:[%s2 + $0x18c] sm:$0xf]
      %v477 = vld [vmem:[%s2 + $0x190] sm:$0xf]
      %v478 = vld [vmem:[%s2 + $0x194] sm:$0xf]
      %v479 = vld [vmem:[%s2 + $0x198] sm:$0xf]
      %v480 = vld [vmem:[%s2 + $0x19c] sm:$0xf]
      %v481 = vld [vmem:[%s2 + $0x1a0] sm:$0xf]
      %v482 = vld [vmem:[%s2 + $0x1a4] sm:$0xf]
      %v483 = vld [vmem:[%s2 + $0x1a8] sm:$0xf]
      %v484 = vld [vmem:[%s2 + $0x1ac] sm:$0xf]
      %v485 = vld [vmem:[%s2 + $0x1b0] sm:$0xf]
      %v486 = vld [vmem:[%s2 + $0x1b4] sm:$0xf]
      %v487 = vld [vmem:[%s2 + $0x1b8] sm:$0xf]
      %v488 = vld [vmem:[%s2 + $0x1bc] sm:$0xf]
      %v489 = vld [vmem:[%s2 + $0x1c0] sm:$0xf]
      %v490 = vld [vmem:[%s2 + $0x1c4] sm:$0xf]
      %v491 = vld [vmem:[%s2 + $0x1c8] sm:$0xf]
      %v492 = vld [vmem:[%s2 + $0x1cc] sm:$0xf]
      %v493 = vld [vmem:[%s2 + $0x1d0] sm:$0xf]
      %v494 = vld [vmem:[%s2 + $0x1d4] sm:$0xf]
      %v495 = vld [vmem:[%s2 + $0x1d8] sm:$0xf]
      %v496 = vld [vmem:[%s2 + $0x1dc] sm:$0xf]
      %v497 = vld [vmem:[%s2 + $0x1e0] sm:$0xf]
      %v498 = vld [vmem:[%s2 + $0x1e4] sm:$0xf]
      %v499 = vld [vmem:[%s2 + $0x1e8] sm:$0xf]
      %v500 = vld [vmem:[%s2 + $0x1ec] sm:$0xf]
      %v501 = vld [vmem:[%s2 + $0x1f0] sm:$0xf]
      %v502 = vld [vmem:[%s2 + $0x1f4] sm:$0xf]
      %v503 = vld [vmem:[%s2 + $0x1f8] sm:$0xf]
      %v504 = vld [vmem:[%s2 + $0x1fc] sm:$0xf]
      %v505 = vld [vmem:[%s2 + $0x200] sm:$0xf]
      %v506 = vld [vmem:[%s2 + $0x204] sm:$0xf]
      %v507 = vld [vmem:[%s2 + $0x208] sm:$0xf]
      %v508 = vld [vmem:[%s2 + $0x20c] sm:$0xf]
      %v509 = vld [vmem:[%s2 + $0x210] sm:$0xf]
      %v510 = vld [vmem:[%s2 + $0x214] sm:$0xf]
      %v511 = vld [vmem:[%s2 + $0x218] sm:$0xf]
      %v512 = vld [vmem:[%s2 + $0x21c] sm:$0xf]
      %v513 = vld [vmem:[%s2 + $0x220] sm:$0xf]
      %v514 = vld [vmem:[%s2 + $0x224] sm:$0xf]
      %v515 = vld [vmem:[%s2 + $0x228] sm:$0xf]
      %v516 = vld [vmem:[%s2 + $0x22c] sm:$0xf]
      %v517 = vld [vmem:[%s2 + $0x230] sm:$0xf]
      %v518 = vld [vmem:[%s2 + $0x234] sm:$0xf]
      %v519 = vld [vmem:[%s2 + $0x238] sm:$0xf]
      %v520 = vld [vmem:[%s2 + $0x23c] sm:$0xf]
      %v521 = vld [vmem:[%s3] sm:$0x1]
      %v523 = vlaneseq
      %v524 = vshrl.u32 %v523, 7
      %v525 = vsub.s32 0, %v524
      %v526 = vrot.slane %v521, %v525
      %v568 = vunpack.c.l.b16 %v337
      %v569 = vunpack.c.h.b16 %v337
      %v570 = vunpack.c.l.b16 %v338
      %v571 = vunpack.c.h.b16 %v338
      %v572 = vunpack.c.l.b16 %v339
      %v573 = vunpack.c.h.b16 %v339
      %v574 = vunpack.c.l.b16 %v340
      %v575 = vunpack.c.h.b16 %v340
      %v576 = vunpack.c.l.b16 %v341
      %v577 = vunpack.c.l.b16 %v342
      %v578 = vunpack.c.h.b16 %v342
      %v579 = vunpack.c.l.b16 %v343
      %v580 = vunpack.c.h.b16 %v343
      %v581 = vunpack.c.l.b16 %v344
      %v582 = vunpack.c.h.b16 %v344
      %v583 = vunpack.c.l.b16 %v345
      %v584 = vunpack.c.h.b16 %v345
      %v585 = vunpack.c.l.b16 %v346
      %v586 = vunpack.c.l.b16 %v347
      %v587 = vunpack.c.h.b16 %v347
      %v588 = vunpack.c.l.b16 %v348
      %v589 = vunpack.c.h.b16 %v348
      %v590 = vunpack.c.l.b16 %v349
      %v591 = vunpack.c.h.b16 %v349
      %v592 = vunpack.c.l.b16 %v350
      %v593 = vunpack.c.h.b16 %v350
      %v594 = vunpack.c.l.b16 %v351
      %v595 = vunpack.c.l.b16 %v352
      %v596 = vunpack.c.h.b16 %v352
      %v597 = vunpack.c.l.b16 %v353
      %v598 = vunpack.c.h.b16 %v353
      %v599 = vunpack.c.l.b16 %v354
      %v600 = vunpack.c.h.b16 %v354
      %v601 = vunpack.c.l.b16 %v355
      %v602 = vunpack.c.h.b16 %v355
      %v603 = vunpack.c.l.b16 %v356
      %v604 = vunpack.c.l.b16 %v357
      %v605 = vunpack.c.h.b16 %v357
      %v606 = vunpack.c.l.b16 %v358
      %v607 = vunpack.c.h.b16 %v358
      %v608 = vunpack.c.l.b16 %v359
      %v609 = vunpack.c.h.b16 %v359
      %v610 = vunpack.c.l.b16 %v360
      %v611 = vunpack.c.h.b16 %v360
      %v612 = vunpack.c.l.b16 %v361
      %v613 = vunpack.c.l.b16 %v362
      %v614 = vunpack.c.h.b16 %v362
      %v615 = vunpack.c.l.b16 %v363
      %v616 = vunpack.c.h.b16 %v363
      %v617 = vunpack.c.l.b16 %v364
      %v618 = vunpack.c.h.b16 %v364
      %v619 = vunpack.c.l.b16 %v365
      %v620 = vunpack.c.h.b16 %v365
      %v621 = vunpack.c.l.b16 %v366
      %v622 = vunpack.c.l.b16 %v367
      %v623 = vunpack.c.h.b16 %v367
      %v624 = vunpack.c.l.b16 %v368
      %v625 = vunpack.c.h.b16 %v368
      %v626 = vunpack.c.l.b16 %v369
      %v627 = vunpack.c.h.b16 %v369
      %v628 = vunpack.c.l.b16 %v370
      %v629 = vunpack.c.h.b16 %v370
      %v630 = vunpack.c.l.b16 %v371
      %v631 = vunpack.c.l.b16 %v372
      %v632 = vunpack.c.h.b16 %v372
      %v633 = vunpack.c.l.b16 %v373
      %v634 = vunpack.c.h.b16 %v373
      %v635 = vunpack.c.l.b16 %v374
      %v636 = vunpack.c.h.b16 %v374
      %v637 = vunpack.c.l.b16 %v375
      %v638 = vunpack.c.h.b16 %v375
      %v639 = vunpack.c.l.b16 %v376
      %v640 = vpack.c.b16 %v577, %v568
      %v641 = vpack.c.b16 %v578, %v569
      %v642 = vpack.c.b16 %v579, %v570
      %v643 = vpack.c.b16 %v580, %v571
      %v644 = vpack.c.b16 %v581, %v572
      %v645 = vpack.c.b16 %v582, %v573
      %v646 = vpack.c.b16 %v583, %v574
      %v647 = vpack.c.b16 %v584, %v575
      %v648 = vpack.c.b16 %v585, %v576
      %v649 = vpack.c.b16 %v595, %v586
      %v650 = vpack.c.b16 %v596, %v587
      %v651 = vpack.c.b16 %v597, %v588
      %v652 = vpack.c.b16 %v598, %v589
      %v653 = vpack.c.b16 %v599, %v590
      %v654 = vpack.c.b16 %v600, %v591
      %v655 = vpack.c.b16 %v601, %v592
      %v656 = vpack.c.b16 %v602, %v593
      %v657 = vpack.c.b16 %v603, %v594
      %v658 = vpack.c.b16 %v613, %v604
      %v659 = vpack.c.b16 %v614, %v605
      %v660 = vpack.c.b16 %v615, %v606
      %v661 = vpack.c.b16 %v616, %v607
      %v662 = vpack.c.b16 %v617, %v608
      %v663 = vpack.c.b16 %v618, %v609
      %v664 = vpack.c.b16 %v619, %v610
      %v665 = vpack.c.b16 %v620, %v611
      %v666 = vpack.c.b16 %v621, %v612
      %v667 = vpack.c.b16 %v631, %v622
      %v668 = vpack.c.b16 %v632, %v623
      %v669 = vpack.c.b16 %v633, %v624
      %v670 = vpack.c.b16 %v634, %v625
      %v671 = vpack.c.b16 %v635, %v626
      %v672 = vpack.c.b16 %v636, %v627
      %v673 = vpack.c.b16 %v637, %v628
      %v674 = vpack.c.b16 %v638, %v629
      %v675 = vpack.c.b16 %v639, %v630
      %v856 = vunpack.c.l.b16 %v377
      %v857 = vunpack.c.l.b16 %v378
      %v858 = vunpack.c.l.b16 %v379
      %v859 = vunpack.c.l.b16 %v380
      %v860 = vunpack.c.l.b16 %v381
      %v861 = vunpack.c.l.b16 %v382
      %v862 = vunpack.c.l.b16 %v383
      %v863 = vunpack.c.l.b16 %v384
      %v864 = vunpack.c.l.b16 %v385
      %v865 = vunpack.c.l.b16 %v386
      %v866 = vunpack.c.l.b16 %v387
      %v867 = vunpack.c.l.b16 %v388
      %v868 = vunpack.c.l.b16 %v389
      %v869 = vunpack.c.l.b16 %v390
      %v870 = vunpack.c.l.b16 %v391
      %v871 = vunpack.c.l.b16 %v392
      %v872 = vunpack.c.l.b16 %v393
      %v873 = vunpack.c.l.b16 %v394
      %v874 = vunpack.c.l.b16 %v395
      %v875 = vunpack.c.l.b16 %v396
      %v876 = vunpack.c.l.b16 %v397
      %v877 = vunpack.c.l.b16 %v398
      %v878 = vunpack.c.l.b16 %v399
      %v879 = vunpack.c.l.b16 %v400
      %v880 = vunpack.c.l.b16 %v401
      %v881 = vunpack.c.l.b16 %v402
      %v882 = vunpack.c.l.b16 %v403
      %v883 = vunpack.c.l.b16 %v404
      %v884 = vunpack.c.l.b16 %v405
      %v885 = vunpack.c.l.b16 %v406
      %v886 = vunpack.c.l.b16 %v407
      %v887 = vunpack.c.l.b16 %v408
      %v888 = vunpack.c.l.b16 %v409
      %v889 = vunpack.c.l.b16 %v410
      %v890 = vunpack.c.l.b16 %v411
      %v891 = vunpack.c.l.b16 %v412
      %v892 = vunpack.c.l.b16 %v413
      %v893 = vunpack.c.l.b16 %v414
      %v894 = vunpack.c.l.b16 %v415
      %v895 = vunpack.c.l.b16 %v416
      %v896 = vunpack.c.l.b16 %v417
      %v897 = vunpack.c.l.b16 %v418
      %v898 = vunpack.c.l.b16 %v419
      %v899 = vunpack.c.l.b16 %v420
      %v900 = vunpack.c.l.b16 %v421
      %v901 = vunpack.c.l.b16 %v422
      %v902 = vunpack.c.l.b16 %v423
      %v903 = vunpack.c.l.b16 %v424
      %v904 = vunpack.c.l.b16 %v425
      %v905 = vunpack.c.l.b16 %v426
      %v906 = vunpack.c.l.b16 %v427
      %v907 = vunpack.c.l.b16 %v428
      %v908 = vunpack.c.l.b16 %v429
      %v909 = vunpack.c.l.b16 %v430
      %v910 = vunpack.c.l.b16 %v431
      %v911 = vunpack.c.l.b16 %v432
      %v912 = vunpack.c.l.b16 %v433
      %v913 = vunpack.c.l.b16 %v434
      %v914 = vunpack.c.l.b16 %v435
      %v915 = vunpack.c.l.b16 %v436
      %v916 = vunpack.c.l.b16 %v437
      %v917 = vunpack.c.l.b16 %v438
      %v918 = vunpack.c.l.b16 %v439
      %v919 = vunpack.c.l.b16 %v440
      %v920 = vunpack.c.l.b16 %v441
      %v921 = vunpack.c.l.b16 %v442
      %v922 = vunpack.c.l.b16 %v443
      %v923 = vunpack.c.l.b16 %v444
      %v924 = vunpack.c.l.b16 %v445
      %v925 = vunpack.c.l.b16 %v446
      %v926 = vunpack.c.l.b16 %v447
      %v927 = vunpack.c.l.b16 %v448
      %v928 = vunpack.c.l.b16 %v449
      %v929 = vunpack.c.l.b16 %v450
      %v930 = vunpack.c.l.b16 %v451
      %v931 = vunpack.c.l.b16 %v452
      %v932 = vunpack.c.l.b16 %v453
      %v933 = vunpack.c.l.b16 %v454
      %v934 = vunpack.c.l.b16 %v455
      %v935 = vunpack.c.l.b16 %v456
      %v936 = vunpack.c.l.b16 %v457
      %v937 = vunpack.c.l.b16 %v458
      %v938 = vunpack.c.l.b16 %v459
      %v939 = vunpack.c.l.b16 %v460
      %v940 = vunpack.c.l.b16 %v461
      %v941 = vunpack.c.l.b16 %v462
      %v942 = vunpack.c.l.b16 %v463
      %v943 = vunpack.c.l.b16 %v464
      %v944 = vunpack.c.l.b16 %v465
      %v945 = vunpack.c.l.b16 %v466
      %v946 = vunpack.c.l.b16 %v467
      %v947 = vunpack.c.l.b16 %v468
      %v948 = vunpack.c.l.b16 %v469
      %v949 = vunpack.c.l.b16 %v470
      %v950 = vunpack.c.l.b16 %v471
      %v951 = vunpack.c.l.b16 %v472
      %v952 = vunpack.c.l.b16 %v473
      %v953 = vunpack.c.l.b16 %v474
      %v954 = vunpack.c.l.b16 %v475
      %v955 = vunpack.c.l.b16 %v476
      %v956 = vunpack.c.l.b16 %v477
      %v957 = vunpack.c.l.b16 %v478
      %v958 = vunpack.c.l.b16 %v479
      %v959 = vunpack.c.l.b16 %v480
      %v960 = vunpack.c.l.b16 %v481
      %v961 = vunpack.c.l.b16 %v482
      %v962 = vunpack.c.l.b16 %v483
      %v963 = vunpack.c.l.b16 %v484
      %v964 = vunpack.c.l.b16 %v485
      %v965 = vunpack.c.l.b16 %v486
      %v966 = vunpack.c.l.b16 %v487
      %v967 = vunpack.c.l.b16 %v488
      %v968 = vunpack.c.l.b16 %v489
      %v969 = vunpack.c.l.b16 %v490
      %v970 = vunpack.c.l.b16 %v491
      %v971 = vunpack.c.l.b16 %v492
      %v972 = vunpack.c.l.b16 %v493
      %v973 = vunpack.c.l.b16 %v494
      %v974 = vunpack.c.l.b16 %v495
      %v975 = vunpack.c.l.b16 %v496
      %v976 = vunpack.c.l.b16 %v497
      %v977 = vunpack.c.l.b16 %v498
      %v978 = vunpack.c.l.b16 %v499
      %v979 = vunpack.c.l.b16 %v500
      %v980 = vunpack.c.l.b16 %v501
      %v981 = vunpack.c.l.b16 %v502
      %v982 = vunpack.c.l.b16 %v503
      %v983 = vunpack.c.l.b16 %v504
      %v984 = vunpack.c.l.b16 %v505
      %v985 = vunpack.c.l.b16 %v506
      %v986 = vunpack.c.l.b16 %v507
      %v987 = vunpack.c.l.b16 %v508
      %v988 = vunpack.c.l.b16 %v509
      %v989 = vunpack.c.l.b16 %v510
      %v990 = vunpack.c.l.b16 %v511
      %v991 = vunpack.c.l.b16 %v512
      %v992 = vunpack.c.l.b16 %v513
      %v993 = vunpack.c.l.b16 %v514
      %v994 = vunpack.c.l.b16 %v515
      %v995 = vunpack.c.l.b16 %v516
      %v996 = vunpack.c.l.b16 %v517
      %v997 = vunpack.c.l.b16 %v518
      %v998 = vunpack.c.l.b16 %v519
      %v999 = vunpack.c.l.b16 %v520
      %v1000 = vpack.c.b16 %v857, %v856
      %v1001 = vpack.c.b16 %v859, %v858
      %v1002 = vpack.c.b16 %v861, %v860
      %v1003 = vpack.c.b16 %v863, %v862
      %v1004 = vpack.c.b16 %v865, %v864
      %v1005 = vpack.c.b16 %v867, %v866
      %v1006 = vpack.c.b16 %v869, %v868
      %v1007 = vpack.c.b16 %v871, %v870
      %v1008 = vpack.c.b16 %v873, %v872
      %v1009 = vpack.c.b16 %v875, %v874
      %v1010 = vpack.c.b16 %v877, %v876
      %v1011 = vpack.c.b16 %v879, %v878
      %v1012 = vpack.c.b16 %v881, %v880
      %v1013 = vpack.c.b16 %v883, %v882
      %v1014 = vpack.c.b16 %v885, %v884
      %v1015 = vpack.c.b16 %v887, %v886
      %v1016 = vpack.c.b16 %v889, %v888
      %v1017 = vpack.c.b16 %v891, %v890
      %v1018 = vpack.c.b16 %v893, %v892
      %v1019 = vpack.c.b16 %v895, %v894
      %v1020 = vpack.c.b16 %v897, %v896
      %v1021 = vpack.c.b16 %v899, %v898
      %v1022 = vpack.c.b16 %v901, %v900
      %v1023 = vpack.c.b16 %v903, %v902
      %v1024 = vpack.c.b16 %v905, %v904
      %v1025 = vpack.c.b16 %v907, %v906
      %v1026 = vpack.c.b16 %v909, %v908
      %v1027 = vpack.c.b16 %v911, %v910
      %v1028 = vpack.c.b16 %v913, %v912
      %v1029 = vpack.c.b16 %v915, %v914
      %v1030 = vpack.c.b16 %v917, %v916
      %v1031 = vpack.c.b16 %v919, %v918
      %v1032 = vpack.c.b16 %v921, %v920
      %v1033 = vpack.c.b16 %v923, %v922
      %v1034 = vpack.c.b16 %v925, %v924
      %v1035 = vpack.c.b16 %v927, %v926
      %v1036 = vpack.c.b16 %v929, %v928
      %v1037 = vpack.c.b16 %v931, %v930
      %v1038 = vpack.c.b16 %v933, %v932
      %v1039 = vpack.c.b16 %v935, %v934
      %v1040 = vpack.c.b16 %v937, %v936
      %v1041 = vpack.c.b16 %v939, %v938
      %v1042 = vpack.c.b16 %v941, %v940
      %v1043 = vpack.c.b16 %v943, %v942
      %v1044 = vpack.c.b16 %v945, %v944
      %v1045 = vpack.c.b16 %v947, %v946
      %v1046 = vpack.c.b16 %v949, %v948
      %v1047 = vpack.c.b16 %v951, %v950
      %v1048 = vpack.c.b16 %v953, %v952
      %v1049 = vpack.c.b16 %v955, %v954
      %v1050 = vpack.c.b16 %v957, %v956
      %v1051 = vpack.c.b16 %v959, %v958
      %v1052 = vpack.c.b16 %v961, %v960
      %v1053 = vpack.c.b16 %v963, %v962
      %v1054 = vpack.c.b16 %v965, %v964
      %v1055 = vpack.c.b16 %v967, %v966
      %v1056 = vpack.c.b16 %v969, %v968
      %v1057 = vpack.c.b16 %v971, %v970
      %v1058 = vpack.c.b16 %v973, %v972
      %v1059 = vpack.c.b16 %v975, %v974
      %v1060 = vpack.c.b16 %v977, %v976
      %v1061 = vpack.c.b16 %v979, %v978
      %v1062 = vpack.c.b16 %v981, %v980
      %v1063 = vpack.c.b16 %v983, %v982
      %v1064 = vpack.c.b16 %v985, %v984
      %v1065 = vpack.c.b16 %v987, %v986
      %v1066 = vpack.c.b16 %v989, %v988
      %v1067 = vpack.c.b16 %v991, %v990
      %v1068 = vpack.c.b16 %v993, %v992
      %v1069 = vpack.c.b16 %v995, %v994
      %v1070 = vpack.c.b16 %v997, %v996
      %v1071 = vpack.c.b16 %v999, %v998
      %1144 = vmatprep.subr.bf16.mxu0 0
      %1145 = vmatpush1.bf16.msra.mxu0 %v1007
      %1146 = vmatprep.subr.bf16.mxu0 0
      %1147 = vmatpush1.bf16.msra.mxu0 %v1006
      %1148 = vmatprep.subr.bf16.mxu0 0
      %1149 = vmatpush1.bf16.msra.mxu0 %v1005
      %1150 = vmatprep.subr.bf16.mxu0 0
      %1151 = vmatpush1.bf16.msra.mxu0 %v1004
      %1152 = vmatprep.subr.bf16.mxu0 0
      %1153 = vmatpush1.bf16.msra.mxu0 %v1003
      %1154 = vmatprep.subr.bf16.mxu0 0
      %1155 = vmatpush1.bf16.msra.mxu0 %v1002
      %1156 = vmatprep.subr.bf16.mxu0 0
      %1157 = vmatpush1.bf16.msra.mxu0 %v1001
      %1158 = vmatprep.subr.bf16.mxu0 0
      %1159 = vmatpush1.bf16.msra.mxu0 %v1000
      %1160 = vmatprep.subr.bf16.mxu0 0
      %1161 = vmatpush2.bf16.msra.mxu0 %v1015
      %1162 = vmatprep.subr.bf16.mxu0 0
      %1163 = vmatpush2.bf16.msra.mxu0 %v1014
      %1164 = vmatprep.subr.bf16.mxu0 0
      %1165 = vmatpush2.bf16.msra.mxu0 %v1013
      %1166 = vmatprep.subr.bf16.mxu0 0
      %1167 = vmatpush2.bf16.msra.mxu0 %v1012
      %1168 = vmatprep.subr.bf16.mxu0 0
      %1169 = vmatpush2.bf16.msra.mxu0 %v1011
      %1170 = vmatprep.subr.bf16.mxu0 0
      %1171 = vmatpush2.bf16.msra.mxu0 %v1010
      %1172 = vmatprep.subr.bf16.mxu0 0
      %1173 = vmatpush2.bf16.msra.mxu0 %v1009
      %1174 = vmatprep.subr.bf16.mxu0 0
      %1175 = vmatpush2.bf16.msra.mxu0 %v1008
      %1176 = vmatprep.mubr.bf16.mxu0 %v641
      %1177 = vmatmul.mubr.bf16.gmra.mxu0 %v640
      %v1178 = vpop.f32.mrf.mxu0
      %v1179 = vadd.f32 %v526, %v1178
      %v1180 = vpop.f32.mrf.mxu0
      %v1181 = vpop.f32.mrf.mxu0
      %v1182 = vadd.f32 %v526, %v1181
      %v1183 = vpop.f32.mrf.mxu0
      %1184 = vmatprep.mubr.bf16.mxu0 %v650
      %1185 = vmatmul.mubr.bf16.gmra.mxu0 %v649
      %v1186 = vpop.f32.mrf.mxu0
      %v1187 = vadd.f32 %v526, %v1186
      %v1188 = vpop.f32.mrf.mxu0
      %v1189 = vpop.f32.mrf.mxu0
      %v1190 = vadd.f32 %v526, %v1189
      %v1191 = vpop.f32.mrf.mxu0
      %1192 = vmatprep.mubr.bf16.mxu0 %v659
      %1193 = vmatmul.mubr.bf16.gmra.mxu0 %v658
      %v1194 = vpop.f32.mrf.mxu0
      %v1195 = vadd.f32 %v526, %v1194
      %v1196 = vpop.f32.mrf.mxu0
      %v1197 = vpop.f32.mrf.mxu0
      %v1198 = vadd.f32 %v526, %v1197
      %v1199 = vpop.f32.mrf.mxu0
      %1200 = vmatprep.mubr.bf16.mxu0 %v668
      %1201 = vmatmul.mubr.bf16.gmra.mxu0 %v667
      %v1202 = vpop.f32.mrf.mxu0
      %v1203 = vadd.f32 %v526, %v1202
      %v1204 = vpop.f32.mrf.mxu0
      %v1205 = vpop.f32.mrf.mxu0
      %v1206 = vadd.f32 %v526, %v1205
      %v1207 = vpop.f32.mrf.mxu0
      %1208 = vdwg.mxu0
      %1209 = vmatprep.subr.bf16.mxu0 0
      %1210 = vmatpush1.bf16.msra.mxu0 %v1023
      %1211 = vmatprep.subr.bf16.mxu0 0
      %1212 = vmatpush1.bf16.msra.mxu0 %v1022
      %1213 = vmatprep.subr.bf16.mxu0 0
      %1214 = vmatpush1.bf16.msra.mxu0 %v1021
      %1215 = vmatprep.subr.bf16.mxu0 0
      %1216 = vmatpush1.bf16.msra.mxu0 %v1020
      %1217 = vmatprep.subr.bf16.mxu0 0
      %1218 = vmatpush1.bf16.msra.mxu0 %v1019
      %1219 = vmatprep.subr.bf16.mxu0 0
      %1220 = vmatpush1.bf16.msra.mxu0 %v1018
      %1221 = vmatprep.subr.bf16.mxu0 0
      %1222 = vmatpush1.bf16.msra.mxu0 %v1017
      %1223 = vmatprep.subr.bf16.mxu0 0
      %1224 = vmatpush1.bf16.msra.mxu0 %v1016
      %1225 = vmatprep.subr.bf16.mxu0 0
      %1226 = vmatpush2.bf16.msra.mxu0 %v1031
      %1227 = vmatprep.subr.bf16.mxu0 0
      %1228 = vmatpush2.bf16.msra.mxu0 %v1030
      %1229 = vmatprep.subr.bf16.mxu0 0
      %1230 = vmatpush2.bf16.msra.mxu0 %v1029
      %1231 = vmatprep.subr.bf16.mxu0 0
      %1232 = vmatpush2.bf16.msra.mxu0 %v1028
      %1233 = vmatprep.subr.bf16.mxu0 0
      %1234 = vmatpush2.bf16.msra.mxu0 %v1027
      %1235 = vmatprep.subr.bf16.mxu0 0
      %1236 = vmatpush2.bf16.msra.mxu0 %v1026
      %1237 = vmatprep.subr.bf16.mxu0 0
      %1238 = vmatpush2.bf16.msra.mxu0 %v1025
      %1239 = vmatprep.subr.bf16.mxu0 0
      %1240 = vmatpush2.bf16.msra.mxu0 %v1024
      %1241 = vmatprep.mubr.bf16.mxu0 %v643
      %1242 = vmatmul.mubr.bf16.gmra.mxu0 %v642
      %v1243 = vpop.f32.mrf.mxu0
      %v1244 = vadd.f32 %v1179, %v1243
      %v1245 = vpop.f32.mrf.mxu0
      %v1246 = vpop.f32.mrf.mxu0
      %v1247 = vadd.f32 %v1182, %v1246
      %v1248 = vpop.f32.mrf.mxu0
      %1249 = vmatprep.mubr.bf16.mxu0 %v652
      %1250 = vmatmul.mubr.bf16.gmra.mxu0 %v651
      %v1251 = vpop.f32.mrf.mxu0
      %v1252 = vadd.f32 %v1187, %v1251
      %v1253 = vpop.f32.mrf.mxu0
      %v1254 = vpop.f32.mrf.mxu0
      %v1255 = vadd.f32 %v1190, %v1254
      %v1256 = vpop.f32.mrf.mxu0
      %1257 = vmatprep.mubr.bf16.mxu0 %v661
      %1258 = vmatmul.mubr.bf16.gmra.mxu0 %v660
      %v1259 = vpop.f32.mrf.mxu0
      %v1260 = vadd.f32 %v1195, %v1259
      %v1261 = vpop.f32.mrf.mxu0
      %v1262 = vpop.f32.mrf.mxu0
      %v1263 = vadd.f32 %v1198, %v1262
      %v1264 = vpop.f32.mrf.mxu0
      %1265 = vmatprep.mubr.bf16.mxu0 %v670
      %1266 = vmatmul.mubr.bf16.gmra.mxu0 %v669
      %v1267 = vpop.f32.mrf.mxu0
      %v1268 = vadd.f32 %v1203, %v1267
      %v1269 = vpop.f32.mrf.mxu0
      %v1270 = vpop.f32.mrf.mxu0
      %v1271 = vadd.f32 %v1206, %v1270
      %v1272 = vpop.f32.mrf.mxu0
      %1273 = vdwg.mxu0
      %1274 = vmatprep.subr.bf16.mxu0 0
      %1275 = vmatpush1.bf16.msra.mxu0 %v1039
      %1276 = vmatprep.subr.bf16.mxu0 0
      %1277 = vmatpush1.bf16.msra.mxu0 %v1038
      %1278 = vmatprep.subr.bf16.mxu0 0
      %1279 = vmatpush1.bf16.msra.mxu0 %v1037
      %1280 = vmatprep.subr.bf16.mxu0 0
      %1281 = vmatpush1.bf16.msra.mxu0 %v1036
      %1282 = vmatprep.subr.bf16.mxu0 0
      %1283 = vmatpush1.bf16.msra.mxu0 %v1035
      %1284 = vmatprep.subr.bf16.mxu0 0
      %1285 = vmatpush1.bf16.msra.mxu0 %v1034
      %1286 = vmatprep.subr.bf16.mxu0 0
      %1287 = vmatpush1.bf16.msra.mxu0 %v1033
      %1288 = vmatprep.subr.bf16.mxu0 0
      %1289 = vmatpush1.bf16.msra.mxu0 %v1032
      %1290 = vmatprep.subr.bf16.mxu0 0
      %1291 = vmatpush2.bf16.msra.mxu0 %v1047
      %1292 = vmatprep.subr.bf16.mxu0 0
      %1293 = vmatpush2.bf16.msra.mxu0 %v1046
      %1294 = vmatprep.subr.bf16.mxu0 0
      %1295 = vmatpush2.bf16.msra.mxu0 %v1045
      %1296 = vmatprep.subr.bf16.mxu0 0
      %1297 = vmatpush2.bf16.msra.mxu0 %v1044
      %1298 = vmatprep.subr.bf16.mxu0 0
      %1299 = vmatpush2.bf16.msra.mxu0 %v1043
      %1300 = vmatprep.subr.bf16.mxu0 0
      %1301 = vmatpush2.bf16.msra.mxu0 %v1042
      %1302 = vmatprep.subr.bf16.mxu0 0
      %1303 = vmatpush2.bf16.msra.mxu0 %v1041
      %1304 = vmatprep.subr.bf16.mxu0 0
      %1305 = vmatpush2.bf16.msra.mxu0 %v1040
      %1306 = vmatprep.mubr.bf16.mxu0 %v645
      %1307 = vmatmul.mubr.bf16.gmra.mxu0 %v644
      %v1308 = vpop.f32.mrf.mxu0
      %v1309 = vadd.f32 %v1244, %v1308
      %v1310 = vpop.f32.mrf.mxu0
      %v1311 = vpop.f32.mrf.mxu0
      %v1312 = vadd.f32 %v1247, %v1311
      %v1313 = vpop.f32.mrf.mxu0
      %1314 = vmatprep.mubr.bf16.mxu0 %v654
      %1315 = vmatmul.mubr.bf16.gmra.mxu0 %v653
      %v1316 = vpop.f32.mrf.mxu0
      %v1317 = vadd.f32 %v1252, %v1316
      %v1318 = vpop.f32.mrf.mxu0
      %v1319 = vpop.f32.mrf.mxu0
      %v1320 = vadd.f32 %v1255, %v1319
      %v1321 = vpop.f32.mrf.mxu0
      %1322 = vmatprep.mubr.bf16.mxu0 %v663
      %1323 = vmatmul.mubr.bf16.gmra.mxu0 %v662
      %v1324 = vpop.f32.mrf.mxu0
      %v1325 = vadd.f32 %v1260, %v1324
      %v1326 = vpop.f32.mrf.mxu0
      %v1327 = vpop.f32.mrf.mxu0
      %v1328 = vadd.f32 %v1263, %v1327
      %v1329 = vpop.f32.mrf.mxu0
      %1330 = vmatprep.mubr.bf16.mxu0 %v672
      %1331 = vmatmul.mubr.bf16.gmra.mxu0 %v671
      %v1332 = vpop.f32.mrf.mxu0
      %v1333 = vadd.f32 %v1268, %v1332
      %v1334 = vpop.f32.mrf.mxu0
      %v1335 = vpop.f32.mrf.mxu0
      %v1336 = vadd.f32 %v1271, %v1335
      %v1337 = vpop.f32.mrf.mxu0
      %1338 = vdwg.mxu0
      %1339 = vmatprep.subr.bf16.mxu0 0
      %1340 = vmatpush1.bf16.msra.mxu0 %v1055
      %1341 = vmatprep.subr.bf16.mxu0 0
      %1342 = vmatpush1.bf16.msra.mxu0 %v1054
      %1343 = vmatprep.subr.bf16.mxu0 0
      %1344 = vmatpush1.bf16.msra.mxu0 %v1053
      %1345 = vmatprep.subr.bf16.mxu0 0
      %1346 = vmatpush1.bf16.msra.mxu0 %v1052
      %1347 = vmatprep.subr.bf16.mxu0 0
      %1348 = vmatpush1.bf16.msra.mxu0 %v1051
      %1349 = vmatprep.subr.bf16.mxu0 0
      %1350 = vmatpush1.bf16.msra.mxu0 %v1050
      %1351 = vmatprep.subr.bf16.mxu0 0
      %1352 = vmatpush1.bf16.msra.mxu0 %v1049
      %1353 = vmatprep.subr.bf16.mxu0 0
      %1354 = vmatpush1.bf16.msra.mxu0 %v1048
      %1355 = vmatprep.subr.bf16.mxu0 0
      %1356 = vmatpush2.bf16.msra.mxu0 %v1063
      %1357 = vmatprep.subr.bf16.mxu0 0
      %1358 = vmatpush2.bf16.msra.mxu0 %v1062
      %1359 = vmatprep.subr.bf16.mxu0 0
      %1360 = vmatpush2.bf16.msra.mxu0 %v1061
      %1361 = vmatprep.subr.bf16.mxu0 0
      %1362 = vmatpush2.bf16.msra.mxu0 %v1060
      %1363 = vmatprep.subr.bf16.mxu0 0
      %1364 = vmatpush2.bf16.msra.mxu0 %v1059
      %1365 = vmatprep.subr.bf16.mxu0 0
      %1366 = vmatpush2.bf16.msra.mxu0 %v1058
      %1367 = vmatprep.subr.bf16.mxu0 0
      %1368 = vmatpush2.bf16.msra.mxu0 %v1057
      %1369 = vmatprep.subr.bf16.mxu0 0
      %1370 = vmatpush2.bf16.msra.mxu0 %v1056
      %1371 = vmatprep.mubr.bf16.mxu0 %v647
      %1372 = vmatmul.mubr.bf16.gmra.mxu0 %v646
      %v1373 = vpop.f32.mrf.mxu0
      %v1374 = vadd.f32 %v1309, %v1373
      %v1375 = vpop.f32.mrf.mxu0
      %v1376 = vpop.f32.mrf.mxu0
      %v1377 = vadd.f32 %v1312, %v1376
      %v1378 = vpop.f32.mrf.mxu0
      %1379 = vmatprep.mubr.bf16.mxu0 %v656
      %1380 = vmatmul.mubr.bf16.gmra.mxu0 %v655
      %v1381 = vpop.f32.mrf.mxu0
      %v1382 = vadd.f32 %v1317, %v1381
      %v1383 = vpop.f32.mrf.mxu0
      %v1384 = vpop.f32.mrf.mxu0
      %v1385 = vadd.f32 %v1320, %v1384
      %v1386 = vpop.f32.mrf.mxu0
      %1387 = vmatprep.mubr.bf16.mxu0 %v665
      %1388 = vmatmul.mubr.bf16.gmra.mxu0 %v664
      %v1389 = vpop.f32.mrf.mxu0
      %v1390 = vadd.f32 %v1325, %v1389
      %v1391 = vpop.f32.mrf.mxu0
      %v1392 = vpop.f32.mrf.mxu0
      %v1393 = vadd.f32 %v1328, %v1392
      %v1394 = vpop.f32.mrf.mxu0
      %1395 = vmatprep.mubr.bf16.mxu0 %v674
      %1396 = vmatmul.mubr.bf16.gmra.mxu0 %v673
      %v1397 = vpop.f32.mrf.mxu0
      %v1398 = vadd.f32 %v1333, %v1397
      %v1399 = vpop.f32.mrf.mxu0
      %v1400 = vpop.f32.mrf.mxu0
      %v1401 = vadd.f32 %v1336, %v1400
      %v1402 = vpop.f32.mrf.mxu0
      %1403 = vdwg.mxu0
      %1404 = vmatprep.subr.bf16.mxu0 0
      %1405 = vmatpush1.bf16.msra.mxu0 %v1071
      %1406 = vmatprep.subr.bf16.mxu0 0
      %1407 = vmatpush1.bf16.msra.mxu0 %v1070
      %1408 = vmatprep.subr.bf16.mxu0 0
      %1409 = vmatpush1.bf16.msra.mxu0 %v1069
      %1410 = vmatprep.subr.bf16.mxu0 0
      %1411 = vmatpush1.bf16.msra.mxu0 %v1068
      %1412 = vmatprep.subr.bf16.mxu0 0
      %1413 = vmatpush1.bf16.msra.mxu0 %v1067
      %1414 = vmatprep.subr.bf16.mxu0 0
      %1415 = vmatpush1.bf16.msra.mxu0 %v1066
      %1416 = vmatprep.subr.bf16.mxu0 0
      %1417 = vmatpush1.bf16.msra.mxu0 %v1065
      %1418 = vmatprep.subr.bf16.mxu0 0
      %1419 = vmatpush1.bf16.msra.mxu0 %v1064
      %1420 = vmatprep.subr.bf16.mxu0 0
      %1421 = vmatpush2.bf16.msra.mxu0 0
      %1422 = vmatprep.subr.bf16.mxu0 0
      %1423 = vmatpush2.bf16.msra.mxu0 0
      %1424 = vmatprep.subr.bf16.mxu0 0
      %1425 = vmatpush2.bf16.msra.mxu0 0
      %1426 = vmatprep.subr.bf16.mxu0 0
      %1427 = vmatpush2.bf16.msra.mxu0 0
      %1428 = vmatprep.subr.bf16.mxu0 0
      %1429 = vmatpush2.bf16.msra.mxu0 0
      %1430 = vmatprep.subr.bf16.mxu0 0
      %1431 = vmatpush2.bf16.msra.mxu0 0
      %1432 = vmatprep.subr.bf16.mxu0 0
      %1433 = vmatpush2.bf16.msra.mxu0 0
      %1434 = vmatprep.subr.bf16.mxu0 0
      %1435 = vmatpush2.bf16.msra.mxu0 0
      %1436 = vmatprep.mubr.bf16.mxu0 0
      %1437 = vmatmul.mubr.bf16.gmra.mxu0 %v648
      %v1438 = vpop.f32.mrf.mxu0
      %v1439 = vadd.f32 %v1374, %v1438
      %v1440 = vpop.f32.mrf.mxu0
      %v1441 = vpop.f32.mrf.mxu0
      %v1442 = vadd.f32 %v1377, %v1441
      %v1443 = vpop.f32.mrf.mxu0
      %1444 = vmatprep.mubr.bf16.mxu0 0
      %1445 = vmatmul.mubr.bf16.gmra.mxu0 %v657
      %v1446 = vpop.f32.mrf.mxu0
      %v1447 = vadd.f32 %v1382, %v1446
      %v1448 = vpop.f32.mrf.mxu0
      %v1449 = vpop.f32.mrf.mxu0
      %v1450 = vadd.f32 %v1385, %v1449
      %v1451 = vpop.f32.mrf.mxu0
      %1452 = vmatprep.mubr.bf16.mxu0 0
      %1453 = vmatmul.mubr.bf16.gmra.mxu0 %v666
      %v1454 = vpop.f32.mrf.mxu0
      %v1455 = vadd.f32 %v1390, %v1454
      %v1456 = vpop.f32.mrf.mxu0
      %v1457 = vpop.f32.mrf.mxu0
      %v1458 = vadd.f32 %v1393, %v1457
      %v1459 = vpop.f32.mrf.mxu0
      %1460 = vmatprep.mubr.bf16.mxu0 0
      %1461 = vmatmul.mubr.bf16.gmra.mxu0 %v675
      %v1462 = vpop.f32.mrf.mxu0
      %v1463 = vadd.f32 %v1398, %v1462
      %v1464 = vpop.f32.mrf.mxu0
      %v1465 = vpop.f32.mrf.mxu0
      %v1466 = vadd.f32 %v1401, %v1465
      %v1467 = vpop.f32.mrf.mxu0
      %1468 = vdwg.mxu0
      %v1469 = vmax.f32 %v1439, 0.0
      %v1470 = vmax.f32 %v1442, 0.0
      %v1471 = vmax.f32 %v1447, 0.0
      %v1472 = vmax.f32 %v1450, 0.0
      %v1473 = vmax.f32 %v1455, 0.0
      %v1474 = vmax.f32 %v1458, 0.0
      %v1475 = vmax.f32 %v1463, 0.0
      %v1476 = vmax.f32 %v1466, 0.0
      %v1477 = vpack.c.bf16 %v1470, %v1469
      %v1478 = vpack.c.bf16 %v1472, %v1471
      %v1479 = vpack.c.bf16 %v1474, %v1473
      %v1480 = vpack.c.bf16 %v1476, %v1475
      %v1481 = vld [vmem:[%s4] sm:$0xff]
      %v1482 = vld [vmem:[%s4 + $0x8] sm:$0xff]
      %v1483 = vld [vmem:[%s4 + $0x10] sm:$0xff]
      %v1484 = vld [vmem:[%s4 + $0x18] sm:$0xff]
      %v1485 = vld [vmem:[%s4 + $0x20] sm:$0xff]
      %v1486 = vld [vmem:[%s4 + $0x28] sm:$0xff]
      %v1487 = vld [vmem:[%s4 + $0x30] sm:$0xff]
      %v1488 = vld [vmem:[%s4 + $0x38] sm:$0xff]
      %v1489 = vld [vmem:[%s4 + $0x40] sm:$0xff]
      %v1490 = vld [vmem:[%s4 + $0x48] sm:$0xff]
      %v1491 = vld [vmem:[%s4 + $0x50] sm:$0xff]
      %v1492 = vld [vmem:[%s4 + $0x58] sm:$0xff]
      %v1493 = vld [vmem:[%s4 + $0x60] sm:$0xff]
      %v1494 = vld [vmem:[%s4 + $0x68] sm:$0xff]
      %v1495 = vld [vmem:[%s4 + $0x70] sm:$0xff]
      %v1496 = vld [vmem:[%s4 + $0x78] sm:$0xff]
      %v1497 = vld [vmem:[%s5] sm:$0x3]
      %v1499 = vlaneseq
      %v1500 = vshrl.u32 %v1499, 7
      %v1501 = vsub.s32 0, %v1500
      %v1502 = vrot.slane %v1497, %v1501
      %v1503 = vlaneseq
      %v1504 = vshrl.u32 %v1503, 7
      %v1505 = vsub.s32 1, %v1504
      %v1506 = vrot.slane %v1497, %v1505
      %v1525 = vunpack.c.l.b16 %v1481
      %v1526 = vunpack.c.h.b16 %v1481
      %v1527 = vunpack.c.l.b16 %v1482
      %v1528 = vunpack.c.h.b16 %v1482
      %v1529 = vunpack.c.l.b16 %v1483
      %v1530 = vunpack.c.h.b16 %v1483
      %v1531 = vunpack.c.l.b16 %v1484
      %v1532 = vunpack.c.h.b16 %v1484
      %v1533 = vunpack.c.l.b16 %v1485
      %v1534 = vunpack.c.h.b16 %v1485
      %v1535 = vunpack.c.l.b16 %v1486
      %v1536 = vunpack.c.h.b16 %v1486
      %v1537 = vunpack.c.l.b16 %v1487
      %v1538 = vunpack.c.h.b16 %v1487
      %v1539 = vunpack.c.l.b16 %v1488
      %v1540 = vunpack.c.h.b16 %v1488
      %v1541 = vunpack.c.l.b16 %v1489
      %v1542 = vunpack.c.h.b16 %v1489
      %v1543 = vunpack.c.l.b16 %v1490
      %v1544 = vunpack.c.h.b16 %v1490
      %v1545 = vunpack.c.l.b16 %v1491
      %v1546 = vunpack.c.h.b16 %v1491
      %v1547 = vunpack.c.l.b16 %v1492
      %v1548 = vunpack.c.h.b16 %v1492
      %v1549 = vunpack.c.l.b16 %v1493
      %v1550 = vunpack.c.h.b16 %v1493
      %v1551 = vunpack.c.l.b16 %v1494
      %v1552 = vunpack.c.h.b16 %v1494
      %v1553 = vunpack.c.l.b16 %v1495
      %v1554 = vunpack.c.h.b16 %v1495
      %v1555 = vunpack.c.l.b16 %v1496
      %v1556 = vunpack.c.h.b16 %v1496
      %v1557 = vpack.c.b16 %v1527, %v1525
      %v1558 = vpack.c.b16 %v1528, %v1526
      %v1559 = vpack.c.b16 %v1531, %v1529
      %v1560 = vpack.c.b16 %v1532, %v1530
      %v1561 = vpack.c.b16 %v1535, %v1533
      %v1562 = vpack.c.b16 %v1536, %v1534
      %v1563 = vpack.c.b16 %v1539, %v1537
      %v1564 = vpack.c.b16 %v1540, %v1538
      %v1565 = vpack.c.b16 %v1543, %v1541
      %v1566 = vpack.c.b16 %v1544, %v1542
      %v1567 = vpack.c.b16 %v1547, %v1545
      %v1568 = vpack.c.b16 %v1548, %v1546
      %v1569 = vpack.c.b16 %v1551, %v1549
      %v1570 = vpack.c.b16 %v1552, %v1550
      %v1571 = vpack.c.b16 %v1555, %v1553
      %v1572 = vpack.c.b16 %v1556, %v1554
      %1589 = vmatprep.subr.bf16.mxu0 %v1572
      %1590 = vmatpush1.bf16.msra.mxu0 %v1571
      %1591 = vmatprep.subr.bf16.mxu0 %v1570
      %1592 = vmatpush1.bf16.msra.mxu0 %v1569
      %1593 = vmatprep.subr.bf16.mxu0 %v1568
      %1594 = vmatpush1.bf16.msra.mxu0 %v1567
      %1595 = vmatprep.subr.bf16.mxu0 %v1566
      %1596 = vmatpush1.bf16.msra.mxu0 %v1565
      %1597 = vmatprep.subr.bf16.mxu0 %v1564
      %1598 = vmatpush1.bf16.msra.mxu0 %v1563
      %1599 = vmatprep.subr.bf16.mxu0 %v1562
      %1600 = vmatpush1.bf16.msra.mxu0 %v1561
      %1601 = vmatprep.subr.bf16.mxu0 %v1560
      %1602 = vmatpush1.bf16.msra.mxu0 %v1559
      %1603 = vmatprep.subr.bf16.mxu0 %v1558
      %1604 = vmatpush1.bf16.msra.mxu0 %v1557
      %1605 = vmatprep.subr.bf16.mxu0 0
      %1606 = vmatpush2.bf16.msra.mxu0 0
      %1607 = vmatprep.subr.bf16.mxu0 0
      %1608 = vmatpush2.bf16.msra.mxu0 0
      %1609 = vmatprep.subr.bf16.mxu0 0
      %1610 = vmatpush2.bf16.msra.mxu0 0
      %1611 = vmatprep.subr.bf16.mxu0 0
      %1612 = vmatpush2.bf16.msra.mxu0 0
      %1613 = vmatprep.subr.bf16.mxu0 0
      %1614 = vmatpush2.bf16.msra.mxu0 0
      %1615 = vmatprep.subr.bf16.mxu0 0
      %1616 = vmatpush2.bf16.msra.mxu0 0
      %1617 = vmatprep.subr.bf16.mxu0 0
      %1618 = vmatpush2.bf16.msra.mxu0 0
      %1619 = vmatprep.subr.bf16.mxu0 0
      %1620 = vmatpush2.bf16.msra.mxu0 0
      %1621 = vmatprep.mubr.bf16.mxu0 0
      %1622 = vmatmul.mubr.bf16.gmra.mxu0 %v1477
      %v1623 = vpop.f32.mrf.mxu0
      %v1624 = vadd.f32 %v1502, %v1623
      %v1625 = vpop.f32.mrf.mxu0
      %v1626 = vadd.f32 %v1506, %v1625
      %v1627 = vpop.f32.mrf.mxu0
      %v1628 = vadd.f32 %v1502, %v1627
      %v1629 = vpop.f32.mrf.mxu0
      %v1630 = vadd.f32 %v1506, %v1629
      %1631 = vmatprep.mubr.bf16.mxu0 0
      %1632 = vmatmul.mubr.bf16.gmra.mxu0 %v1478
      %v1633 = vpop.f32.mrf.mxu0
      %v1634 = vadd.f32 %v1502, %v1633
      %v1635 = vpop.f32.mrf.mxu0
      %v1636 = vadd.f32 %v1506, %v1635
      %v1637 = vpop.f32.mrf.mxu0
      %v1638 = vadd.f32 %v1502, %v1637
      %v1639 = vpop.f32.mrf.mxu0
      %v1640 = vadd.f32 %v1506, %v1639
      %1641 = vmatprep.mubr.bf16.mxu0 0
      %1642 = vmatmul.mubr.bf16.gmra.mxu0 %v1479
      %v1643 = vpop.f32.mrf.mxu0
      %v1644 = vadd.f32 %v1502, %v1643
      %v1645 = vpop.f32.mrf.mxu0
      %v1646 = vadd.f32 %v1506, %v1645
      %v1647 = vpop.f32.mrf.mxu0
      %v1648 = vadd.f32 %v1502, %v1647
      %v1649 = vpop.f32.mrf.mxu0
      %v1650 = vadd.f32 %v1506, %v1649
      %1651 = vmatprep.mubr.bf16.mxu0 0
      %1652 = vmatmul.mubr.bf16.gmra.mxu0 %v1480
      %v1653 = vpop.f32.mrf.mxu0
      %v1654 = vadd.f32 %v1502, %v1653
      %v1655 = vpop.f32.mrf.mxu0
      %v1656 = vadd.f32 %v1506, %v1655
      %v1657 = vpop.f32.mrf.mxu0
      %v1658 = vadd.f32 %v1502, %v1657
      %v1659 = vpop.f32.mrf.mxu0
      %v1660 = vadd.f32 %v1506, %v1659
      %1661 = vdwg.mxu0
      %v1662 = vld [vmem:[%s327] sm:$0xf]
      %v1663 = vld [vmem:[%s327 + $0x4] sm:$0xf]
      %v1664 = vld [vmem:[%s327 + $0x8] sm:$0xf]
      %v1665 = vld [vmem:[%s327 + $0xc] sm:$0xf]
      %v1666 = vld [vmem:[%s327 + $0x10] sm:$0xf]
      %v1667 = vld [vmem:[%s327 + $0x14] sm:$0xf]
      %v1668 = vld [vmem:[%s327 + $0x18] sm:$0xf]
      %v1669 = vld [vmem:[%s327 + $0x1c] sm:$0xf]
      %v1670 = vld [vmem:[%s6] sm:$0xff]
      %v1671 = vld [vmem:[%s6 + $0x8] sm:$0xff]
      %v1672 = vld [vmem:[%s6 + $0x10] sm:$0xff]
      %v1673 = vld [vmem:[%s6 + $0x18] sm:$0xff]
      %v1674 = vld [vmem:[%s6 + $0x20] sm:$0xff]
      %v1675 = vld [vmem:[%s6 + $0x28] sm:$0xff]
      %v1676 = vld [vmem:[%s6 + $0x30] sm:$0xff]
      %v1677 = vld [vmem:[%s6 + $0x38] sm:$0xff]
      %v1678 = vld [vmem:[%s7] sm:$0x3]
      %v1680 = vlaneseq
      %v1681 = vshrl.u32 %v1680, 7
      %v1682 = vsub.s32 0, %v1681
      %v1683 = vrot.slane %v1678, %v1682
      %v1684 = vlaneseq
      %v1685 = vshrl.u32 %v1684, 7
      %v1686 = vsub.s32 1, %v1685
      %v1687 = vrot.slane %v1678, %v1686
      %v1698 = vunpack.c.l.b16 %v1662
      %v1699 = vunpack.c.l.b16 %v1663
      %v1700 = vunpack.c.l.b16 %v1664
      %v1701 = vunpack.c.l.b16 %v1665
      %v1702 = vunpack.c.l.b16 %v1666
      %v1703 = vunpack.c.l.b16 %v1667
      %v1704 = vunpack.c.l.b16 %v1668
      %v1705 = vunpack.c.l.b16 %v1669
      %v1706 = vpack.c.b16 %v1699, %v1698
      %v1707 = vpack.c.b16 %v1701, %v1700
      %v1708 = vpack.c.b16 %v1703, %v1702
      %v1709 = vpack.c.b16 %v1705, %v1704
      %v1718 = vunpack.c.l.b16 %v1670
      %v1719 = vunpack.c.h.b16 %v1670
      %v1720 = vunpack.c.l.b16 %v1671
      %v1721 = vunpack.c.h.b16 %v1671
      %v1722 = vunpack.c.l.b16 %v1672
      %v1723 = vunpack.c.h.b16 %v1672
      %v1724 = vunpack.c.l.b16 %v1673
      %v1725 = vunpack.c.h.b16 %v1673
      %v1726 = vunpack.c.l.b16 %v1674
      %v1727 = vunpack.c.h.b16 %v1674
      %v1728 = vunpack.c.l.b16 %v1675
      %v1729 = vunpack.c.h.b16 %v1675
      %v1730 = vunpack.c.l.b16 %v1676
      %v1731 = vunpack.c.h.b16 %v1676
      %v1732 = vunpack.c.l.b16 %v1677
      %v1733 = vunpack.c.h.b16 %v1677
      %v1734 = vpack.c.b16 %v1720, %v1718
      %v1735 = vpack.c.b16 %v1721, %v1719
      %v1736 = vpack.c.b16 %v1724, %v1722
      %v1737 = vpack.c.b16 %v1725, %v1723
      %v1738 = vpack.c.b16 %v1728, %v1726
      %v1739 = vpack.c.b16 %v1729, %v1727
      %v1740 = vpack.c.b16 %v1732, %v1730
      %v1741 = vpack.c.b16 %v1733, %v1731
      %vm1750 = vcmask 523264
      %v1752 = vsel %vm1750, %v1706, 0
      %v1755 = vsel %vm1750, %v1707, 0
      %v1758 = vsel %vm1750, %v1708, 0
      %v1761 = vsel %vm1750, %v1709, 0
      %1763 = vmatprep.subr.bf16.mxu0 0
      %1764 = vmatpush1.bf16.msra.mxu0 0
      %1765 = vmatprep.subr.bf16.mxu0 0
      %1766 = vmatpush1.bf16.msra.mxu0 0
      %1767 = vmatprep.subr.bf16.mxu0 0
      %1768 = vmatpush1.bf16.msra.mxu0 0
      %1769 = vmatprep.subr.bf16.mxu0 0
      %1770 = vmatpush1.bf16.msra.mxu0 0
      %1771 = vmatprep.subr.bf16.mxu0 %v1741
      %1772 = vmatpush1.bf16.msra.mxu0 %v1740
      %1773 = vmatprep.subr.bf16.mxu0 %v1739
      %1774 = vmatpush1.bf16.msra.mxu0 %v1738
      %1775 = vmatprep.subr.bf16.mxu0 %v1737
      %1776 = vmatpush1.bf16.msra.mxu0 %v1736
      %1777 = vmatprep.subr.bf16.mxu0 %v1735
      %1778 = vmatpush1.bf16.msra.mxu0 %v1734
      %1779 = vmatprep.subr.bf16.mxu0 0
      %1780 = vmatpush2.bf16.msra.mxu0 0
      %1781 = vmatprep.subr.bf16.mxu0 0
      %1782 = vmatpush2.bf16.msra.mxu0 0
      %1783 = vmatprep.subr.bf16.mxu0 0
      %1784 = vmatpush2.bf16.msra.mxu0 0
      %1785 = vmatprep.subr.bf16.mxu0 0
      %1786 = vmatpush2.bf16.msra.mxu0 0
      %1787 = vmatprep.subr.bf16.mxu0 0
      %1788 = vmatpush2.bf16.msra.mxu0 0
      %1789 = vmatprep.subr.bf16.mxu0 0
      %1790 = vmatpush2.bf16.msra.mxu0 0
      %1791 = vmatprep.subr.bf16.mxu0 0
      %1792 = vmatpush2.bf16.msra.mxu0 0
      %1793 = vmatprep.subr.bf16.mxu0 0
      %1794 = vmatpush2.bf16.msra.mxu0 0
      %1795 = vmatprep.mubr.bf16.mxu0 0
      %1796 = vmatmul.mubr.bf16.gmra.mxu0 %v1752
      %v1797 = vpop.f32.mrf.mxu0
      %v1798 = vadd.f32 %v1683, %v1797
      %v1799 = vpop.f32.mrf.mxu0
      %v1800 = vadd.f32 %v1687, %v1799
      %v1801 = vpop.f32.mrf.mxu0
      %v1802 = vadd.f32 %v1683, %v1801
      %v1803 = vpop.f32.mrf.mxu0
      %v1804 = vadd.f32 %v1687, %v1803
      %1805 = vmatprep.mubr.bf16.mxu0 0
      %1806 = vmatmul.mubr.bf16.gmra.mxu0 %v1755
      %v1807 = vpop.f32.mrf.mxu0
      %v1808 = vadd.f32 %v1683, %v1807
      %v1809 = vpop.f32.mrf.mxu0
      %v1810 = vadd.f32 %v1687, %v1809
      %v1811 = vpop.f32.mrf.mxu0
      %v1812 = vadd.f32 %v1683, %v1811
      %v1813 = vpop.f32.mrf.mxu0
      %v1814 = vadd.f32 %v1687, %v1813
      %1815 = vmatprep.mubr.bf16.mxu0 0
      %1816 = vmatmul.mubr.bf16.gmra.mxu0 %v1758
      %v1817 = vpop.f32.mrf.mxu0
      %v1818 = vadd.f32 %v1683, %v1817
      %v1819 = vpop.f32.mrf.mxu0
      %v1820 = vadd.f32 %v1687, %v1819
      %v1821 = vpop.f32.mrf.mxu0
      %v1822 = vadd.f32 %v1683, %v1821
      %v1823 = vpop.f32.mrf.mxu0
      %v1824 = vadd.f32 %v1687, %v1823
      %1825 = vmatprep.mubr.bf16.mxu0 0
      %1826 = vmatmul.mubr.bf16.gmra.mxu0 %v1761
      %v1827 = vpop.f32.mrf.mxu0
      %v1828 = vadd.f32 %v1683, %v1827
      %v1829 = vpop.f32.mrf.mxu0
      %v1830 = vadd.f32 %v1687, %v1829
      %v1831 = vpop.f32.mrf.mxu0
      %v1832 = vadd.f32 %v1683, %v1831
      %v1833 = vpop.f32.mrf.mxu0
      %v1834 = vadd.f32 %v1687, %v1833
      %1835 = vdwg.mxu0
      %v1836 = vadd.f32 %v1624, %v1798
      %v1837 = vadd.f32 %v1626, %v1800
      %v1838 = vadd.f32 %v1628, %v1802
      %v1839 = vadd.f32 %v1630, %v1804
      %v1840 = vadd.f32 %v1634, %v1808
      %v1841 = vadd.f32 %v1636, %v1810
      %v1842 = vadd.f32 %v1638, %v1812
      %v1843 = vadd.f32 %v1640, %v1814
      %v1844 = vadd.f32 %v1644, %v1818
      %v1845 = vadd.f32 %v1646, %v1820
      %v1846 = vadd.f32 %v1648, %v1822
      %v1847 = vadd.f32 %v1650, %v1824
      %v1848 = vadd.f32 %v1654, %v1828
      %v1849 = vadd.f32 %v1656, %v1830
      %v1850 = vadd.f32 %v1658, %v1832
      %v1851 = vadd.f32 %v1660, %v1834
      %v1852 = vmax.f32 %v1836, 0.0
      %v1853 = vmax.f32 %v1837, 0.0
      %v1854 = vmax.f32 %v1838, 0.0
      %v1855 = vmax.f32 %v1839, 0.0
      %v1856 = vmax.f32 %v1840, 0.0
      %v1857 = vmax.f32 %v1841, 0.0
      %v1858 = vmax.f32 %v1842, 0.0
      %v1859 = vmax.f32 %v1843, 0.0
      %v1860 = vmax.f32 %v1844, 0.0
      %v1861 = vmax.f32 %v1845, 0.0
      %v1862 = vmax.f32 %v1846, 0.0
      %v1863 = vmax.f32 %v1847, 0.0
      %v1864 = vmax.f32 %v1848, 0.0
      %v1865 = vmax.f32 %v1849, 0.0
      %v1866 = vmax.f32 %v1850, 0.0
      %v1867 = vmax.f32 %v1851, 0.0
      %v1868 = vpack.c.bf16 %v1854, %v1852
      %v1869 = vpack.c.bf16 %v1855, %v1853
      %v1870 = vpack.c.bf16 %v1858, %v1856
      %v1871 = vpack.c.bf16 %v1859, %v1857
      %v1872 = vpack.c.bf16 %v1862, %v1860
      %v1873 = vpack.c.bf16 %v1863, %v1861
      %v1874 = vpack.c.bf16 %v1866, %v1864
      %v1875 = vpack.c.bf16 %v1867, %v1865
      %v1884 = vunpack.c.l.b16 %v1868
      %v1885 = vunpack.c.l.b16 %v1869
      %v1886 = vunpack.c.h.b16 %v1868
      %v1887 = vunpack.c.h.b16 %v1869
      %v1888 = vunpack.c.l.b16 %v1870
      %v1889 = vunpack.c.l.b16 %v1871
      %v1890 = vunpack.c.h.b16 %v1870
      %v1891 = vunpack.c.h.b16 %v1871
      %v1892 = vunpack.c.l.b16 %v1872
      %v1893 = vunpack.c.l.b16 %v1873
      %v1894 = vunpack.c.h.b16 %v1872
      %v1895 = vunpack.c.h.b16 %v1873
      %v1896 = vunpack.c.l.b16 %v1874
      %v1897 = vunpack.c.l.b16 %v1875
      %v1898 = vunpack.c.h.b16 %v1874
      %v1899 = vunpack.c.h.b16 %v1875
      %v1900 = vpack.c.b16 %v1885, %v1884
      %v1901 = vpack.c.b16 %v1887, %v1886
      %v1902 = vpack.c.b16 %v1889, %v1888
      %v1903 = vpack.c.b16 %v1891, %v1890
      %v1904 = vpack.c.b16 %v1893, %v1892
      %v1905 = vpack.c.b16 %v1895, %v1894
      %v1906 = vpack.c.b16 %v1897, %v1896
      %v1907 = vpack.c.b16 %v1899, %v1898
      %1916 = vst [vmem:[%s334] sm:$0xff] %v1900
      %1917 = vst [vmem:[%s334 + $0x8] sm:$0xff] %v1901
      %1918 = vst [vmem:[%s334 + $0x10] sm:$0xff] %v1902
      %1919 = vst [vmem:[%s334 + $0x18] sm:$0xff] %v1903
      %1920 = vst [vmem:[%s334 + $0x20] sm:$0xff] %v1904
      %1921 = vst [vmem:[%s334 + $0x28] sm:$0xff] %v1905
      %1922 = vst [vmem:[%s334 + $0x30] sm:$0xff] %v1906
      %1923 = vst [vmem:[%s334 + $0x38] sm:$0xff] %v1907
      %s1924 = smul.u32 8, %s19
      %p1925 = scmp.lt.s32.totalorder %s1924, 15
      %s1926 = scalar_select %p1925, %s1924, 15
      %s1927 = smul.addr %s1926, 2
      %s1928 = smul.addr %s1927, 4
      %s1929 = scalar_lea.vmem %s8, %s1928
      // Predicated region
      $region53: #{orientation_predictor_forward.6} parent=51 // pred_check
        %p1930 = pneg %p215
      $region54: #{orientation_predictor_forward.6} parent=51 // pred_check_branch
        %1932 = sbr.rel (%p1930) target = $region56
      $region55: #{orientation_predictor_forward.6} parent=51 // pred_region
        %s1933 = smul.u32 8, %s19
      $region56: #{orientation_predictor_forward.6} parent=51 // pred_fallthru
        _
    $region52: #{orientation_predictor_forward.6} parent=5 // pred_fallthru
      _
    %p1934 = scmp.le.s32.totalorder 2, %s14
    // Predicated region
    $region57: #{orientation_predictor_forward.6} parent=5 // pred_check
      %p1935 = pneg %p1934
    $region58: #{orientation_predictor_forward.6} parent=5 // pred_check_branch
      %1937 = sbr.rel (%p1935) target = $region60
    $region59: #{orientation_predictor_forward.6} parent=5 // pred_region
      %s1938 = ssub.s32 %s14, 2
      // Predicated region
      $region61: #{orientation_predictor_forward.6} parent=59 // pred_check
        %p1939 = pneg %p221
      $region62: #{orientation_predictor_forward.6} parent=59 // pred_check_branch
        %1941 = sbr.rel (%p1939) target = $region64
      $region63: #{orientation_predictor_forward.6} parent=59 // pred_region
        %s1942 = smul.u32 8, %s20
        %p1943 = scmp.lt.s32.totalorder %s1942, 15
        %s1944 = scalar_select %p1943, %s1942, 15
        %s1945 = smul.addr %s1944, 2
        %s1946 = smul.addr %s1945, 4
        %s1947 = scalar_lea.vmem %s8, %s1946
      $region64: #{orientation_predictor_forward.6} parent=59 // pred_fallthru
        _
    $region60: #{orientation_predictor_forward.6} parent=5 // pred_fallthru
      _
  $region6: #{orientation_predictor_forward.6} parent=0 // loop_footer
    %s18 = sadd.s32 1, %s14
  $region7: #{orientation_predictor_forward.6} parent=0 // loop_footer_branch
    %13 = sbr.rel target = $region3
  $region8: #{orientation_predictor_forward.6} parent=0 // loop_exit
    _

</llo_original>
